<compile_context>
chip_gen: v6e
topology: v6e:2x2x1
jax: 0.10.0
libtpu: 0.0.40
codegen_flags: <defaults>
</compile_context>

<pallas_src>
import math

import jax
import jax.numpy as jnp
import numpy as np
from jax import lax
from jax.experimental import pallas as pl
from jax.experimental.pallas import tpu as pltpu


def _mish_exact(x):
    # numerically-stable reference Mish (matches F.softplus behaviour)
    sp = jnp.maximum(x, 0.0) + jnp.log1p(jnp.exp(-jnp.abs(x)))
    return x * jnp.tanh(sp)


def _mish_fast(x):
    # mish(x) = x * tanh(softplus(x)) = x * (t^2 - 1) / (t^2 + 1)  with  t = 1 + e^x.
    # One EUP exp + one EUP approx reciprocal; clamp keeps e^x finite (ratio == 1 for x >= 20).
    e = jnp.exp(jnp.minimum(x, 20.0))
    t = 1.0 + e
    t2 = t * t
    return x * (t2 - 1.0) * pl.reciprocal(t2 + 1.0, approx=True)


def make_aspp_kernel(H, W, P, dilations, Cin, Cout, BB, Kd, Kdp):
    """One grid step = BB images, computed as D accumulated folded bf16 matmuls."""
    Wp = W + 2 * P
    Hp = H + 2 * P
    HWw = H * Wp                     # "wide" output row length; valid columns sliced in wrapper
    L = Hp * Wp + 2 * P              # flat padded length per channel (+P guard at each end)
    N = BB * HWw                     # matmul RHS lane width (all images of this step)
    base = 2 * P + P * Wp            # flat offset of interior row 0's first valid element
    tail = base + (H - 1) * Wp + W + 2 * P
    tail_len = L - tail              # == P * Wp

    def kernel(x_ref, w_ref, b_ref, out_ref, xpad_ref, slab_ref):
        # --- zero ONLY the pad border of xpad (interior is fully overwritten below) --------
        xpad_ref[:, :, 0:base] = jnp.zeros((BB, Cin, base), jnp.bfloat16)
        xpad_ref[:, :, tail:tail + tail_len] = jnp.zeros((BB, Cin, tail_len), jnp.bfloat16)
        gap_z = jnp.zeros((BB, Cin, 2 * P), jnp.bfloat16)

        # Row copies (f32 -> bf16 cast happens here, not in the wrapper). Offsets are static
        # Python ints so every store lowers to a plain (masked) vst with no dynamic lane math.
        # TODO(synk): for production-size H, switch this (and the grid) to an H-tiled
        # lax.fori_loop with a P-row halo instead of a trace-time-unrolled loop, and make the
        # H-tile axis "parallel" so v7x's 2 TensorCores get work even at B=1.
        for y in range(H):
            dst = base + y * Wp
            xpad_ref[:, :, dst:dst + W] = x_ref[:, :, y * W:(y + 1) * W].astype(jnp.bfloat16)
            xpad_ref[:, :, dst + W:dst + W + 2 * P] = gap_z     # right pad + next row's left pad

        # --- zero the K padding rows of the (reused) per-dilation slab once per step -------
        if Kdp > Kd:
            slab_ref[Kd:Kdp, :] = jnp.zeros((Kdp - Kd, N), jnp.bfloat16)

        # --- per-dilation im2col slab + accumulated MXU matmul (bf16 in, f32 acc) ----------
        # TODO(synk): for production Cin (multiple of 16), pad each tap block to the bf16
        # sublane tile so the tap stores are tile-aligned; with Cin=4 here they are masked.
        acc = None
        for di, d in enumerate(dilations):
            t = 0
            for ky in range(3):
                for kx in range(3):
                    # each 3x3 tap of this dilation is ONE contiguous window of the flat buffer
                    s = P + (P + (ky - 1) * d) * Wp + (kx - 1) * d
                    for b in range(BB):
                        slab_ref[t * Cin:(t + 1) * Cin, b * HWw:(b + 1) * HWw] = \
                            xpad_ref[b, :, s:s + HWw]
                    t += 1
            part = jnp.dot(w_ref[di], slab_ref[...],
                           preferred_element_type=jnp.float32)          # [Cout, N] f32
            acc = part if acc is None else acc + part

        y_out = _mish_fast(acc + b_ref[...])                            # folded bias + Mish
        for b in range(BB):                                             # lane-dense stores
            out_ref[b] = y_out[:, b * HWw:(b + 1) * HWw].astype(out_ref.dtype)

    return kernel


def _fold_weights(w3, b3, w1, b1, dilations, Kdp):
    """Fold conv1x1 into the shared 3x3 weights, per dilation.

    Returns W_lhs [D, Cout, Kdp] (bf16, rows ordered (tap=(ky,kx), cin)) and
    b_eff [Cout, 1] (f32) with  b_eff = b1 + sum_d (w1_d @ b3).
    """
    Cout, Cin = w3.shape[0], w3.shape[1]
    D = len(dilations)
    Kd = 9 * Cin
    w3_t = jnp.transpose(w3, (2, 3, 1, 0)).reshape(9, Cin, Cout)      # [tap, cin, cmid]
    w1_m = w1[:, :, 0, 0].reshape(Cout, D, Cout)                      # [cout, d, cmid]
    folded = jnp.einsum('tic,odc->dtio', w3_t, w1_m)                  # [D, 9, Cin, Cout]
    w_lhs = jnp.transpose(folded.reshape(D, Kd, Cout), (0, 2, 1))     # [D, Cout, Kd]
    w_lhs = jnp.pad(w_lhs, ((0, 0), (0, 0), (0, Kdp - Kd))).astype(jnp.bfloat16)
    b_eff = (b1 + jnp.einsum('c,odc->o', b3, w1_m)).reshape(Cout, 1).astype(jnp.float32)
    return w_lhs, b_eff


def _aspp_share_forward(x_nchw, w3, b3, w1, b1, dilations):
    """x_nchw: [B, Cin, H, W] f32. w3: [Cout, Cin, 3, 3], b3: [Cout],
    w1: [Cout, len(dilations)*Cout, 1, 1], b1: [Cout]. Returns [B, Cout, H, W] f32."""
    B, Cin, H, W = x_nchw.shape
    Cout = w3.shape[0]
    D = len(dilations)
    P = max(dilations)
    Wp, Hp = W + 2 * P, H + 2 * P
    HWw = H * Wp
    L = Hp * Wp + 2 * P

    Kd = 9 * Cin
    Kdp = ((Kd + 15) // 16) * 16            # bf16 sublane-tile aligned contraction depth
    w_lhs, b_eff = _fold_weights(w3, b3, w1, b1, dilations, Kdp)

    BB = max(1, math.gcd(B, 8))             # images per grid step (amortise per-step overhead)
    grid = (B // BB,)
    N = BB * HWw

    # NCHW is already channel-major: flattening spatial is free; the bf16 cast happens inside
    # the kernel during the padded row copy (no standalone cast pass over HBM).
    x_flat = x_nchw.reshape(B, Cin, H * W)

    # VMEM budget derived from actual usage: scratch + double-buffered in/out blocks,
    # with headroom for compiler temporaries (keeps well under v7x's 64 MiB/TC).
    vmem_bytes = (
        BB * Cin * L * 2                  # xpad scratch (bf16)
        + Kdp * N * 2                     # per-dilation slab scratch (bf16, reused)
        + 2 * (BB * Cin * H * W * 4)      # x block, double-buffered (f32)
        + 2 * (D * Cout * Kdp * 2)        # folded weights (bf16)
        + 2 * (Cout * 4)                  # bias
        + 2 * (BB * Cout * HWw * 4))      # out block, double-buffered (f32)
    vmem_limit = int(min(64 * 1024 * 1024, max(4 * 1024 * 1024, 2 * vmem_bytes)))

    kernel = make_aspp_kernel(H, W, P, tuple(dilations), Cin, Cout, BB, Kd, Kdp)
    out_wide = pl.pallas_call(
        kernel,
        out_shape=jax.ShapeDtypeStruct((B, Cout, HWw), jnp.float32),
        grid=grid,
        in_specs=[
            pl.BlockSpec((BB, Cin, H * W), lambda g: (g, 0, 0)),
            pl.BlockSpec((D, Cout, Kdp), lambda g: (0, 0, 0)),
            pl.BlockSpec((Cout, 1), lambda g: (0, 0)),
        ],
        out_specs=pl.BlockSpec((BB, Cout, HWw), lambda g: (g, 0, 0)),
        scratch_shapes=[
            pltpu.VMEM((BB, Cin, L), jnp.bfloat16),   # flat zero-padded input
            pltpu.VMEM((Kdp, N), jnp.bfloat16),       # per-dilation im2col slab (reused)
        ],
        compiler_params=pltpu.CompilerParams(
            dimension_semantics=("parallel",),
            vmem_limit_bytes=vmem_limit),
    )(x_flat, w_lhs, b_eff)

    # Drop the Wp-wide pad columns -> [B, Cout, H, W]; already NCHW, no transpose.
    # TODO(synk): when production W % 128 == 0, emit only the valid (lane-aligned) columns
    # from the kernel and drop this slice pass / the extra writeback columns entirely.
    return out_wide.reshape(B, Cout, H, Wp)[:, :, :, P:P + W]


aspp_share_forward = jax.jit(_aspp_share_forward, static_argnames="dilations")


def aspp_share_reference(x, w3, b3, w1, b1, dilations):
    """Pure-JAX f32 NCHW reference mirroring the PyTorch forward."""
    outs = []
    for d in dilations:
        y = lax.conv_general_dilated(
            x, w3, window_strides=(1, 1), padding=((d, d), (d, d)),
            rhs_dilation=(d, d), dimension_numbers=('NCHW', 'OIHW', 'NCHW'))
        outs.append(y + b3[None, :, None, None])
    cat = jnp.concatenate(outs, axis=1)
    y = lax.conv_general_dilated(
        cat, w1, window_strides=(1, 1), padding=((0, 0), (0, 0)),
        dimension_numbers=('NCHW', 'OIHW', 'NCHW'))
    y = y + b1[None, :, None, None]
    return _mish_exact(y)


if __name__ == "__main__":
    # Small, module-consistent shapes.
    B, Cin, H, W = 2, 4, 16, 16
    channels = 8
    dilations = (1, 2, 4)
    D = len(dilations)

    key = jax.random.PRNGKey(0)
    kx, kw3, kb3, kw1, kb1 = jax.random.split(key, 5)

    x = jax.random.normal(kx, (B, Cin, H, W), dtype=jnp.float32)
    # shared_conv: ConvModule(in_channels, channels, 3) -> 3x3 conv weight/bias
    w3 = jax.random.normal(kw3, (channels, Cin, 3, 3), dtype=jnp.float32) * 0.1
    b3 = jax.random.normal(kb3, (channels,), dtype=jnp.float32) * 0.1
    # conv1x1: Conv2d(len(dilations)*channels, channels, 1)
    w1 = jax.random.normal(kw1, (channels, D * channels, 1, 1), dtype=jnp.float32) * 0.1
    b1 = jax.random.normal(kb1, (channels,), dtype=jnp.float32) * 0.1

    out = aspp_share_forward(x, w3, b3, w1, b1, dilations)
    out = jax.block_until_ready(out)

    ref = aspp_share_reference(x, w3, b3, w1, b1, dilations)
    # bf16 matmul operands (input cast to bf16 in-kernel) + approx-reciprocal Mish
    # -> compare with bf16-level tolerance.
    np.testing.assert_allclose(np.asarray(out), np.asarray(ref), rtol=2e-2, atol=2e-2)
    assert out.shape == (B, channels, H, W)

    print("KERNEL_OK")
</pallas_src>

<mosaic_0001>
module attributes {stable_mosaic.version = 11 : i64} {
  func.func @kernel(%arg0: i32, %arg1: memref<2x4x256xf32, #tpu.memory_space<vmem>>, %arg2: memref<3x8x48xbf16, #tpu.memory_space<vmem>>, %arg3: memref<8x1xf32, #tpu.memory_space<vmem>>, %arg4: memref<2x8x384xf32, #tpu.memory_space<vmem>>, %arg5: memref<2x4x584xbf16, #tpu.memory_space<vmem>>, %arg6: memref<48x768xbf16, #tpu.memory_space<vmem>>) attributes {dimension_semantics = [#tpu.dimension_semantics<parallel>], iteration_bounds = array<i64: 1>, scalar_prefetch = 0 : i64, scratch_operands = 2 : i64, tpu.core_type = #tpu.core_type<tc>, window_params = [{transform_indices = @transform_0, window_bounds = array<i64: 2, 4, 256>}, {pipeline_mode = #tpu.pipeline_mode<synchronous>, transform_indices = @transform_1, window_bounds = array<i64: 3, 8, 48>}, {pipeline_mode = #tpu.pipeline_mode<synchronous>, transform_indices = @transform_2, window_bounds = array<i64: 8, 1>}, {transform_indices = @transform_3, window_bounds = array<i64: 2, 8, 384>}]} {
    %cst = arith.constant 0.000000e+00 : bf16
    %0 = vector.broadcast %cst : bf16 to vector<2x4x104xbf16>
    %c0 = arith.constant 0 : index
    %c0_0 = arith.constant 0 : index
    %c0_1 = arith.constant 0 : index
    %1 = vector.load %arg5[%c0, %c0_0, %c0_1] : memref<2x4x584xbf16, #tpu.memory_space<vmem>>, vector<2x4x104xbf16>
    tpu.vector_store %arg5[%c0, %c0_0, %c0_1], %0 {strides = array<i32>} : memref<2x4x584xbf16, #tpu.memory_space<vmem>>, vector<2x4x104xbf16>,
    %cst_2 = arith.constant 0.000000e+00 : bf16
    %2 = vector.broadcast %cst_2 : bf16 to vector<2x4x96xbf16>
    %c0_3 = arith.constant 0 : index
    %c0_4 = arith.constant 0 : index
    %c488 = arith.constant 488 : index
    %3 = vector.load %arg5[%c0_3, %c0_4, %c488] : memref<2x4x584xbf16, #tpu.memory_space<vmem>>, vector<2x4x96xbf16>
    tpu.vector_store %arg5[%c0_3, %c0_4, %c488], %2 {strides = array<i32>} : memref<2x4x584xbf16, #tpu.memory_space<vmem>>, vector<2x4x96xbf16>,
    %cst_5 = arith.constant 0.000000e+00 : bf16
    %4 = vector.broadcast %cst_5 : bf16 to vector<2x4x8xbf16>
    %c0_6 = arith.constant 0 : index
    %c0_7 = arith.constant 0 : index
    %c0_8 = arith.constant 0 : index
    %5 = vector.load %arg1[%c0_6, %c0_7, %c0_8] : memref<2x4x256xf32, #tpu.memory_space<vmem>>, vector<2x4x16xf32>
    %6 = arith.truncf %5 : vector<2x4x16xf32> to vector<2x4x16xbf16>
    %c0_9 = arith.constant 0 : index
    %c0_10 = arith.constant 0 : index
    %c104 = arith.constant 104 : index
    %7 = vector.load %arg5[%c0_9, %c0_10, %c104] : memref<2x4x584xbf16, #tpu.memory_space<vmem>>, vector<2x4x16xbf16>
    tpu.vector_store %arg5[%c0_9, %c0_10, %c104], %6 {strides = array<i32>} : memref<2x4x584xbf16, #tpu.memory_space<vmem>>, vector<2x4x16xbf16>,
    %c0_11 = arith.constant 0 : index
    %c0_12 = arith.constant 0 : index
    %c120 = arith.constant 120 : index
    %8 = vector.load %arg5[%c0_11, %c0_12, %c120] : memref<2x4x584xbf16, #tpu.memory_space<vmem>>, vector<2x4x8xbf16>
    tpu.vector_store %arg5[%c0_11, %c0_12, %c120], %4 {strides = array<i32>} : memref<2x4x584xbf16, #tpu.memory_space<vmem>>, vector<2x4x8xbf16>,
    %c0_13 = arith.constant 0 : index
    %c0_14 = arith.constant 0 : index
    %c16 = arith.constant 16 : index
    %9 = vector.load %arg1[%c0_13, %c0_14, %c16] : memref<2x4x256xf32, #tpu.memory_space<vmem>>, vector<2x4x16xf32>
    %10 = arith.truncf %9 : vector<2x4x16xf32> to vector<2x4x16xbf16>
    %c0_15 = arith.constant 0 : index
    %c0_16 = arith.constant 0 : index
    %c128 = arith.constant 128 : index
    %11 = vector.load %arg5[%c0_15, %c0_16, %c128] : memref<2x4x584xbf16, #tpu.memory_space<vmem>>, vector<2x4x16xbf16>
    tpu.vector_store %arg5[%c0_15, %c0_16, %c128], %10 {strides = array<i32>} : memref<2x4x584xbf16, #tpu.memory_space<vmem>>, vector<2x4x16xbf16>,
    %c0_17 = arith.constant 0 : index
    %c0_18 = arith.constant 0 : index
    %c144 = arith.constant 144 : index
    %12 = vector.load %arg5[%c0_17, %c0_18, %c144] : memref<2x4x584xbf16, #tpu.memory_space<vmem>>, vector<2x4x8xbf16>
    tpu.vector_store %arg5[%c0_17, %c0_18, %c144], %4 {strides = array<i32>} : memref<2x4x584xbf16, #tpu.memory_space<vmem>>, vector<2x4x8xbf16>,
    %c0_19 = arith.constant 0 : index
    %c0_20 = arith.constant 0 : index
    %c32 = arith.constant 32 : index
    %13 = vector.load %arg1[%c0_19, %c0_20, %c32] : memref<2x4x256xf32, #tpu.memory_space<vmem>>, vector<2x4x16xf32>
    %14 = arith.truncf %13 : vector<2x4x16xf32> to vector<2x4x16xbf16>
    %c0_21 = arith.constant 0 : index
    %c0_22 = arith.constant 0 : index
    %c152 = arith.constant 152 : index
    %15 = vector.load %arg5[%c0_21, %c0_22, %c152] : memref<2x4x584xbf16, #tpu.memory_space<vmem>>, vector<2x4x16xbf16>
    tpu.vector_store %arg5[%c0_21, %c0_22, %c152], %14 {strides = array<i32>} : memref<2x4x584xbf16, #tpu.memory_space<vmem>>, vector<2x4x16xbf16>,
    %c0_23 = arith.constant 0 : index
    %c0_24 = arith.constant 0 : index
    %c168 = arith.constant 168 : index
    %16 = vector.load %arg5[%c0_23, %c0_24, %c168] : memref<2x4x584xbf16, #tpu.memory_space<vmem>>, vector<2x4x8xbf16>
    tpu.vector_store %arg5[%c0_23, %c0_24, %c168], %4 {strides = array<i32>} : memref<2x4x584xbf16, #tpu.memory_space<vmem>>, vector<2x4x8xbf16>,
    %c0_25 = arith.constant 0 : index
    %c0_26 = arith.constant 0 : index
    %c48 = arith.constant 48 : index
    %17 = vector.load %arg1[%c0_25, %c0_26, %c48] : memref<2x4x256xf32, #tpu.memory_space<vmem>>, vector<2x4x16xf32>
    %18 = arith.truncf %17 : vector<2x4x16xf32> to vector<2x4x16xbf16>
    %c0_27 = arith.constant 0 : index
    %c0_28 = arith.constant 0 : index
    %c176 = arith.constant 176 : index
    %19 = vector.load %arg5[%c0_27, %c0_28, %c176] : memref<2x4x584xbf16, #tpu.memory_space<vmem>>, vector<2x4x16xbf16>
    tpu.vector_store %arg5[%c0_27, %c0_28, %c176], %18 {strides = array<i32>} : memref<2x4x584xbf16, #tpu.memory_space<vmem>>, vector<2x4x16xbf16>,
    %c0_29 = arith.constant 0 : index
    %c0_30 = arith.constant 0 : index
    %c192 = arith.constant 192 : index
    %20 = vector.load %arg5[%c0_29, %c0_30, %c192] : memref<2x4x584xbf16, #tpu.memory_space<vmem>>, vector<2x4x8xbf16>
    tpu.vector_store %arg5[%c0_29, %c0_30, %c192], %4 {strides = array<i32>} : memref<2x4x584xbf16, #tpu.memory_space<vmem>>, vector<2x4x8xbf16>,
    %c0_31 = arith.constant 0 : index
    %c0_32 = arith.constant 0 : index
    %c64 = arith.constant 64 : index
    %21 = vector.load %arg1[%c0_31, %c0_32, %c64] : memref<2x4x256xf32, #tpu.memory_space<vmem>>, vector<2x4x16xf32>
    %22 = arith.truncf %21 : vector<2x4x16xf32> to vector<2x4x16xbf16>
    %c0_33 = arith.constant 0 : index
    %c0_34 = arith.constant 0 : index
    %c200 = arith.constant 200 : index
    %23 = vector.load %arg5[%c0_33, %c0_34, %c200] : memref<2x4x584xbf16, #tpu.memory_space<vmem>>, vector<2x4x16xbf16>
    tpu.vector_store %arg5[%c0_33, %c0_34, %c200], %22 {strides = array<i32>} : memref<2x4x584xbf16, #tpu.memory_space<vmem>>, vector<2x4x16xbf16>,
    %c0_35 = arith.constant 0 : index
    %c0_36 = arith.constant 0 : index
    %c216 = arith.constant 216 : index
    %24 = vector.load %arg5[%c0_35, %c0_36, %c216] : memref<2x4x584xbf16, #tpu.memory_space<vmem>>, vector<2x4x8xbf16>
    tpu.vector_store %arg5[%c0_35, %c0_36, %c216], %4 {strides = array<i32>} : memref<2x4x584xbf16, #tpu.memory_space<vmem>>, vector<2x4x8xbf16>,
    %c0_37 = arith.constant 0 : index
    %c0_38 = arith.constant 0 : index
    %c80 = arith.constant 80 : index
    %25 = vector.load %arg1[%c0_37, %c0_38, %c80] : memref<2x4x256xf32, #tpu.memory_space<vmem>>, vector<2x4x16xf32>
    %26 = arith.truncf %25 : vector<2x4x16xf32> to vector<2x4x16xbf16>
    %c0_39 = arith.constant 0 : index
    %c0_40 = arith.constant 0 : index
    %c224 = arith.constant 224 : index
    %27 = vector.load %arg5[%c0_39, %c0_40, %c224] : memref<2x4x584xbf16, #tpu.memory_space<vmem>>, vector<2x4x16xbf16>
    tpu.vector_store %arg5[%c0_39, %c0_40, %c224], %26 {strides = array<i32>} : memref<2x4x584xbf16, #tpu.memory_space<vmem>>, vector<2x4x16xbf16>,
    %c0_41 = arith.constant 0 : index
    %c0_42 = arith.constant 0 : index
    %c240 = arith.constant 240 : index
    %28 = vector.load %arg5[%c0_41, %c0_42, %c240] : memref<2x4x584xbf16, #tpu.memory_space<vmem>>, vector<2x4x8xbf16>
    tpu.vector_store %arg5[%c0_41, %c0_42, %c240], %4 {strides = array<i32>} : memref<2x4x584xbf16, #tpu.memory_space<vmem>>, vector<2x4x8xbf16>,
    %c0_43 = arith.constant 0 : index
    %c0_44 = arith.constant 0 : index
    %c96 = arith.constant 96 : index
    %29 = vector.load %arg1[%c0_43, %c0_44, %c96] : memref<2x4x256xf32, #tpu.memory_space<vmem>>, vector<2x4x16xf32>
    %30 = arith.truncf %29 : vector<2x4x16xf32> to vector<2x4x16xbf16>
    %c0_45 = arith.constant 0 : index
    %c0_46 = arith.constant 0 : index
    %c248 = arith.constant 248 : index
    %31 = vector.load %arg5[%c0_45, %c0_46, %c248] : memref<2x4x584xbf16, #tpu.memory_space<vmem>>, vector<2x4x16xbf16>
    tpu.vector_store %arg5[%c0_45, %c0_46, %c248], %30 {strides = array<i32>} : memref<2x4x584xbf16, #tpu.memory_space<vmem>>, vector<2x4x16xbf16>,
    %c0_47 = arith.constant 0 : index
    %c0_48 = arith.constant 0 : index
    %c264 = arith.constant 264 : index
    %32 = vector.load %arg5[%c0_47, %c0_48, %c264] : memref<2x4x584xbf16, #tpu.memory_space<vmem>>, vector<2x4x8xbf16>
    tpu.vector_store %arg5[%c0_47, %c0_48, %c264], %4 {strides = array<i32>} : memref<2x4x584xbf16, #tpu.memory_space<vmem>>, vector<2x4x8xbf16>,
    %c0_49 = arith.constant 0 : index
    %c0_50 = arith.constant 0 : index
    %c112 = arith.constant 112 : index
    %33 = vector.load %arg1[%c0_49, %c0_50, %c112] : memref<2x4x256xf32, #tpu.memory_space<vmem>>, vector<2x4x16xf32>
    %34 = arith.truncf %33 : vector<2x4x16xf32> to vector<2x4x16xbf16>
    %c0_51 = arith.constant 0 : index
    %c0_52 = arith.constant 0 : index
    %c272 = arith.constant 272 : index
    %35 = vector.load %arg5[%c0_51, %c0_52, %c272] : memref<2x4x584xbf16, #tpu.memory_space<vmem>>, vector<2x4x16xbf16>
    tpu.vector_store %arg5[%c0_51, %c0_52, %c272], %34 {strides = array<i32>} : memref<2x4x584xbf16, #tpu.memory_space<vmem>>, vector<2x4x16xbf16>,
    %c0_53 = arith.constant 0 : index
    %c0_54 = arith.constant 0 : index
    %c288 = arith.constant 288 : index
    %36 = vector.load %arg5[%c0_53, %c0_54, %c288] : memref<2x4x584xbf16, #tpu.memory_space<vmem>>, vector<2x4x8xbf16>
    tpu.vector_store %arg5[%c0_53, %c0_54, %c288], %4 {strides = array<i32>} : memref<2x4x584xbf16, #tpu.memory_space<vmem>>, vector<2x4x8xbf16>,
    %c0_55 = arith.constant 0 : index
    %c0_56 = arith.constant 0 : index
    %c128_57 = arith.constant 128 : index
    %37 = vector.load %arg1[%c0_55, %c0_56, %c128_57] : memref<2x4x256xf32, #tpu.memory_space<vmem>>, vector<2x4x16xf32>
    %38 = arith.truncf %37 : vector<2x4x16xf32> to vector<2x4x16xbf16>
    %c0_58 = arith.constant 0 : index
    %c0_59 = arith.constant 0 : index
    %c296 = arith.constant 296 : index
    %39 = vector.load %arg5[%c0_58, %c0_59, %c296] : memref<2x4x584xbf16, #tpu.memory_space<vmem>>, vector<2x4x16xbf16>
    tpu.vector_store %arg5[%c0_58, %c0_59, %c296], %38 {strides = array<i32>} : memref<2x4x584xbf16, #tpu.memory_space<vmem>>, vector<2x4x16xbf16>,
    %c0_60 = arith.constant 0 : index
    %c0_61 = arith.constant 0 : index
    %c312 = arith.constant 312 : index
    %40 = vector.load %arg5[%c0_60, %c0_61, %c312] : memref<2x4x584xbf16, #tpu.memory_space<vmem>>, vector<2x4x8xbf16>
    tpu.vector_store %arg5[%c0_60, %c0_61, %c312], %4 {strides = array<i32>} : memref<2x4x584xbf16, #tpu.memory_space<vmem>>, vector<2x4x8xbf16>,
    %c0_62 = arith.constant 0 : index
    %c0_63 = arith.constant 0 : index
    %c144_64 = arith.constant 144 : index
    %41 = vector.load %arg1[%c0_62, %c0_63, %c144_64] : memref<2x4x256xf32, #tpu.memory_space<vmem>>, vector<2x4x16xf32>
    %42 = arith.truncf %41 : vector<2x4x16xf32> to vector<2x4x16xbf16>
    %c0_65 = arith.constant 0 : index
    %c0_66 = arith.constant 0 : index
    %c320 = arith.constant 320 : index
    %43 = vector.load %arg5[%c0_65, %c0_66, %c320] : memref<2x4x584xbf16, #tpu.memory_space<vmem>>, vector<2x4x16xbf16>
    tpu.vector_store %arg5[%c0_65, %c0_66, %c320], %42 {strides = array<i32>} : memref<2x4x584xbf16, #tpu.memory_space<vmem>>, vector<2x4x16xbf16>,
    %c0_67 = arith.constant 0 : index
    %c0_68 = arith.constant 0 : index
    %c336 = arith.constant 336 : index
    %44 = vector.load %arg5[%c0_67, %c0_68, %c336] : memref<2x4x584xbf16, #tpu.memory_space<vmem>>, vector<2x4x8xbf16>
    tpu.vector_store %arg5[%c0_67, %c0_68, %c336], %4 {strides = array<i32>} : memref<2x4x584xbf16, #tpu.memory_space<vmem>>, vector<2x4x8xbf16>,
    %c0_69 = arith.constant 0 : index
    %c0_70 = arith.constant 0 : index
    %c160 = arith.constant 160 : index
    %45 = vector.load %arg1[%c0_69, %c0_70, %c160] : memref<2x4x256xf32, #tpu.memory_space<vmem>>, vector<2x4x16xf32>
    %46 = arith.truncf %45 : vector<2x4x16xf32> to vector<2x4x16xbf16>
    %c0_71 = arith.constant 0 : index
    %c0_72 = arith.constant 0 : index
    %c344 = arith.constant 344 : index
    %47 = vector.load %arg5[%c0_71, %c0_72, %c344] : memref<2x4x584xbf16, #tpu.memory_space<vmem>>, vector<2x4x16xbf16>
    tpu.vector_store %arg5[%c0_71, %c0_72, %c344], %46 {strides = array<i32>} : memref<2x4x584xbf16, #tpu.memory_space<vmem>>, vector<2x4x16xbf16>,
    %c0_73 = arith.constant 0 : index
    %c0_74 = arith.constant 0 : index
    %c360 = arith.constant 360 : index
    %48 = vector.load %arg5[%c0_73, %c0_74, %c360] : memref<2x4x584xbf16, #tpu.memory_space<vmem>>, vector<2x4x8xbf16>
    tpu.vector_store %arg5[%c0_73, %c0_74, %c360], %4 {strides = array<i32>} : memref<2x4x584xbf16, #tpu.memory_space<vmem>>, vector<2x4x8xbf16>,
    %c0_75 = arith.constant 0 : index
    %c0_76 = arith.constant 0 : index
    %c176_77 = arith.constant 176 : index
    %49 = vector.load %arg1[%c0_75, %c0_76, %c176_77] : memref<2x4x256xf32, #tpu.memory_space<vmem>>, vector<2x4x16xf32>
    %50 = arith.truncf %49 : vector<2x4x16xf32> to vector<2x4x16xbf16>
    %c0_78 = arith.constant 0 : index
    %c0_79 = arith.constant 0 : index
    %c368 = arith.constant 368 : index
    %51 = vector.load %arg5[%c0_78, %c0_79, %c368] : memref<2x4x584xbf16, #tpu.memory_space<vmem>>, vector<2x4x16xbf16>
    tpu.vector_store %arg5[%c0_78, %c0_79, %c368], %50 {strides = array<i32>} : memref<2x4x584xbf16, #tpu.memory_space<vmem>>, vector<2x4x16xbf16>,
    %c0_80 = arith.constant 0 : index
    %c0_81 = arith.constant 0 : index
    %c384 = arith.constant 384 : index
    %52 = vector.load %arg5[%c0_80, %c0_81, %c384] : memref<2x4x584xbf16, #tpu.memory_space<vmem>>, vector<2x4x8xbf16>
    tpu.vector_store %arg5[%c0_80, %c0_81, %c384], %4 {strides = array<i32>} : memref<2x4x584xbf16, #tpu.memory_space<vmem>>, vector<2x4x8xbf16>,
    %c0_82 = arith.constant 0 : index
    %c0_83 = arith.constant 0 : index
    %c192_84 = arith.constant 192 : index
    %53 = vector.load %arg1[%c0_82, %c0_83, %c192_84] : memref<2x4x256xf32, #tpu.memory_space<vmem>>, vector<2x4x16xf32>
    %54 = arith.truncf %53 : vector<2x4x16xf32> to vector<2x4x16xbf16>
    %c0_85 = arith.constant 0 : index
    %c0_86 = arith.constant 0 : index
    %c392 = arith.constant 392 : index
    %55 = vector.load %arg5[%c0_85, %c0_86, %c392] : memref<2x4x584xbf16, #tpu.memory_space<vmem>>, vector<2x4x16xbf16>
    tpu.vector_store %arg5[%c0_85, %c0_86, %c392], %54 {strides = array<i32>} : memref<2x4x584xbf16, #tpu.memory_space<vmem>>, vector<2x4x16xbf16>,
    %c0_87 = arith.constant 0 : index
    %c0_88 = arith.constant 0 : index
    %c408 = arith.constant 408 : index
    %56 = vector.load %arg5[%c0_87, %c0_88, %c408] : memref<2x4x584xbf16, #tpu.memory_space<vmem>>, vector<2x4x8xbf16>
    tpu.vector_store %arg5[%c0_87, %c0_88, %c408], %4 {strides = array<i32>} : memref<2x4x584xbf16, #tpu.memory_space<vmem>>, vector<2x4x8xbf16>,
    %c0_89 = arith.constant 0 : index
    %c0_90 = arith.constant 0 : index
    %c208 = arith.constant 208 : index
    %57 = vector.load %arg1[%c0_89, %c0_90, %c208] : memref<2x4x256xf32, #tpu.memory_space<vmem>>, vector<2x4x16xf32>
    %58 = arith.truncf %57 : vector<2x4x16xf32> to vector<2x4x16xbf16>
    %c0_91 = arith.constant 0 : index
    %c0_92 = arith.constant 0 : index
    %c416 = arith.constant 416 : index
    %59 = vector.load %arg5[%c0_91, %c0_92, %c416] : memref<2x4x584xbf16, #tpu.memory_space<vmem>>, vector<2x4x16xbf16>
    tpu.vector_store %arg5[%c0_91, %c0_92, %c416], %58 {strides = array<i32>} : memref<2x4x584xbf16, #tpu.memory_space<vmem>>, vector<2x4x16xbf16>,
    %c0_93 = arith.constant 0 : index
    %c0_94 = arith.constant 0 : index
    %c432 = arith.constant 432 : index
    %60 = vector.load %arg5[%c0_93, %c0_94, %c432] : memref<2x4x584xbf16, #tpu.memory_space<vmem>>, vector<2x4x8xbf16>
    tpu.vector_store %arg5[%c0_93, %c0_94, %c432], %4 {strides = array<i32>} : memref<2x4x584xbf16, #tpu.memory_space<vmem>>, vector<2x4x8xbf16>,
    %c0_95 = arith.constant 0 : index
    %c0_96 = arith.constant 0 : index
    %c224_97 = arith.constant 224 : index
    %61 = vector.load %arg1[%c0_95, %c0_96, %c224_97] : memref<2x4x256xf32, #tpu.memory_space<vmem>>, vector<2x4x16xf32>
    %62 = arith.truncf %61 : vector<2x4x16xf32> to vector<2x4x16xbf16>
    %c0_98 = arith.constant 0 : index
    %c0_99 = arith.constant 0 : index
    %c440 = arith.constant 440 : index
    %63 = vector.load %arg5[%c0_98, %c0_99, %c440] : memref<2x4x584xbf16, #tpu.memory_space<vmem>>, vector<2x4x16xbf16>
    tpu.vector_store %arg5[%c0_98, %c0_99, %c440], %62 {strides = array<i32>} : memref<2x4x584xbf16, #tpu.memory_space<vmem>>, vector<2x4x16xbf16>,
    %c0_100 = arith.constant 0 : index
    %c0_101 = arith.constant 0 : index
    %c456 = arith.constant 456 : index
    %64 = vector.load %arg5[%c0_100, %c0_101, %c456] : memref<2x4x584xbf16, #tpu.memory_space<vmem>>, vector<2x4x8xbf16>
    tpu.vector_store %arg5[%c0_100, %c0_101, %c456], %4 {strides = array<i32>} : memref<2x4x584xbf16, #tpu.memory_space<vmem>>, vector<2x4x8xbf16>,
    %c0_102 = arith.constant 0 : index
    %c0_103 = arith.constant 0 : index
    %c240_104 = arith.constant 240 : index
    %65 = vector.load %arg1[%c0_102, %c0_103, %c240_104] : memref<2x4x256xf32, #tpu.memory_space<vmem>>, vector<2x4x16xf32>
    %66 = arith.truncf %65 : vector<2x4x16xf32> to vector<2x4x16xbf16>
    %c0_105 = arith.constant 0 : index
    %c0_106 = arith.constant 0 : index
    %c464 = arith.constant 464 : index
    %67 = vector.load %arg5[%c0_105, %c0_106, %c464] : memref<2x4x584xbf16, #tpu.memory_space<vmem>>, vector<2x4x16xbf16>
    tpu.vector_store %arg5[%c0_105, %c0_106, %c464], %66 {strides = array<i32>} : memref<2x4x584xbf16, #tpu.memory_space<vmem>>, vector<2x4x16xbf16>,
    %c0_107 = arith.constant 0 : index
    %c0_108 = arith.constant 0 : index
    %c480 = arith.constant 480 : index
    %68 = vector.load %arg5[%c0_107, %c0_108, %c480] : memref<2x4x584xbf16, #tpu.memory_space<vmem>>, vector<2x4x8xbf16>
    tpu.vector_store %arg5[%c0_107, %c0_108, %c480], %4 {strides = array<i32>} : memref<2x4x584xbf16, #tpu.memory_space<vmem>>, vector<2x4x8xbf16>,
    %cst_109 = arith.constant 0.000000e+00 : bf16
    %69 = vector.broadcast %cst_109 : bf16 to vector<12x768xbf16>
    %c36 = arith.constant 36 : index
    %c0_110 = arith.constant 0 : index
    %70 = vector.load %arg6[%c36, %c0_110] : memref<48x768xbf16, #tpu.memory_space<vmem>>, vector<12x768xbf16>
    tpu.vector_store %arg6[%c36, %c0_110], %69 {strides = array<i32>} : memref<48x768xbf16, #tpu.memory_space<vmem>>, vector<12x768xbf16>,
    %c0_111 = arith.constant 0 : index
    %c0_112 = arith.constant 0 : index
    %c75 = arith.constant 75 : index
    %71 = vector.load %arg5[%c0_111, %c0_112, %c75] : memref<2x4x584xbf16, #tpu.memory_space<vmem>>, vector<1x4x384xbf16>
    %72 = vector.shape_cast %71 : vector<1x4x384xbf16> to vector<4x384xbf16>
    %c0_113 = arith.constant 0 : index
    %c0_114 = arith.constant 0 : index
    %73 = vector.load %arg6[%c0_113, %c0_114] : memref<48x768xbf16, #tpu.memory_space<vmem>>, vector<4x384xbf16>
    tpu.vector_store %arg6[%c0_113, %c0_114], %72 {strides = array<i32>} : memref<48x768xbf16, #tpu.memory_space<vmem>>, vector<4x384xbf16>,
    %c1 = arith.constant 1 : index
    %c0_115 = arith.constant 0 : index
    %c75_116 = arith.constant 75 : index
    %74 = vector.load %arg5[%c1, %c0_115, %c75_116] : memref<2x4x584xbf16, #tpu.memory_space<vmem>>, vector<1x4x384xbf16>
    %75 = vector.shape_cast %74 : vector<1x4x384xbf16> to vector<4x384xbf16>
    %c0_117 = arith.constant 0 : index
    %c384_118 = arith.constant 384 : index
    %76 = vector.load %arg6[%c0_117, %c384_118] : memref<48x768xbf16, #tpu.memory_space<vmem>>, vector<4x384xbf16>
    tpu.vector_store %arg6[%c0_117, %c384_118], %75 {strides = array<i32>} : memref<48x768xbf16, #tpu.memory_space<vmem>>, vector<4x384xbf16>,
    %c0_119 = arith.constant 0 : index
    %c0_120 = arith.constant 0 : index
    %c76 = arith.constant 76 : index
    %77 = vector.load %arg5[%c0_119, %c0_120, %c76] : memref<2x4x584xbf16, #tpu.memory_space<vmem>>, vector<1x4x384xbf16>
    %78 = vector.shape_cast %77 : vector<1x4x384xbf16> to vector<4x384xbf16>
    %c4 = arith.constant 4 : index
    %c0_121 = arith.constant 0 : index
    %79 = vector.load %arg6[%c4, %c0_121] : memref<48x768xbf16, #tpu.memory_space<vmem>>, vector<4x384xbf16>
    tpu.vector_store %arg6[%c4, %c0_121], %78 {strides = array<i32>} : memref<48x768xbf16, #tpu.memory_space<vmem>>, vector<4x384xbf16>,
    %c1_122 = arith.constant 1 : index
    %c0_123 = arith.constant 0 : index
    %c76_124 = arith.constant 76 : index
    %80 = vector.load %arg5[%c1_122, %c0_123, %c76_124] : memref<2x4x584xbf16, #tpu.memory_space<vmem>>, vector<1x4x384xbf16>
    %81 = vector.shape_cast %80 : vector<1x4x384xbf16> to vector<4x384xbf16>
    %c4_125 = arith.constant 4 : index
    %c384_126 = arith.constant 384 : index
    %82 = vector.load %arg6[%c4_125, %c384_126] : memref<48x768xbf16, #tpu.memory_space<vmem>>, vector<4x384xbf16>
    tpu.vector_store %arg6[%c4_125, %c384_126], %81 {strides = array<i32>} : memref<48x768xbf16, #tpu.memory_space<vmem>>, vector<4x384xbf16>,
    %c0_127 = arith.constant 0 : index
    %c0_128 = arith.constant 0 : index
    %c77 = arith.constant 77 : index
    %83 = vector.load %arg5[%c0_127, %c0_128, %c77] : memref<2x4x584xbf16, #tpu.memory_space<vmem>>, vector<1x4x384xbf16>
    %84 = vector.shape_cast %83 : vector<1x4x384xbf16> to vector<4x384xbf16>
    %c8 = arith.constant 8 : index
    %c0_129 = arith.constant 0 : index
    %85 = vector.load %arg6[%c8, %c0_129] : memref<48x768xbf16, #tpu.memory_space<vmem>>, vector<4x384xbf16>
    tpu.vector_store %arg6[%c8, %c0_129], %84 {strides = array<i32>} : memref<48x768xbf16, #tpu.memory_space<vmem>>, vector<4x384xbf16>,
    %c1_130 = arith.constant 1 : index
    %c0_131 = arith.constant 0 : index
    %c77_132 = arith.constant 77 : index
    %86 = vector.load %arg5[%c1_130, %c0_131, %c77_132] : memref<2x4x584xbf16, #tpu.memory_space<vmem>>, vector<1x4x384xbf16>
    %87 = vector.shape_cast %86 : vector<1x4x384xbf16> to vector<4x384xbf16>
    %c8_133 = arith.constant 8 : index
    %c384_134 = arith.constant 384 : index
    %88 = vector.load %arg6[%c8_133, %c384_134] : memref<48x768xbf16, #tpu.memory_space<vmem>>, vector<4x384xbf16>
    tpu.vector_store %arg6[%c8_133, %c384_134], %87 {strides = array<i32>} : memref<48x768xbf16, #tpu.memory_space<vmem>>, vector<4x384xbf16>,
    %c0_135 = arith.constant 0 : index
    %c0_136 = arith.constant 0 : index
    %c99 = arith.constant 99 : index
    %89 = vector.load %arg5[%c0_135, %c0_136, %c99] : memref<2x4x584xbf16, #tpu.memory_space<vmem>>, vector<1x4x384xbf16>
    %90 = vector.shape_cast %89 : vector<1x4x384xbf16> to vector<4x384xbf16>
    %c12 = arith.constant 12 : index
    %c0_137 = arith.constant 0 : index
    %91 = vector.load %arg6[%c12, %c0_137] : memref<48x768xbf16, #tpu.memory_space<vmem>>, vector<4x384xbf16>
    tpu.vector_store %arg6[%c12, %c0_137], %90 {strides = array<i32>} : memref<48x768xbf16, #tpu.memory_space<vmem>>, vector<4x384xbf16>,
    %c1_138 = arith.constant 1 : index
    %c0_139 = arith.constant 0 : index
    %c99_140 = arith.constant 99 : index
    %92 = vector.load %arg5[%c1_138, %c0_139, %c99_140] : memref<2x4x584xbf16, #tpu.memory_space<vmem>>, vector<1x4x384xbf16>
    %93 = vector.shape_cast %92 : vector<1x4x384xbf16> to vector<4x384xbf16>
    %c12_141 = arith.constant 12 : index
    %c384_142 = arith.constant 384 : index
    %94 = vector.load %arg6[%c12_141, %c384_142] : memref<48x768xbf16, #tpu.memory_space<vmem>>, vector<4x384xbf16>
    tpu.vector_store %arg6[%c12_141, %c384_142], %93 {strides = array<i32>} : memref<48x768xbf16, #tpu.memory_space<vmem>>, vector<4x384xbf16>,
    %c0_143 = arith.constant 0 : index
    %c0_144 = arith.constant 0 : index
    %c100 = arith.constant 100 : index
    %95 = vector.load %arg5[%c0_143, %c0_144, %c100] : memref<2x4x584xbf16, #tpu.memory_space<vmem>>, vector<1x4x384xbf16>
    %96 = vector.shape_cast %95 : vector<1x4x384xbf16> to vector<4x384xbf16>
    %c16_145 = arith.constant 16 : index
    %c0_146 = arith.constant 0 : index
    %97 = vector.load %arg6[%c16_145, %c0_146] : memref<48x768xbf16, #tpu.memory_space<vmem>>, vector<4x384xbf16>
    tpu.vector_store %arg6[%c16_145, %c0_146], %96 {strides = array<i32>} : memref<48x768xbf16, #tpu.memory_space<vmem>>, vector<4x384xbf16>,
    %c1_147 = arith.constant 1 : index
    %c0_148 = arith.constant 0 : index
    %c100_149 = arith.constant 100 : index
    %98 = vector.load %arg5[%c1_147, %c0_148, %c100_149] : memref<2x4x584xbf16, #tpu.memory_space<vmem>>, vector<1x4x384xbf16>
    %99 = vector.shape_cast %98 : vector<1x4x384xbf16> to vector<4x384xbf16>
    %c16_150 = arith.constant 16 : index
    %c384_151 = arith.constant 384 : index
    %100 = vector.load %arg6[%c16_150, %c384_151] : memref<48x768xbf16, #tpu.memory_space<vmem>>, vector<4x384xbf16>
    tpu.vector_store %arg6[%c16_150, %c384_151], %99 {strides = array<i32>} : memref<48x768xbf16, #tpu.memory_space<vmem>>, vector<4x384xbf16>,
    %c0_152 = arith.constant 0 : index
    %c0_153 = arith.constant 0 : index
    %c101 = arith.constant 101 : index
    %101 = vector.load %arg5[%c0_152, %c0_153, %c101] : memref<2x4x584xbf16, #tpu.memory_space<vmem>>, vector<1x4x384xbf16>
    %102 = vector.shape_cast %101 : vector<1x4x384xbf16> to vector<4x384xbf16>
    %c20 = arith.constant 20 : index
    %c0_154 = arith.constant 0 : index
    %103 = vector.load %arg6[%c20, %c0_154] : memref<48x768xbf16, #tpu.memory_space<vmem>>, vector<4x384xbf16>
    tpu.vector_store %arg6[%c20, %c0_154], %102 {strides = array<i32>} : memref<48x768xbf16, #tpu.memory_space<vmem>>, vector<4x384xbf16>,
    %c1_155 = arith.constant 1 : index
    %c0_156 = arith.constant 0 : index
    %c101_157 = arith.constant 101 : index
    %104 = vector.load %arg5[%c1_155, %c0_156, %c101_157] : memref<2x4x584xbf16, #tpu.memory_space<vmem>>, vector<1x4x384xbf16>
    %105 = vector.shape_cast %104 : vector<1x4x384xbf16> to vector<4x384xbf16>
    %c20_158 = arith.constant 20 : index
    %c384_159 = arith.constant 384 : index
    %106 = vector.load %arg6[%c20_158, %c384_159] : memref<48x768xbf16, #tpu.memory_space<vmem>>, vector<4x384xbf16>
    tpu.vector_store %arg6[%c20_158, %c384_159], %105 {strides = array<i32>} : memref<48x768xbf16, #tpu.memory_space<vmem>>, vector<4x384xbf16>,
    %c0_160 = arith.constant 0 : index
    %c0_161 = arith.constant 0 : index
    %c123 = arith.constant 123 : index
    %107 = vector.load %arg5[%c0_160, %c0_161, %c123] : memref<2x4x584xbf16, #tpu.memory_space<vmem>>, vector<1x4x384xbf16>
    %108 = vector.shape_cast %107 : vector<1x4x384xbf16> to vector<4x384xbf16>
    %c24 = arith.constant 24 : index
    %c0_162 = arith.constant 0 : index
    %109 = vector.load %arg6[%c24, %c0_162] : memref<48x768xbf16, #tpu.memory_space<vmem>>, vector<4x384xbf16>
    tpu.vector_store %arg6[%c24, %c0_162], %108 {strides = array<i32>} : memref<48x768xbf16, #tpu.memory_space<vmem>>, vector<4x384xbf16>,
    %c1_163 = arith.constant 1 : index
    %c0_164 = arith.constant 0 : index
    %c123_165 = arith.constant 123 : index
    %110 = vector.load %arg5[%c1_163, %c0_164, %c123_165] : memref<2x4x584xbf16, #tpu.memory_space<vmem>>, vector<1x4x384xbf16>
    %111 = vector.shape_cast %110 : vector<1x4x384xbf16> to vector<4x384xbf16>
    %c24_166 = arith.constant 24 : index
    %c384_167 = arith.constant 384 : index
    %112 = vector.load %arg6[%c24_166, %c384_167] : memref<48x768xbf16, #tpu.memory_space<vmem>>, vector<4x384xbf16>
    tpu.vector_store %arg6[%c24_166, %c384_167], %111 {strides = array<i32>} : memref<48x768xbf16, #tpu.memory_space<vmem>>, vector<4x384xbf16>,
    %c0_168 = arith.constant 0 : index
    %c0_169 = arith.constant 0 : index
    %c124 = arith.constant 124 : index
    %113 = vector.load %arg5[%c0_168, %c0_169, %c124] : memref<2x4x584xbf16, #tpu.memory_space<vmem>>, vector<1x4x384xbf16>
    %114 = vector.shape_cast %113 : vector<1x4x384xbf16> to vector<4x384xbf16>
    %c28 = arith.constant 28 : index
    %c0_170 = arith.constant 0 : index
    %115 = vector.load %arg6[%c28, %c0_170] : memref<48x768xbf16, #tpu.memory_space<vmem>>, vector<4x384xbf16>
    tpu.vector_store %arg6[%c28, %c0_170], %114 {strides = array<i32>} : memref<48x768xbf16, #tpu.memory_space<vmem>>, vector<4x384xbf16>,
    %c1_171 = arith.constant 1 : index
    %c0_172 = arith.constant 0 : index
    %c124_173 = arith.constant 124 : index
    %116 = vector.load %arg5[%c1_171, %c0_172, %c124_173] : memref<2x4x584xbf16, #tpu.memory_space<vmem>>, vector<1x4x384xbf16>
    %117 = vector.shape_cast %116 : vector<1x4x384xbf16> to vector<4x384xbf16>
    %c28_174 = arith.constant 28 : index
    %c384_175 = arith.constant 384 : index
    %118 = vector.load %arg6[%c28_174, %c384_175] : memref<48x768xbf16, #tpu.memory_space<vmem>>, vector<4x384xbf16>
    tpu.vector_store %arg6[%c28_174, %c384_175], %117 {strides = array<i32>} : memref<48x768xbf16, #tpu.memory_space<vmem>>, vector<4x384xbf16>,
    %c0_176 = arith.constant 0 : index
    %c0_177 = arith.constant 0 : index
    %c125 = arith.constant 125 : index
    %119 = vector.load %arg5[%c0_176, %c0_177, %c125] : memref<2x4x584xbf16, #tpu.memory_space<vmem>>, vector<1x4x384xbf16>
    %120 = vector.shape_cast %119 : vector<1x4x384xbf16> to vector<4x384xbf16>
    %c32_178 = arith.constant 32 : index
    %c0_179 = arith.constant 0 : index
    %121 = vector.load %arg6[%c32_178, %c0_179] : memref<48x768xbf16, #tpu.memory_space<vmem>>, vector<4x384xbf16>
    tpu.vector_store %arg6[%c32_178, %c0_179], %120 {strides = array<i32>} : memref<48x768xbf16, #tpu.memory_space<vmem>>, vector<4x384xbf16>,
    %c1_180 = arith.constant 1 : index
    %c0_181 = arith.constant 0 : index
    %c125_182 = arith.constant 125 : index
    %122 = vector.load %arg5[%c1_180, %c0_181, %c125_182] : memref<2x4x584xbf16, #tpu.memory_space<vmem>>, vector<1x4x384xbf16>
    %123 = vector.shape_cast %122 : vector<1x4x384xbf16> to vector<4x384xbf16>
    %c32_183 = arith.constant 32 : index
    %c384_184 = arith.constant 384 : index
    %124 = vector.load %arg6[%c32_183, %c384_184] : memref<48x768xbf16, #tpu.memory_space<vmem>>, vector<4x384xbf16>
    tpu.vector_store %arg6[%c32_183, %c384_184], %123 {strides = array<i32>} : memref<48x768xbf16, #tpu.memory_space<vmem>>, vector<4x384xbf16>,
    %c0_185 = arith.constant 0 : index
    %c0_186 = arith.constant 0 : index
    %c0_187 = arith.constant 0 : index
    %125 = vector.load %arg2[%c0_185, %c0_186, %c0_187] : memref<3x8x48xbf16, #tpu.memory_space<vmem>>, vector<1x8x48xbf16>
    %126 = vector.shape_cast %125 : vector<1x8x48xbf16> to vector<8x48xbf16>
    %c0_188 = arith.constant 0 : index
    %c0_189 = arith.constant 0 : index
    %127 = vector.load %arg6[%c0_188, %c0_189] : memref<48x768xbf16, #tpu.memory_space<vmem>>, vector<48x768xbf16>
    %cst_190 = arith.constant dense<0.000000e+00> : vector<8x768xf32>
    %128 = tpu.matmul %126, %127, %cst_190 {dimension_numbers = #tpu.dot_dimension_numbers<[1], [0], [0], [1], [0, 0, 1, 1], [], []>} : vector<8x48xbf16>, vector<48x768xbf16>, vector<8x768xf32> -> vector<8x768xf32>
    %c0_191 = arith.constant 0 : index
    %c0_192 = arith.constant 0 : index
    %c50 = arith.constant 50 : index
    %129 = vector.load %arg5[%c0_191, %c0_192, %c50] : memref<2x4x584xbf16, #tpu.memory_space<vmem>>, vector<1x4x384xbf16>
    %130 = vector.shape_cast %129 : vector<1x4x384xbf16> to vector<4x384xbf16>
    %c0_193 = arith.constant 0 : index
    %c0_194 = arith.constant 0 : index
    %131 = vector.load %arg6[%c0_193, %c0_194] : memref<48x768xbf16, #tpu.memory_space<vmem>>, vector<4x384xbf16>
    tpu.vector_store %arg6[%c0_193, %c0_194], %130 {strides = array<i32>} : memref<48x768xbf16, #tpu.memory_space<vmem>>, vector<4x384xbf16>,
    %c1_195 = arith.constant 1 : index
    %c0_196 = arith.constant 0 : index
    %c50_197 = arith.constant 50 : index
    %132 = vector.load %arg5[%c1_195, %c0_196, %c50_197] : memref<2x4x584xbf16, #tpu.memory_space<vmem>>, vector<1x4x384xbf16>
    %133 = vector.shape_cast %132 : vector<1x4x384xbf16> to vector<4x384xbf16>
    %c0_198 = arith.constant 0 : index
    %c384_199 = arith.constant 384 : index
    %134 = vector.load %arg6[%c0_198, %c384_199] : memref<48x768xbf16, #tpu.memory_space<vmem>>, vector<4x384xbf16>
    tpu.vector_store %arg6[%c0_198, %c384_199], %133 {strides = array<i32>} : memref<48x768xbf16, #tpu.memory_space<vmem>>, vector<4x384xbf16>,
    %c0_200 = arith.constant 0 : index
    %c0_201 = arith.constant 0 : index
    %c52 = arith.constant 52 : index
    %135 = vector.load %arg5[%c0_200, %c0_201, %c52] : memref<2x4x584xbf16, #tpu.memory_space<vmem>>, vector<1x4x384xbf16>
    %136 = vector.shape_cast %135 : vector<1x4x384xbf16> to vector<4x384xbf16>
    %c4_202 = arith.constant 4 : index
    %c0_203 = arith.constant 0 : index
    %137 = vector.load %arg6[%c4_202, %c0_203] : memref<48x768xbf16, #tpu.memory_space<vmem>>, vector<4x384xbf16>
    tpu.vector_store %arg6[%c4_202, %c0_203], %136 {strides = array<i32>} : memref<48x768xbf16, #tpu.memory_space<vmem>>, vector<4x384xbf16>,
    %c1_204 = arith.constant 1 : index
    %c0_205 = arith.constant 0 : index
    %c52_206 = arith.constant 52 : index
    %138 = vector.load %arg5[%c1_204, %c0_205, %c52_206] : memref<2x4x584xbf16, #tpu.memory_space<vmem>>, vector<1x4x384xbf16>
    %139 = vector.shape_cast %138 : vector<1x4x384xbf16> to vector<4x384xbf16>
    %c4_207 = arith.constant 4 : index
    %c384_208 = arith.constant 384 : index
    %140 = vector.load %arg6[%c4_207, %c384_208] : memref<48x768xbf16, #tpu.memory_space<vmem>>, vector<4x384xbf16>
    tpu.vector_store %arg6[%c4_207, %c384_208], %139 {strides = array<i32>} : memref<48x768xbf16, #tpu.memory_space<vmem>>, vector<4x384xbf16>,
    %c0_209 = arith.constant 0 : index
    %c0_210 = arith.constant 0 : index
    %c54 = arith.constant 54 : index
    %141 = vector.load %arg5[%c0_209, %c0_210, %c54] : memref<2x4x584xbf16, #tpu.memory_space<vmem>>, vector<1x4x384xbf16>
    %142 = vector.shape_cast %141 : vector<1x4x384xbf16> to vector<4x384xbf16>
    %c8_211 = arith.constant 8 : index
    %c0_212 = arith.constant 0 : index
    %143 = vector.load %arg6[%c8_211, %c0_212] : memref<48x768xbf16, #tpu.memory_space<vmem>>, vector<4x384xbf16>
    tpu.vector_store %arg6[%c8_211, %c0_212], %142 {strides = array<i32>} : memref<48x768xbf16, #tpu.memory_space<vmem>>, vector<4x384xbf16>,
    %c1_213 = arith.constant 1 : index
    %c0_214 = arith.constant 0 : index
    %c54_215 = arith.constant 54 : index
    %144 = vector.load %arg5[%c1_213, %c0_214, %c54_215] : memref<2x4x584xbf16, #tpu.memory_space<vmem>>, vector<1x4x384xbf16>
    %145 = vector.shape_cast %144 : vector<1x4x384xbf16> to vector<4x384xbf16>
    %c8_216 = arith.constant 8 : index
    %c384_217 = arith.constant 384 : index
    %146 = vector.load %arg6[%c8_216, %c384_217] : memref<48x768xbf16, #tpu.memory_space<vmem>>, vector<4x384xbf16>
    tpu.vector_store %arg6[%c8_216, %c384_217], %145 {strides = array<i32>} : memref<48x768xbf16, #tpu.memory_space<vmem>>, vector<4x384xbf16>,
    %c0_218 = arith.constant 0 : index
    %c0_219 = arith.constant 0 : index
    %c98 = arith.constant 98 : index
    %147 = vector.load %arg5[%c0_218, %c0_219, %c98] : memref<2x4x584xbf16, #tpu.memory_space<vmem>>, vector<1x4x384xbf16>
    %148 = vector.shape_cast %147 : vector<1x4x384xbf16> to vector<4x384xbf16>
    %c12_220 = arith.constant 12 : index
    %c0_221 = arith.constant 0 : index
    %149 = vector.load %arg6[%c12_220, %c0_221] : memref<48x768xbf16, #tpu.memory_space<vmem>>, vector<4x384xbf16>
    tpu.vector_store %arg6[%c12_220, %c0_221], %148 {strides = array<i32>} : memref<48x768xbf16, #tpu.memory_space<vmem>>, vector<4x384xbf16>,
    %c1_222 = arith.constant 1 : index
    %c0_223 = arith.constant 0 : index
    %c98_224 = arith.constant 98 : index
    %150 = vector.load %arg5[%c1_222, %c0_223, %c98_224] : memref<2x4x584xbf16, #tpu.memory_space<vmem>>, vector<1x4x384xbf16>
    %151 = vector.shape_cast %150 : vector<1x4x384xbf16> to vector<4x384xbf16>
    %c12_225 = arith.constant 12 : index
    %c384_226 = arith.constant 384 : index
    %152 = vector.load %arg6[%c12_225, %c384_226] : memref<48x768xbf16, #tpu.memory_space<vmem>>, vector<4x384xbf16>
    tpu.vector_store %arg6[%c12_225, %c384_226], %151 {strides = array<i32>} : memref<48x768xbf16, #tpu.memory_space<vmem>>, vector<4x384xbf16>,
    %c0_227 = arith.constant 0 : index
    %c0_228 = arith.constant 0 : index
    %c100_229 = arith.constant 100 : index
    %153 = vector.load %arg5[%c0_227, %c0_228, %c100_229] : memref<2x4x584xbf16, #tpu.memory_space<vmem>>, vector<1x4x384xbf16>
    %154 = vector.shape_cast %153 : vector<1x4x384xbf16> to vector<4x384xbf16>
    %c16_230 = arith.constant 16 : index
    %c0_231 = arith.constant 0 : index
    %155 = vector.load %arg6[%c16_230, %c0_231] : memref<48x768xbf16, #tpu.memory_space<vmem>>, vector<4x384xbf16>
    tpu.vector_store %arg6[%c16_230, %c0_231], %154 {strides = array<i32>} : memref<48x768xbf16, #tpu.memory_space<vmem>>, vector<4x384xbf16>,
    %c1_232 = arith.constant 1 : index
    %c0_233 = arith.constant 0 : index
    %c100_234 = arith.constant 100 : index
    %156 = vector.load %arg5[%c1_232, %c0_233, %c100_234] : memref<2x4x584xbf16, #tpu.memory_space<vmem>>, vector<1x4x384xbf16>
    %157 = vector.shape_cast %156 : vector<1x4x384xbf16> to vector<4x384xbf16>
    %c16_235 = arith.constant 16 : index
    %c384_236 = arith.constant 384 : index
    %158 = vector.load %arg6[%c16_235, %c384_236] : memref<48x768xbf16, #tpu.memory_space<vmem>>, vector<4x384xbf16>
    tpu.vector_store %arg6[%c16_235, %c384_236], %157 {strides = array<i32>} : memref<48x768xbf16, #tpu.memory_space<vmem>>, vector<4x384xbf16>,
    %c0_237 = arith.constant 0 : index
    %c0_238 = arith.constant 0 : index
    %c102 = arith.constant 102 : index
    %159 = vector.load %arg5[%c0_237, %c0_238, %c102] : memref<2x4x584xbf16, #tpu.memory_space<vmem>>, vector<1x4x384xbf16>
    %160 = vector.shape_cast %159 : vector<1x4x384xbf16> to vector<4x384xbf16>
    %c20_239 = arith.constant 20 : index
    %c0_240 = arith.constant 0 : index
    %161 = vector.load %arg6[%c20_239, %c0_240] : memref<48x768xbf16, #tpu.memory_space<vmem>>, vector<4x384xbf16>
    tpu.vector_store %arg6[%c20_239, %c0_240], %160 {strides = array<i32>} : memref<48x768xbf16, #tpu.memory_space<vmem>>, vector<4x384xbf16>,
    %c1_241 = arith.constant 1 : index
    %c0_242 = arith.constant 0 : index
    %c102_243 = arith.constant 102 : index
    %162 = vector.load %arg5[%c1_241, %c0_242, %c102_243] : memref<2x4x584xbf16, #tpu.memory_space<vmem>>, vector<1x4x384xbf16>
    %163 = vector.shape_cast %162 : vector<1x4x384xbf16> to vector<4x384xbf16>
    %c20_244 = arith.constant 20 : index
    %c384_245 = arith.constant 384 : index
    %164 = vector.load %arg6[%c20_244, %c384_245] : memref<48x768xbf16, #tpu.memory_space<vmem>>, vector<4x384xbf16>
    tpu.vector_store %arg6[%c20_244, %c384_245], %163 {strides = array<i32>} : memref<48x768xbf16, #tpu.memory_space<vmem>>, vector<4x384xbf16>,
    %c0_246 = arith.constant 0 : index
    %c0_247 = arith.constant 0 : index
    %c146 = arith.constant 146 : index
    %165 = vector.load %arg5[%c0_246, %c0_247, %c146] : memref<2x4x584xbf16, #tpu.memory_space<vmem>>, vector<1x4x384xbf16>
    %166 = vector.shape_cast %165 : vector<1x4x384xbf16> to vector<4x384xbf16>
    %c24_248 = arith.constant 24 : index
    %c0_249 = arith.constant 0 : index
    %167 = vector.load %arg6[%c24_248, %c0_249] : memref<48x768xbf16, #tpu.memory_space<vmem>>, vector<4x384xbf16>
    tpu.vector_store %arg6[%c24_248, %c0_249], %166 {strides = array<i32>} : memref<48x768xbf16, #tpu.memory_space<vmem>>, vector<4x384xbf16>,
    %c1_250 = arith.constant 1 : index
    %c0_251 = arith.constant 0 : index
    %c146_252 = arith.constant 146 : index
    %168 = vector.load %arg5[%c1_250, %c0_251, %c146_252] : memref<2x4x584xbf16, #tpu.memory_space<vmem>>, vector<1x4x384xbf16>
    %169 = vector.shape_cast %168 : vector<1x4x384xbf16> to vector<4x384xbf16>
    %c24_253 = arith.constant 24 : index
    %c384_254 = arith.constant 384 : index
    %170 = vector.load %arg6[%c24_253, %c384_254] : memref<48x768xbf16, #tpu.memory_space<vmem>>, vector<4x384xbf16>
    tpu.vector_store %arg6[%c24_253, %c384_254], %169 {strides = array<i32>} : memref<48x768xbf16, #tpu.memory_space<vmem>>, vector<4x384xbf16>,
    %c0_255 = arith.constant 0 : index
    %c0_256 = arith.constant 0 : index
    %c148 = arith.constant 148 : index
    %171 = vector.load %arg5[%c0_255, %c0_256, %c148] : memref<2x4x584xbf16, #tpu.memory_space<vmem>>, vector<1x4x384xbf16>
    %172 = vector.shape_cast %171 : vector<1x4x384xbf16> to vector<4x384xbf16>
    %c28_257 = arith.constant 28 : index
    %c0_258 = arith.constant 0 : index
    %173 = vector.load %arg6[%c28_257, %c0_258] : memref<48x768xbf16, #tpu.memory_space<vmem>>, vector<4x384xbf16>
    tpu.vector_store %arg6[%c28_257, %c0_258], %172 {strides = array<i32>} : memref<48x768xbf16, #tpu.memory_space<vmem>>, vector<4x384xbf16>,
    %c1_259 = arith.constant 1 : index
    %c0_260 = arith.constant 0 : index
    %c148_261 = arith.constant 148 : index
    %174 = vector.load %arg5[%c1_259, %c0_260, %c148_261] : memref<2x4x584xbf16, #tpu.memory_space<vmem>>, vector<1x4x384xbf16>
    %175 = vector.shape_cast %174 : vector<1x4x384xbf16> to vector<4x384xbf16>
    %c28_262 = arith.constant 28 : index
    %c384_263 = arith.constant 384 : index
    %176 = vector.load %arg6[%c28_262, %c384_263] : memref<48x768xbf16, #tpu.memory_space<vmem>>, vector<4x384xbf16>
    tpu.vector_store %arg6[%c28_262, %c384_263], %175 {strides = array<i32>} : memref<48x768xbf16, #tpu.memory_space<vmem>>, vector<4x384xbf16>,
    %c0_264 = arith.constant 0 : index
    %c0_265 = arith.constant 0 : index
    %c150 = arith.constant 150 : index
    %177 = vector.load %arg5[%c0_264, %c0_265, %c150] : memref<2x4x584xbf16, #tpu.memory_space<vmem>>, vector<1x4x384xbf16>
    %178 = vector.shape_cast %177 : vector<1x4x384xbf16> to vector<4x384xbf16>
    %c32_266 = arith.constant 32 : index
    %c0_267 = arith.constant 0 : index
    %179 = vector.load %arg6[%c32_266, %c0_267] : memref<48x768xbf16, #tpu.memory_space<vmem>>, vector<4x384xbf16>
    tpu.vector_store %arg6[%c32_266, %c0_267], %178 {strides = array<i32>} : memref<48x768xbf16, #tpu.memory_space<vmem>>, vector<4x384xbf16>,
    %c1_268 = arith.constant 1 : index
    %c0_269 = arith.constant 0 : index
    %c150_270 = arith.constant 150 : index
    %180 = vector.load %arg5[%c1_268, %c0_269, %c150_270] : memref<2x4x584xbf16, #tpu.memory_space<vmem>>, vector<1x4x384xbf16>
    %181 = vector.shape_cast %180 : vector<1x4x384xbf16> to vector<4x384xbf16>
    %c32_271 = arith.constant 32 : index
    %c384_272 = arith.constant 384 : index
    %182 = vector.load %arg6[%c32_271, %c384_272] : memref<48x768xbf16, #tpu.memory_space<vmem>>, vector<4x384xbf16>
    tpu.vector_store %arg6[%c32_271, %c384_272], %181 {strides = array<i32>} : memref<48x768xbf16, #tpu.memory_space<vmem>>, vector<4x384xbf16>,
    %c1_273 = arith.constant 1 : index
    %c0_274 = arith.constant 0 : index
    %c0_275 = arith.constant 0 : index
    %183 = vector.load %arg2[%c1_273, %c0_274, %c0_275] : memref<3x8x48xbf16, #tpu.memory_space<vmem>>, vector<1x8x48xbf16>
    %184 = vector.shape_cast %183 : vector<1x8x48xbf16> to vector<8x48xbf16>
    %c0_276 = arith.constant 0 : index
    %c0_277 = arith.constant 0 : index
    %185 = vector.load %arg6[%c0_276, %c0_277] : memref<48x768xbf16, #tpu.memory_space<vmem>>, vector<48x768xbf16>
    %cst_278 = arith.constant dense<0.000000e+00> : vector<8x768xf32>
    %186 = tpu.matmul %184, %185, %cst_278 {dimension_numbers = #tpu.dot_dimension_numbers<[1], [0], [0], [1], [0, 0, 1, 1], [], []>} : vector<8x48xbf16>, vector<48x768xbf16>, vector<8x768xf32> -> vector<8x768xf32>
    %187 = arith.addf %128, %186 : vector<8x768xf32>
    %c0_279 = arith.constant 0 : index
    %c0_280 = arith.constant 0 : index
    %c0_281 = arith.constant 0 : index
    %188 = vector.load %arg5[%c0_279, %c0_280, %c0_281] : memref<2x4x584xbf16, #tpu.memory_space<vmem>>, vector<1x4x384xbf16>
    %189 = vector.shape_cast %188 : vector<1x4x384xbf16> to vector<4x384xbf16>
    %c0_282 = arith.constant 0 : index
    %c0_283 = arith.constant 0 : index
    %190 = vector.load %arg6[%c0_282, %c0_283] : memref<48x768xbf16, #tpu.memory_space<vmem>>, vector<4x384xbf16>
    tpu.vector_store %arg6[%c0_282, %c0_283], %189 {strides = array<i32>} : memref<48x768xbf16, #tpu.memory_space<vmem>>, vector<4x384xbf16>,
    %c1_284 = arith.constant 1 : index
    %c0_285 = arith.constant 0 : index
    %c0_286 = arith.constant 0 : index
    %191 = vector.load %arg5[%c1_284, %c0_285, %c0_286] : memref<2x4x584xbf16, #tpu.memory_space<vmem>>, vector<1x4x384xbf16>
    %192 = vector.shape_cast %191 : vector<1x4x384xbf16> to vector<4x384xbf16>
    %c0_287 = arith.constant 0 : index
    %c384_288 = arith.constant 384 : index
    %193 = vector.load %arg6[%c0_287, %c384_288] : memref<48x768xbf16, #tpu.memory_space<vmem>>, vector<4x384xbf16>
    tpu.vector_store %arg6[%c0_287, %c384_288], %192 {strides = array<i32>} : memref<48x768xbf16, #tpu.memory_space<vmem>>, vector<4x384xbf16>,
    %c0_289 = arith.constant 0 : index
    %c0_290 = arith.constant 0 : index
    %c4_291 = arith.constant 4 : index
    %194 = vector.load %arg5[%c0_289, %c0_290, %c4_291] : memref<2x4x584xbf16, #tpu.memory_space<vmem>>, vector<1x4x384xbf16>
    %195 = vector.shape_cast %194 : vector<1x4x384xbf16> to vector<4x384xbf16>
    %c4_292 = arith.constant 4 : index
    %c0_293 = arith.constant 0 : index
    %196 = vector.load %arg6[%c4_292, %c0_293] : memref<48x768xbf16, #tpu.memory_space<vmem>>, vector<4x384xbf16>
    tpu.vector_store %arg6[%c4_292, %c0_293], %195 {strides = array<i32>} : memref<48x768xbf16, #tpu.memory_space<vmem>>, vector<4x384xbf16>,
    %c1_294 = arith.constant 1 : index
    %c0_295 = arith.constant 0 : index
    %c4_296 = arith.constant 4 : index
    %197 = vector.load %arg5[%c1_294, %c0_295, %c4_296] : memref<2x4x584xbf16, #tpu.memory_space<vmem>>, vector<1x4x384xbf16>
    %198 = vector.shape_cast %197 : vector<1x4x384xbf16> to vector<4x384xbf16>
    %c4_297 = arith.constant 4 : index
    %c384_298 = arith.constant 384 : index
    %199 = vector.load %arg6[%c4_297, %c384_298] : memref<48x768xbf16, #tpu.memory_space<vmem>>, vector<4x384xbf16>
    tpu.vector_store %arg6[%c4_297, %c384_298], %198 {strides = array<i32>} : memref<48x768xbf16, #tpu.memory_space<vmem>>, vector<4x384xbf16>,
    %c0_299 = arith.constant 0 : index
    %c0_300 = arith.constant 0 : index
    %c8_301 = arith.constant 8 : index
    %200 = vector.load %arg5[%c0_299, %c0_300, %c8_301] : memref<2x4x584xbf16, #tpu.memory_space<vmem>>, vector<1x4x384xbf16>
    %201 = vector.shape_cast %200 : vector<1x4x384xbf16> to vector<4x384xbf16>
    %c8_302 = arith.constant 8 : index
    %c0_303 = arith.constant 0 : index
    %202 = vector.load %arg6[%c8_302, %c0_303] : memref<48x768xbf16, #tpu.memory_space<vmem>>, vector<4x384xbf16>
    tpu.vector_store %arg6[%c8_302, %c0_303], %201 {strides = array<i32>} : memref<48x768xbf16, #tpu.memory_space<vmem>>, vector<4x384xbf16>,
    %c1_304 = arith.constant 1 : index
    %c0_305 = arith.constant 0 : index
    %c8_306 = arith.constant 8 : index
    %203 = vector.load %arg5[%c1_304, %c0_305, %c8_306] : memref<2x4x584xbf16, #tpu.memory_space<vmem>>, vector<1x4x384xbf16>
    %204 = vector.shape_cast %203 : vector<1x4x384xbf16> to vector<4x384xbf16>
    %c8_307 = arith.constant 8 : index
    %c384_308 = arith.constant 384 : index
    %205 = vector.load %arg6[%c8_307, %c384_308] : memref<48x768xbf16, #tpu.memory_space<vmem>>, vector<4x384xbf16>
    tpu.vector_store %arg6[%c8_307, %c384_308], %204 {strides = array<i32>} : memref<48x768xbf16, #tpu.memory_space<vmem>>, vector<4x384xbf16>,
    %c0_309 = arith.constant 0 : index
    %c0_310 = arith.constant 0 : index
    %c96_311 = arith.constant 96 : index
    %206 = vector.load %arg5[%c0_309, %c0_310, %c96_311] : memref<2x4x584xbf16, #tpu.memory_space<vmem>>, vector<1x4x384xbf16>
    %207 = vector.shape_cast %206 : vector<1x4x384xbf16> to vector<4x384xbf16>
    %c12_312 = arith.constant 12 : index
    %c0_313 = arith.constant 0 : index
    %208 = vector.load %arg6[%c12_312, %c0_313] : memref<48x768xbf16, #tpu.memory_space<vmem>>, vector<4x384xbf16>
    tpu.vector_store %arg6[%c12_312, %c0_313], %207 {strides = array<i32>} : memref<48x768xbf16, #tpu.memory_space<vmem>>, vector<4x384xbf16>,
    %c1_314 = arith.constant 1 : index
    %c0_315 = arith.constant 0 : index
    %c96_316 = arith.constant 96 : index
    %209 = vector.load %arg5[%c1_314, %c0_315, %c96_316] : memref<2x4x584xbf16, #tpu.memory_space<vmem>>, vector<1x4x384xbf16>
    %210 = vector.shape_cast %209 : vector<1x4x384xbf16> to vector<4x384xbf16>
    %c12_317 = arith.constant 12 : index
    %c384_318 = arith.constant 384 : index
    %211 = vector.load %arg6[%c12_317, %c384_318] : memref<48x768xbf16, #tpu.memory_space<vmem>>, vector<4x384xbf16>
    tpu.vector_store %arg6[%c12_317, %c384_318], %210 {strides = array<i32>} : memref<48x768xbf16, #tpu.memory_space<vmem>>, vector<4x384xbf16>,
    %c0_319 = arith.constant 0 : index
    %c0_320 = arith.constant 0 : index
    %c100_321 = arith.constant 100 : index
    %212 = vector.load %arg5[%c0_319, %c0_320, %c100_321] : memref<2x4x584xbf16, #tpu.memory_space<vmem>>, vector<1x4x384xbf16>
    %213 = vector.shape_cast %212 : vector<1x4x384xbf16> to vector<4x384xbf16>
    %c16_322 = arith.constant 16 : index
    %c0_323 = arith.constant 0 : index
    %214 = vector.load %arg6[%c16_322, %c0_323] : memref<48x768xbf16, #tpu.memory_space<vmem>>, vector<4x384xbf16>
    tpu.vector_store %arg6[%c16_322, %c0_323], %213 {strides = array<i32>} : memref<48x768xbf16, #tpu.memory_space<vmem>>, vector<4x384xbf16>,
    %c1_324 = arith.constant 1 : index
    %c0_325 = arith.constant 0 : index
    %c100_326 = arith.constant 100 : index
    %215 = vector.load %arg5[%c1_324, %c0_325, %c100_326] : memref<2x4x584xbf16, #tpu.memory_space<vmem>>, vector<1x4x384xbf16>
    %216 = vector.shape_cast %215 : vector<1x4x384xbf16> to vector<4x384xbf16>
    %c16_327 = arith.constant 16 : index
    %c384_328 = arith.constant 384 : index
    %217 = vector.load %arg6[%c16_327, %c384_328] : memref<48x768xbf16, #tpu.memory_space<vmem>>, vector<4x384xbf16>
    tpu.vector_store %arg6[%c16_327, %c384_328], %216 {strides = array<i32>} : memref<48x768xbf16, #tpu.memory_space<vmem>>, vector<4x384xbf16>,
    %c0_329 = arith.constant 0 : index
    %c0_330 = arith.constant 0 : index
    %c104_331 = arith.constant 104 : index
    %218 = vector.load %arg5[%c0_329, %c0_330, %c104_331] : memref<2x4x584xbf16, #tpu.memory_space<vmem>>, vector<1x4x384xbf16>
    %219 = vector.shape_cast %218 : vector<1x4x384xbf16> to vector<4x384xbf16>
    %c20_332 = arith.constant 20 : index
    %c0_333 = arith.constant 0 : index
    %220 = vector.load %arg6[%c20_332, %c0_333] : memref<48x768xbf16, #tpu.memory_space<vmem>>, vector<4x384xbf16>
    tpu.vector_store %arg6[%c20_332, %c0_333], %219 {strides = array<i32>} : memref<48x768xbf16, #tpu.memory_space<vmem>>, vector<4x384xbf16>,
    %c1_334 = arith.constant 1 : index
    %c0_335 = arith.constant 0 : index
    %c104_336 = arith.constant 104 : index
    %221 = vector.load %arg5[%c1_334, %c0_335, %c104_336] : memref<2x4x584xbf16, #tpu.memory_space<vmem>>, vector<1x4x384xbf16>
    %222 = vector.shape_cast %221 : vector<1x4x384xbf16> to vector<4x384xbf16>
    %c20_337 = arith.constant 20 : index
    %c384_338 = arith.constant 384 : index
    %223 = vector.load %arg6[%c20_337, %c384_338] : memref<48x768xbf16, #tpu.memory_space<vmem>>, vector<4x384xbf16>
    tpu.vector_store %arg6[%c20_337, %c384_338], %222 {strides = array<i32>} : memref<48x768xbf16, #tpu.memory_space<vmem>>, vector<4x384xbf16>,
    %c0_339 = arith.constant 0 : index
    %c0_340 = arith.constant 0 : index
    %c192_341 = arith.constant 192 : index
    %224 = vector.load %arg5[%c0_339, %c0_340, %c192_341] : memref<2x4x584xbf16, #tpu.memory_space<vmem>>, vector<1x4x384xbf16>
    %225 = vector.shape_cast %224 : vector<1x4x384xbf16> to vector<4x384xbf16>
    %c24_342 = arith.constant 24 : index
    %c0_343 = arith.constant 0 : index
    %226 = vector.load %arg6[%c24_342, %c0_343] : memref<48x768xbf16, #tpu.memory_space<vmem>>, vector<4x384xbf16>
    tpu.vector_store %arg6[%c24_342, %c0_343], %225 {strides = array<i32>} : memref<48x768xbf16, #tpu.memory_space<vmem>>, vector<4x384xbf16>,
    %c1_344 = arith.constant 1 : index
    %c0_345 = arith.constant 0 : index
    %c192_346 = arith.constant 192 : index
    %227 = vector.load %arg5[%c1_344, %c0_345, %c192_346] : memref<2x4x584xbf16, #tpu.memory_space<vmem>>, vector<1x4x384xbf16>
    %228 = vector.shape_cast %227 : vector<1x4x384xbf16> to vector<4x384xbf16>
    %c24_347 = arith.constant 24 : index
    %c384_348 = arith.constant 384 : index
    %229 = vector.load %arg6[%c24_347, %c384_348] : memref<48x768xbf16, #tpu.memory_space<vmem>>, vector<4x384xbf16>
    tpu.vector_store %arg6[%c24_347, %c384_348], %228 {strides = array<i32>} : memref<48x768xbf16, #tpu.memory_space<vmem>>, vector<4x384xbf16>,
    %c0_349 = arith.constant 0 : index
    %c0_350 = arith.constant 0 : index
    %c196 = arith.constant 196 : index
    %230 = vector.load %arg5[%c0_349, %c0_350, %c196] : memref<2x4x584xbf16, #tpu.memory_space<vmem>>, vector<1x4x384xbf16>
    %231 = vector.shape_cast %230 : vector<1x4x384xbf16> to vector<4x384xbf16>
    %c28_351 = arith.constant 28 : index
    %c0_352 = arith.constant 0 : index
    %232 = vector.load %arg6[%c28_351, %c0_352] : memref<48x768xbf16, #tpu.memory_space<vmem>>, vector<4x384xbf16>
    tpu.vector_store %arg6[%c28_351, %c0_352], %231 {strides = array<i32>} : memref<48x768xbf16, #tpu.memory_space<vmem>>, vector<4x384xbf16>,
    %c1_353 = arith.constant 1 : index
    %c0_354 = arith.constant 0 : index
    %c196_355 = arith.constant 196 : index
    %233 = vector.load %arg5[%c1_353, %c0_354, %c196_355] : memref<2x4x584xbf16, #tpu.memory_space<vmem>>, vector<1x4x384xbf16>
    %234 = vector.shape_cast %233 : vector<1x4x384xbf16> to vector<4x384xbf16>
    %c28_356 = arith.constant 28 : index
    %c384_357 = arith.constant 384 : index
    %235 = vector.load %arg6[%c28_356, %c384_357] : memref<48x768xbf16, #tpu.memory_space<vmem>>, vector<4x384xbf16>
    tpu.vector_store %arg6[%c28_356, %c384_357], %234 {strides = array<i32>} : memref<48x768xbf16, #tpu.memory_space<vmem>>, vector<4x384xbf16>,
    %c0_358 = arith.constant 0 : index
    %c0_359 = arith.constant 0 : index
    %c200_360 = arith.constant 200 : index
    %236 = vector.load %arg5[%c0_358, %c0_359, %c200_360] : memref<2x4x584xbf16, #tpu.memory_space<vmem>>, vector<1x4x384xbf16>
    %237 = vector.shape_cast %236 : vector<1x4x384xbf16> to vector<4x384xbf16>
    %c32_361 = arith.constant 32 : index
    %c0_362 = arith.constant 0 : index
    %238 = vector.load %arg6[%c32_361, %c0_362] : memref<48x768xbf16, #tpu.memory_space<vmem>>, vector<4x384xbf16>
    tpu.vector_store %arg6[%c32_361, %c0_362], %237 {strides = array<i32>} : memref<48x768xbf16, #tpu.memory_space<vmem>>, vector<4x384xbf16>,
    %c1_363 = arith.constant 1 : index
    %c0_364 = arith.constant 0 : index
    %c200_365 = arith.constant 200 : index
    %239 = vector.load %arg5[%c1_363, %c0_364, %c200_365] : memref<2x4x584xbf16, #tpu.memory_space<vmem>>, vector<1x4x384xbf16>
    %240 = vector.shape_cast %239 : vector<1x4x384xbf16> to vector<4x384xbf16>
    %c32_366 = arith.constant 32 : index
    %c384_367 = arith.constant 384 : index
    %241 = vector.load %arg6[%c32_366, %c384_367] : memref<48x768xbf16, #tpu.memory_space<vmem>>, vector<4x384xbf16>
    tpu.vector_store %arg6[%c32_366, %c384_367], %240 {strides = array<i32>} : memref<48x768xbf16, #tpu.memory_space<vmem>>, vector<4x384xbf16>,
    %c2 = arith.constant 2 : index
    %c0_368 = arith.constant 0 : index
    %c0_369 = arith.constant 0 : index
    %242 = vector.load %arg2[%c2, %c0_368, %c0_369] : memref<3x8x48xbf16, #tpu.memory_space<vmem>>, vector<1x8x48xbf16>
    %243 = vector.shape_cast %242 : vector<1x8x48xbf16> to vector<8x48xbf16>
    %c0_370 = arith.constant 0 : index
    %c0_371 = arith.constant 0 : index
    %244 = vector.load %arg6[%c0_370, %c0_371] : memref<48x768xbf16, #tpu.memory_space<vmem>>, vector<48x768xbf16>
    %cst_372 = arith.constant dense<0.000000e+00> : vector<8x768xf32>
    %245 = tpu.matmul %243, %244, %cst_372 {dimension_numbers = #tpu.dot_dimension_numbers<[1], [0], [0], [1], [0, 0, 1, 1], [], []>} : vector<8x48xbf16>, vector<48x768xbf16>, vector<8x768xf32> -> vector<8x768xf32>
    %246 = arith.addf %187, %245 : vector<8x768xf32>
    %c0_373 = arith.constant 0 : index
    %c0_374 = arith.constant 0 : index
    %247 = vector.load %arg3[%c0_373, %c0_374] : memref<8x1xf32, #tpu.memory_space<vmem>>, vector<8x1xf32>
    %248 = vector.broadcast %247 : vector<8x1xf32> to vector<8x768xf32>
    %249 = arith.addf %246, %248 : vector<8x768xf32>
    %cst_375 = arith.constant 2.000000e+01 : f32
    %250 = vector.broadcast %cst_375 : f32 to vector<8x768xf32>
    %251 = arith.minimumf %249, %250 : vector<8x768xf32>
    %252 = math.exp %251 : vector<8x768xf32>
    %cst_376 = arith.constant 1.000000e+00 : f32
    %253 = vector.broadcast %cst_376 : f32 to vector<8x768xf32>
    %254 = arith.addf %253, %252 : vector<8x768xf32>
    %255 = arith.mulf %254, %254 : vector<8x768xf32>
    %cst_377 = arith.constant 1.000000e+00 : f32
    %256 = vector.broadcast %cst_377 : f32 to vector<8x768xf32>
    %257 = arith.subf %255, %256 : vector<8x768xf32>
    %258 = arith.mulf %249, %257 : vector<8x768xf32>
    %cst_378 = arith.constant 1.000000e+00 : f32
    %259 = vector.broadcast %cst_378 : f32 to vector<8x768xf32>
    %260 = arith.addf %255, %259 : vector<8x768xf32>
    %261 = tpu.reciprocal %260 {approx = true} : vector<8x768xf32> -> vector<8x768xf32>
    %262 = arith.mulf %258, %261 : vector<8x768xf32>
    %263 = vector.extract_strided_slice %262 {offsets = [0, 0], sizes = [8, 384], strides = [1, 1]} : vector<8x768xf32> to vector<8x384xf32>
    %c0_379 = arith.constant 0 : index
    %c0_380 = arith.constant 0 : index
    %c0_381 = arith.constant 0 : index
    %264 = vector.load %arg4[%c0_379, %c0_380, %c0_381] : memref<2x8x384xf32, #tpu.memory_space<vmem>>, vector<1x8x384xf32>
    %265 = vector.shape_cast %264 : vector<1x8x384xf32> to vector<8x384xf32>
    %266 = vector.shape_cast %263 : vector<8x384xf32> to vector<1x8x384xf32>
    tpu.vector_store %arg4[%c0_379, %c0_380, %c0_381], %266 {strides = array<i32>} : memref<2x8x384xf32, #tpu.memory_space<vmem>>, vector<1x8x384xf32>,
    %267 = vector.extract_strided_slice %262 {offsets = [0, 384], sizes = [8, 384], strides = [1, 1]} : vector<8x768xf32> to vector<8x384xf32>
    %c1_382 = arith.constant 1 : index
    %c0_383 = arith.constant 0 : index
    %c0_384 = arith.constant 0 : index
    %268 = vector.load %arg4[%c1_382, %c0_383, %c0_384] : memref<2x8x384xf32, #tpu.memory_space<vmem>>, vector<1x8x384xf32>
    %269 = vector.shape_cast %268 : vector<1x8x384xf32> to vector<8x384xf32>
    %270 = vector.shape_cast %267 : vector<8x384xf32> to vector<1x8x384xf32>
    tpu.vector_store %arg4[%c1_382, %c0_383, %c0_384], %270 {strides = array<i32>} : memref<2x8x384xf32, #tpu.memory_space<vmem>>, vector<1x8x384xf32>,
    return
  }
  func.func @transform_0(%arg0: i32) -> (i32, i32, i32) {
    %c0_i32 = arith.constant 0 : i32
    %c0_i32_0 = arith.constant 0 : i32
    %c0_i32_1 = arith.constant 0 : i32
    return %arg0, %c0_i32, %c0_i32_0 : i32, i32, i32
  }
  func.func @transform_1(%arg0: i32) -> (i32, i32, i32) {
    %c0_i32 = arith.constant 0 : i32
    %c0_i32_0 = arith.constant 0 : i32
    %c0_i32_1 = arith.constant 0 : i32
    %c0_i32_2 = arith.constant 0 : i32
    return %c0_i32, %c0_i32_0, %c0_i32_1 : i32, i32, i32
  }
  func.func @transform_2(%arg0: i32) -> (i32, i32) {
    %c0_i32 = arith.constant 0 : i32
    %c0_i32_0 = arith.constant 0 : i32
    %c0_i32_1 = arith.constant 0 : i32
    return %c0_i32, %c0_i32_0 : i32, i32
  }
  func.func @transform_3(%arg0: i32) -> (i32, i32, i32) {
    %c0_i32 = arith.constant 0 : i32
    %c0_i32_0 = arith.constant 0 : i32
    %c0_i32_1 = arith.constant 0 : i32
    return %arg0, %c0_i32, %c0_i32_0 : i32, i32, i32
  }
}

</mosaic_0001>

<llo_original>
// kernel: squeeze.1
$region0: #{squeeze.1}
  %s0 = inlined_call_operand.vmem [shape: f32[8,24], index: 0, kind: input, shape index: {}]
  %s1 = inlined_call_operand.vmem [shape: f32[8,3,8], index: 1, kind: output, shape index: {}]
  $region1: #{squeeze.1} parent=0
    #allocation0 [shape = 'u8[32768]{0}', space=vmem, size = 0x8000, scoped, tag = 'scoped mem for output reshape']
    %v2 = vld [vmem:[%s0] sm:$0xff]
    %vm3 = vcmask 64512
    %4 = vst.msk [vmem:[#allocation0] ss:$8 sm:$0xf] %vm3, %v2
    %5 = vst.msk [vmem:[#allocation0] ss:$8 sm:$0xf0] %vm3, %v2
    %v6 = vld [vmem:[%s0] sm:$0xff]
    %7 = vrot.lane.b32.xlu0 %v6, 120
    %v8 = vpop.permute.xlu0 %7
    %vm9 = vcmask 64512
    %s10 = scalar_lea.vmem [#allocation0], 1
    %11 = vst.msk [vmem:[%s10] ss:$8 sm:$0xf] %vm9, %v8
    %s12 = scalar_lea.vmem [#allocation0], 1
    %13 = vst.msk [vmem:[%s12] ss:$8 sm:$0xf0] %vm9, %v8
    %v14 = vld [vmem:[%s0] sm:$0xff]
    %15 = vrot.lane.b32.xlu0 %v14, 112
    %v16 = vpop.permute.xlu0 %15
    %vm17 = vcmask 64512
    %s18 = scalar_lea.vmem [#allocation0], 2
    %19 = vst.msk [vmem:[%s18] ss:$8 sm:$0xf] %vm17, %v16
    %s20 = scalar_lea.vmem [#allocation0], 2
    %21 = vst.msk [vmem:[%s20] ss:$8 sm:$0xf0] %vm17, %v16
    %s23 = sshll.u32 1, 4
    %s24 = ssub.s32 %s23, 1
    %v26 = vld [vmem:[#allocation0] sm:%s24]
    %s27 = sshll.u32 1, 4
    %s28 = ssub.s32 %s27, 1
    %29 = vst [vmem:[%s1] sm:%s28] %v26
    %s30 = scalar_lea.vmem [#allocation0], 8
    %v31 = vld [vmem:[%s30] sm:%s24]
    %s32 = sshll.u32 1, 4
    %s33 = ssub.s32 %s32, 1
    %s34 = scalar_lea.vmem %s1, 4
    %35 = vst [vmem:[%s34] sm:%s33] %v31
    %s36 = scalar_lea.vmem [#allocation0], 16
    %v37 = vld [vmem:[%s36] sm:%s24]
    %s38 = sshll.u32 1, 4
    %s39 = ssub.s32 %s38, 1
    %s40 = smul.addr 4, 2
    %s41 = scalar_lea.vmem %s1, %s40
    %42 = vst [vmem:[%s41] sm:%s39] %v37
    %s43 = scalar_lea.vmem [#allocation0], 24
    %v44 = vld [vmem:[%s43] sm:%s24]
    %s45 = sshll.u32 1, 4
    %s46 = ssub.s32 %s45, 1
    %s47 = smul.addr 4, 3
    %s48 = scalar_lea.vmem %s1, %s47
    %49 = vst [vmem:[%s48] sm:%s46] %v44
    %s50 = scalar_lea.vmem [#allocation0], 32
    %v51 = vld [vmem:[%s50] sm:%s24]
    %s52 = sshll.u32 1, 4
    %s53 = ssub.s32 %s52, 1
    %s54 = smul.addr 4, 4
    %s55 = scalar_lea.vmem %s1, %s54
    %56 = vst [vmem:[%s55] sm:%s53] %v51
    %s57 = scalar_lea.vmem [#allocation0], 40
    %v58 = vld [vmem:[%s57] sm:%s24]
    %s59 = sshll.u32 1, 4
    %s60 = ssub.s32 %s59, 1
    %s61 = smul.addr 4, 5
    %s62 = scalar_lea.vmem %s1, %s61
    %63 = vst [vmem:[%s62] sm:%s60] %v58
    %s64 = scalar_lea.vmem [#allocation0], 48
    %v65 = vld [vmem:[%s64] sm:%s24]
    %s66 = sshll.u32 1, 4
    %s67 = ssub.s32 %s66, 1
    %s68 = smul.addr 4, 6
    %s69 = scalar_lea.vmem %s1, %s68
    %70 = vst [vmem:[%s69] sm:%s67] %v65
    %s71 = scalar_lea.vmem [#allocation0], 56
    %v72 = vld [vmem:[%s71] sm:%s24]
    %s73 = sshll.u32 1, 4
    %s74 = ssub.s32 %s73, 1
    %s75 = smul.addr 4, 7
    %s76 = scalar_lea.vmem %s1, %s75
    %77 = vst [vmem:[%s76] sm:%s74] %v72

// kernel: _aspp_share_forward.1
$region0: #{_aspp_share_forward.1}
  #allocation0 [shape = 'u32[]', space=smem, size = 0x4, offset = 0x4, fixed_abs, tag = 'smem constant byte address 0x4 - core index']
  #allocation1 [shape = 'u32[144,128]{1,0:T(1,128)}', space=vmem, size = 0x12000, scoped, tag = 'internal scratch']
  #allocation2 [shape = 'bf16[2,4,584]{2,1,0:T(4,128)(2,1)}', space=vmem, size = 0x2800, scoped, tag = 'scratch operand']
  #allocation3 [shape = 'bf16[48,768]{1,0:T(8,128)(2,1)}', space=vmem, size = 0x12000, scoped, tag = 'scratch operand']
  %s0 = inlined_call_operand.vmem [shape: f32[2,4,256], index: 0, kind: input, shape index: {}]
  %s1 = inlined_call_operand.vmem [shape: bf16[3,8,48], index: 1, kind: input, shape index: {}]
  %s2 = inlined_call_operand.vmem [shape: f32[8,1], index: 2, kind: input, shape index: {}]
  %s3 = inlined_call_operand.vmem [shape: f32[2,8,384], index: 3, kind: output, shape index: {}]
  %s4 = sld [smem:[#allocation0]]
  $region22: #{_aspp_share_forward.1} parent=0
    _
  %s6 = ssub.s32 1, %s4
  %s7 = scalar_select 0, %s6, %s4
  // Predicated region
  $region2: #{_aspp_share_forward.1} parent=0 // pred_check
    _
  $region3: #{_aspp_share_forward.1} parent=0 // pred_check_branch
    %9 = sbr.rel (0) target = $region5
  $region4: #{_aspp_share_forward.1} parent=0 // pred_region
    _
  $region5: #{_aspp_share_forward.1} parent=0 // pred_fallthru
    _
  // Predicated region
  $region6: #{_aspp_share_forward.1} parent=0 // pred_check
    _
  $region7: #{_aspp_share_forward.1} parent=0 // pred_check_branch
    %11 = sbr.rel (0) target = $region9
  $region8: #{_aspp_share_forward.1} parent=0 // pred_region
    _
  $region9: #{_aspp_share_forward.1} parent=0 // pred_fallthru
    _
  // Predicated region
  $region10: #{_aspp_share_forward.1} parent=0 // pred_check
    _
  $region11: #{_aspp_share_forward.1} parent=0 // pred_check_branch
    %13 = sbr.rel (0) target = $region13
  $region12: #{_aspp_share_forward.1} parent=0 // pred_region
    _
  $region13: #{_aspp_share_forward.1} parent=0 // pred_fallthru
    _
  %vm15 = vcmask 844800
  %16 = vst.msk [vmem:[#allocation2] sm:$0x3] %vm15, 0
  %17 = vst.msk [vmem:[#allocation2 + $0xa] sm:$0x3] %vm15, 0
  %vm18 = vcmask 1042240
  %vm19 = vcmask 584706
  %vm20 = vmor %vm19, %vm18
  %21 = vst.msk [vmem:[#allocation2 + $0x6] sm:$0xf] %vm20, 0
  %22 = vst.msk [vmem:[#allocation2 + $0x10] sm:$0xf] %vm20, 0
  %v23 = vld [vmem:[%s0] sm:$0xf]
  %v24 = vld [vmem:[%s0 + $0x8] sm:$0xf]
  %v25 = vpack.c.bf16 %v23, %v23
  %v26 = vpack.c.bf16 %v24, %v24
  %v30 = vunpack.c.l.s4 1983009808
  %v31 = vunpack.c.0.s8 %v30
  %v32 = vlaneseq
  %v33 = vshrl.u32 %v32, 7
  %v34 = vsub.s32 %v31, %v33
  %v35 = vrot.slane %v25, %v34
  %v37 = vunpack.c.l.s4 1983009808
  %v38 = vunpack.c.0.s8 %v37
  %v39 = vlaneseq
  %v40 = vshrl.u32 %v39, 7
  %v41 = vsub.s32 %v38, %v40
  %v42 = vrot.slane %v26, %v41
  %43 = vrot.lane.b32.xlu0 %v35, 104
  %v44 = vpop.permute.xlu0 %43
  %45 = vrot.lane.b32.xlu0 %v42, 104
  %v46 = vpop.permute.xlu0 %45
  %vm49 = vcmask 976704
  %50 = vst.msk [vmem:[#allocation2] sm:$0x3] %vm49, %v44
  %51 = vst.msk [vmem:[#allocation2 + $0xa] sm:$0x3] %vm49, %v46
  %vm52 = vcmask 1042368
  %53 = vst.msk [vmem:[#allocation2] sm:$0x3] %vm52, 0
  %54 = vst.msk [vmem:[#allocation2 + $0xa] sm:$0x3] %vm52, 0
  %v55 = vld [vmem:[%s0] sm:$0xf]
  %v56 = vld [vmem:[%s0 + $0x8] sm:$0xf]
  %v57 = vpack.c.bf16 %v55, %v55
  %v58 = vpack.c.bf16 %v56, %v56
  %v62 = vunpack.c.l.s4 1983009808
  %v63 = vunpack.c.0.s8 %v62
  %v64 = vlaneseq
  %v65 = vshrl.u32 %v64, 7
  %v66 = vsub.s32 %v63, %v65
  %v67 = vrot.slane %v57, %v66
  %v69 = vunpack.c.l.s4 1983009808
  %v70 = vunpack.c.0.s8 %v69
  %v71 = vlaneseq
  %v72 = vshrl.u32 %v71, 7
  %v73 = vsub.s32 %v70, %v72
  %v74 = vrot.slane %v58, %v73
  %75 = vrot.lane.b32.xlu0 %v67, 112
  %v76 = vpop.permute.xlu0 %75
  %77 = vrot.lane.b32.xlu0 %v74, 112
  %v78 = vpop.permute.xlu0 %77
  %vm81 = vcmask 123904
  %82 = vst.msk [vmem:[#allocation2 + $0x2] sm:$0x3] %vm81, %v76
  %83 = vst.msk [vmem:[#allocation2 + $0xc] sm:$0x3] %vm81, %v78
  %vm84 = vcmask 189568
  %85 = vst.msk [vmem:[#allocation2 + $0x2] sm:$0x3] %vm84, 0
  %86 = vst.msk [vmem:[#allocation2 + $0xc] sm:$0x3] %vm84, 0
  %v87 = vld [vmem:[%s0] sm:$0xf]
  %v88 = vld [vmem:[%s0 + $0x8] sm:$0xf]
  %v89 = vpack.c.bf16 %v87, %v87
  %v90 = vpack.c.bf16 %v88, %v88
  %v94 = vunpack.c.l.s4 1983009808
  %v95 = vunpack.c.0.s8 %v94
  %v96 = vlaneseq
  %v97 = vshrl.u32 %v96, 7
  %v98 = vsub.s32 %v95, %v97
  %v99 = vrot.slane %v89, %v98
  %v101 = vunpack.c.l.s4 1983009808
  %v102 = vunpack.c.0.s8 %v101
  %v103 = vlaneseq
  %v104 = vshrl.u32 %v103, 7
  %v105 = vsub.s32 %v102, %v104
  %v106 = vrot.slane %v90, %v105
  %107 = vrot.lane.b32.xlu0 %v99, 120
  %v108 = vpop.permute.xlu0 %107
  %109 = vrot.lane.b32.xlu0 %v106, 120
  %v110 = vpop.permute.xlu0 %109
  %vm113 = vcmask 320704
  %114 = vst.msk [vmem:[#allocation2 + $0x2] sm:$0x3] %vm113, %v108
  %115 = vst.msk [vmem:[#allocation2 + $0xc] sm:$0x3] %vm113, %v110
  %vm116 = vcmask 386368
  %117 = vst.msk [vmem:[#allocation2 + $0x2] sm:$0x3] %vm116, 0
  %118 = vst.msk [vmem:[#allocation2 + $0xc] sm:$0x3] %vm116, 0
  %v119 = vld [vmem:[%s0] sm:$0xf]
  %v120 = vld [vmem:[%s0 + $0x8] sm:$0xf]
  %v121 = vpack.c.bf16 %v119, %v119
  %v122 = vpack.c.bf16 %v120, %v120
  %vm123 = vcmask 517504
  %124 = vst.msk [vmem:[#allocation2 + $0x2] sm:$0x3] %vm123, %v121
  %125 = vst.msk [vmem:[#allocation2 + $0xc] sm:$0x3] %vm123, %v122
  %vm126 = vcmask 583168
  %127 = vst.msk [vmem:[#allocation2 + $0x2] sm:$0x3] %vm126, 0
  %128 = vst.msk [vmem:[#allocation2 + $0xc] sm:$0x3] %vm126, 0
  %v129 = vld [vmem:[%s0] sm:$0xf]
  %v130 = vld [vmem:[%s0 + $0x8] sm:$0xf]
  %v131 = vpack.c.bf16 %v129, %v129
  %v132 = vpack.c.bf16 %v130, %v130
  %v136 = vunpack.c.l.s4 1983009808
  %v137 = vunpack.c.0.s8 %v136
  %v138 = vlaneseq
  %v139 = vshrl.u32 %v138, 7
  %v140 = vsub.s32 %v137, %v139
  %v141 = vrot.slane %v131, %v140
  %v143 = vunpack.c.l.s4 1983009808
  %v144 = vunpack.c.0.s8 %v143
  %v145 = vlaneseq
  %v146 = vshrl.u32 %v145, 7
  %v147 = vsub.s32 %v144, %v146
  %v148 = vrot.slane %v132, %v147
  %149 = vrot.lane.b32.xlu0 %v141, 8
  %v150 = vpop.permute.xlu0 %149
  %151 = vrot.lane.b32.xlu0 %v148, 8
  %v152 = vpop.permute.xlu0 %151
  %vm155 = vcmask 714304
  %156 = vst.msk [vmem:[#allocation2 + $0x2] sm:$0x3] %vm155, %v150
  %157 = vst.msk [vmem:[#allocation2 + $0xc] sm:$0x3] %vm155, %v152
  %vm158 = vcmask 779968
  %159 = vst.msk [vmem:[#allocation2 + $0x2] sm:$0x3] %vm158, 0
  %160 = vst.msk [vmem:[#allocation2 + $0xc] sm:$0x3] %vm158, 0
  %v161 = vld [vmem:[%s0] sm:$0xf]
  %v162 = vld [vmem:[%s0 + $0x8] sm:$0xf]
  %v163 = vpack.c.bf16 %v161, %v161
  %v164 = vpack.c.bf16 %v162, %v162
  %v168 = vunpack.c.l.s4 1983009808
  %v169 = vunpack.c.0.s8 %v168
  %v170 = vlaneseq
  %v171 = vshrl.u32 %v170, 7
  %v172 = vsub.s32 %v169, %v171
  %v173 = vrot.slane %v163, %v172
  %v175 = vunpack.c.l.s4 1983009808
  %v176 = vunpack.c.0.s8 %v175
  %v177 = vlaneseq
  %v178 = vshrl.u32 %v177, 7
  %v179 = vsub.s32 %v176, %v178
  %v180 = vrot.slane %v164, %v179
  %181 = vrot.lane.b32.xlu0 %v173, 16
  %v182 = vpop.permute.xlu0 %181
  %183 = vrot.lane.b32.xlu0 %v180, 16
  %v184 = vpop.permute.xlu0 %183
  %vm187 = vcmask 911104
  %188 = vst.msk [vmem:[#allocation2 + $0x2] sm:$0x3] %vm187, %v182
  %189 = vst.msk [vmem:[#allocation2 + $0xc] sm:$0x3] %vm187, %v184
  %vm190 = vcmask 976768
  %191 = vst.msk [vmem:[#allocation2 + $0x2] sm:$0x3] %vm190, 0
  %192 = vst.msk [vmem:[#allocation2 + $0xc] sm:$0x3] %vm190, 0
  %v193 = vld [vmem:[%s0] sm:$0xf]
  %v194 = vld [vmem:[%s0 + $0x8] sm:$0xf]
  %v195 = vpack.c.bf16 %v193, %v193
  %v196 = vpack.c.bf16 %v194, %v194
  %v200 = vunpack.c.l.s4 1983009808
  %v201 = vunpack.c.0.s8 %v200
  %v202 = vlaneseq
  %v203 = vshrl.u32 %v202, 7
  %v204 = vsub.s32 %v201, %v203
  %v205 = vrot.slane %v195, %v204
  %v207 = vunpack.c.l.s4 1983009808
  %v208 = vunpack.c.0.s8 %v207
  %v209 = vlaneseq
  %v210 = vshrl.u32 %v209, 7
  %v211 = vsub.s32 %v208, %v210
  %v212 = vrot.slane %v196, %v211
  %213 = vrot.lane.b32.xlu0 %v205, 24
  %v214 = vpop.permute.xlu0 %213
  %215 = vrot.lane.b32.xlu0 %v212, 24
  %v216 = vpop.permute.xlu0 %215
  %v217 = vrot.slane %v214, 6
  %v218 = vrot.slane %v216, 6
  %vm219 = vcmask 195584
  %v220 = vsel %vm219, %v217, %v214
  %v221 = vsel %vm219, %v218, %v216
  %vm224 = vcmask 60418
  %vm225 = vmor %vm224, %vm52
  %226 = vst.msk [vmem:[#allocation2 + $0x2] sm:$0xf] %vm225, %v220
  %227 = vst.msk [vmem:[#allocation2 + $0xc] sm:$0xf] %vm225, %v221
  %vm228 = vcmask 123968
  %229 = vst.msk [vmem:[#allocation2 + $0x4] sm:$0x3] %vm228, 0
  %230 = vst.msk [vmem:[#allocation2 + $0xe] sm:$0x3] %vm228, 0
  %v231 = vld [vmem:[%s0] sm:$0xf]
  %v232 = vld [vmem:[%s0 + $0x8] sm:$0xf]
  %v233 = vpack.c.bf16 %v231, %v231
  %v234 = vpack.c.bf16 %v232, %v232
  %v238 = vunpack.c.l.s4 1983009808
  %v239 = vunpack.c.0.s8 %v238
  %v240 = vlaneseq
  %v241 = vshrl.u32 %v240, 7
  %v242 = vsub.s32 %v239, %v241
  %v243 = vrot.slane %v233, %v242
  %v245 = vunpack.c.l.s4 1983009808
  %v246 = vunpack.c.0.s8 %v245
  %v247 = vlaneseq
  %v248 = vshrl.u32 %v247, 7
  %v249 = vsub.s32 %v246, %v248
  %v250 = vrot.slane %v234, %v249
  %251 = vrot.lane.b32.xlu0 %v243, 32
  %v252 = vpop.permute.xlu0 %251
  %253 = vrot.lane.b32.xlu0 %v250, 32
  %v254 = vpop.permute.xlu0 %253
  %vm257 = vcmask 255104
  %258 = vst.msk [vmem:[#allocation2 + $0x4] sm:$0x3] %vm257, %v252
  %259 = vst.msk [vmem:[#allocation2 + $0xe] sm:$0x3] %vm257, %v254
  %vm260 = vcmask 320768
  %261 = vst.msk [vmem:[#allocation2 + $0x4] sm:$0x3] %vm260, 0
  %262 = vst.msk [vmem:[#allocation2 + $0xe] sm:$0x3] %vm260, 0
  %v263 = vld [vmem:[%s0 + $0x4] sm:$0xf]
  %v264 = vld [vmem:[%s0 + $0xc] sm:$0xf]
  %v265 = vpack.c.bf16 %v263, %v263
  %v266 = vpack.c.bf16 %v264, %v264
  %v270 = vunpack.c.l.s4 1983009808
  %v271 = vunpack.c.0.s8 %v270
  %v272 = vlaneseq
  %v273 = vshrl.u32 %v272, 7
  %v274 = vsub.s32 %v271, %v273
  %v275 = vrot.slane %v265, %v274
  %v277 = vunpack.c.l.s4 1983009808
  %v278 = vunpack.c.0.s8 %v277
  %v279 = vlaneseq
  %v280 = vshrl.u32 %v279, 7
  %v281 = vsub.s32 %v278, %v280
  %v282 = vrot.slane %v266, %v281
  %283 = vrot.lane.b32.xlu0 %v275, 40
  %v284 = vpop.permute.xlu0 %283
  %285 = vrot.lane.b32.xlu0 %v282, 40
  %v286 = vpop.permute.xlu0 %285
  %vm289 = vcmask 451904
  %290 = vst.msk [vmem:[#allocation2 + $0x4] sm:$0x3] %vm289, %v284
  %291 = vst.msk [vmem:[#allocation2 + $0xe] sm:$0x3] %vm289, %v286
  %vm292 = vcmask 517568
  %293 = vst.msk [vmem:[#allocation2 + $0x4] sm:$0x3] %vm292, 0
  %294 = vst.msk [vmem:[#allocation2 + $0xe] sm:$0x3] %vm292, 0
  %v295 = vld [vmem:[%s0 + $0x4] sm:$0xf]
  %v296 = vld [vmem:[%s0 + $0xc] sm:$0xf]
  %v297 = vpack.c.bf16 %v295, %v295
  %v298 = vpack.c.bf16 %v296, %v296
  %v302 = vunpack.c.l.s4 1983009808
  %v303 = vunpack.c.0.s8 %v302
  %v304 = vlaneseq
  %v305 = vshrl.u32 %v304, 7
  %v306 = vsub.s32 %v303, %v305
  %v307 = vrot.slane %v297, %v306
  %v309 = vunpack.c.l.s4 1983009808
  %v310 = vunpack.c.0.s8 %v309
  %v311 = vlaneseq
  %v312 = vshrl.u32 %v311, 7
  %v313 = vsub.s32 %v310, %v312
  %v314 = vrot.slane %v298, %v313
  %315 = vrot.lane.b32.xlu0 %v307, 48
  %v316 = vpop.permute.xlu0 %315
  %317 = vrot.lane.b32.xlu0 %v314, 48
  %v318 = vpop.permute.xlu0 %317
  %vm321 = vcmask 648704
  %322 = vst.msk [vmem:[#allocation2 + $0x4] sm:$0x3] %vm321, %v316
  %323 = vst.msk [vmem:[#allocation2 + $0xe] sm:$0x3] %vm321, %v318
  %vm324 = vcmask 714368
  %325 = vst.msk [vmem:[#allocation2 + $0x4] sm:$0x3] %vm324, 0
  %326 = vst.msk [vmem:[#allocation2 + $0xe] sm:$0x3] %vm324, 0
  %v327 = vld [vmem:[%s0 + $0x4] sm:$0xf]
  %v328 = vld [vmem:[%s0 + $0xc] sm:$0xf]
  %v329 = vpack.c.bf16 %v327, %v327
  %v330 = vpack.c.bf16 %v328, %v328
  %v334 = vunpack.c.l.s4 1983009808
  %v335 = vunpack.c.0.s8 %v334
  %v336 = vlaneseq
  %v337 = vshrl.u32 %v336, 7
  %v338 = vsub.s32 %v335, %v337
  %v339 = vrot.slane %v329, %v338
  %v341 = vunpack.c.l.s4 1983009808
  %v342 = vunpack.c.0.s8 %v341
  %v343 = vlaneseq
  %v344 = vshrl.u32 %v343, 7
  %v345 = vsub.s32 %v342, %v344
  %v346 = vrot.slane %v330, %v345
  %347 = vrot.lane.b32.xlu0 %v339, 56
  %v348 = vpop.permute.xlu0 %347
  %349 = vrot.lane.b32.xlu0 %v346, 56
  %v350 = vpop.permute.xlu0 %349
  %vm353 = vcmask 845504
  %354 = vst.msk [vmem:[#allocation2 + $0x4] sm:$0x3] %vm353, %v348
  %355 = vst.msk [vmem:[#allocation2 + $0xe] sm:$0x3] %vm353, %v350
  %vm356 = vcmask 911168
  %357 = vst.msk [vmem:[#allocation2 + $0x4] sm:$0x3] %vm356, 0
  %358 = vst.msk [vmem:[#allocation2 + $0xe] sm:$0x3] %vm356, 0
  %v359 = vld [vmem:[%s0 + $0x4] sm:$0xf]
  %v360 = vld [vmem:[%s0 + $0xc] sm:$0xf]
  %v361 = vpack.c.bf16 %v359, %v359
  %v362 = vpack.c.bf16 %v360, %v360
  %v366 = vunpack.c.l.s4 1983009808
  %v367 = vunpack.c.0.s8 %v366
  %v368 = vlaneseq
  %v369 = vshrl.u32 %v368, 7
  %v370 = vsub.s32 %v367, %v369
  %v371 = vrot.slane %v361, %v370
  %v373 = vunpack.c.l.s4 1983009808
  %v374 = vunpack.c.0.s8 %v373
  %v375 = vlaneseq
  %v376 = vshrl.u32 %v375, 7
  %v377 = vsub.s32 %v374, %v376
  %v378 = vrot.slane %v362, %v377
  %379 = vrot.lane.b32.xlu0 %v371, 64
  %v380 = vpop.permute.xlu0 %379
  %381 = vrot.lane.b32.xlu0 %v378, 64
  %v382 = vpop.permute.xlu0 %381
  %vm385 = vcmask 1042304
  %386 = vst.msk [vmem:[#allocation2 + $0x4] sm:$0x3] %vm385, %v380
  %387 = vst.msk [vmem:[#allocation2 + $0xe] sm:$0x3] %vm385, %v382
  %vm388 = vcmask 58368
  %389 = vst.msk [vmem:[#allocation2 + $0x6] sm:$0x3] %vm388, 0
  %390 = vst.msk [vmem:[#allocation2 + $0x10] sm:$0x3] %vm388, 0
  %v391 = vld [vmem:[%s0 + $0x4] sm:$0xf]
  %v392 = vld [vmem:[%s0 + $0xc] sm:$0xf]
  %v393 = vpack.c.bf16 %v391, %v391
  %v394 = vpack.c.bf16 %v392, %v392
  %v398 = vunpack.c.l.s4 1983009808
  %v399 = vunpack.c.0.s8 %v398
  %v400 = vlaneseq
  %v401 = vshrl.u32 %v400, 7
  %v402 = vsub.s32 %v399, %v401
  %v403 = vrot.slane %v393, %v402
  %v405 = vunpack.c.l.s4 1983009808
  %v406 = vunpack.c.0.s8 %v405
  %v407 = vlaneseq
  %v408 = vshrl.u32 %v407, 7
  %v409 = vsub.s32 %v406, %v408
  %v410 = vrot.slane %v394, %v409
  %411 = vrot.lane.b32.xlu0 %v403, 72
  %v412 = vpop.permute.xlu0 %411
  %413 = vrot.lane.b32.xlu0 %v410, 72
  %v414 = vpop.permute.xlu0 %413
  %vm417 = vcmask 189504
  %418 = vst.msk [vmem:[#allocation2 + $0x6] sm:$0x3] %vm417, %v412
  %419 = vst.msk [vmem:[#allocation2 + $0x10] sm:$0x3] %vm417, %v414
  %vm420 = vcmask 255168
  %421 = vst.msk [vmem:[#allocation2 + $0x6] sm:$0x3] %vm420, 0
  %422 = vst.msk [vmem:[#allocation2 + $0x10] sm:$0x3] %vm420, 0
  %v423 = vld [vmem:[%s0 + $0x4] sm:$0xf]
  %v424 = vld [vmem:[%s0 + $0xc] sm:$0xf]
  %v425 = vpack.c.bf16 %v423, %v423
  %v426 = vpack.c.bf16 %v424, %v424
  %v430 = vunpack.c.l.s4 1983009808
  %v431 = vunpack.c.0.s8 %v430
  %v432 = vlaneseq
  %v433 = vshrl.u32 %v432, 7
  %v434 = vsub.s32 %v431, %v433
  %v435 = vrot.slane %v425, %v434
  %v437 = vunpack.c.l.s4 1983009808
  %v438 = vunpack.c.0.s8 %v437
  %v439 = vlaneseq
  %v440 = vshrl.u32 %v439, 7
  %v441 = vsub.s32 %v438, %v440
  %v442 = vrot.slane %v426, %v441
  %443 = vrot.lane.b32.xlu0 %v435, 80
  %v444 = vpop.permute.xlu0 %443
  %445 = vrot.lane.b32.xlu0 %v442, 80
  %v446 = vpop.permute.xlu0 %445
  %vm449 = vcmask 386304
  %450 = vst.msk [vmem:[#allocation2 + $0x6] sm:$0x3] %vm449, %v444
  %451 = vst.msk [vmem:[#allocation2 + $0x10] sm:$0x3] %vm449, %v446
  %vm452 = vcmask 451968
  %453 = vst.msk [vmem:[#allocation2 + $0x6] sm:$0x3] %vm452, 0
  %454 = vst.msk [vmem:[#allocation2 + $0x10] sm:$0x3] %vm452, 0
  %v455 = vld [vmem:[%s0 + $0x4] sm:$0xf]
  %v456 = vld [vmem:[%s0 + $0xc] sm:$0xf]
  %v457 = vpack.c.bf16 %v455, %v455
  %v458 = vpack.c.bf16 %v456, %v456
  %v462 = vunpack.c.l.s4 1983009808
  %v463 = vunpack.c.0.s8 %v462
  %v464 = vlaneseq
  %v465 = vshrl.u32 %v464, 7
  %v466 = vsub.s32 %v463, %v465
  %v467 = vrot.slane %v457, %v466
  %v469 = vunpack.c.l.s4 1983009808
  %v470 = vunpack.c.0.s8 %v469
  %v471 = vlaneseq
  %v472 = vshrl.u32 %v471, 7
  %v473 = vsub.s32 %v470, %v472
  %v474 = vrot.slane %v458, %v473
  %475 = vrot.lane.b32.xlu0 %v467, 88
  %v476 = vpop.permute.xlu0 %475
  %477 = vrot.lane.b32.xlu0 %v474, 88
  %v478 = vpop.permute.xlu0 %477
  %vm481 = vcmask 583104
  %482 = vst.msk [vmem:[#allocation2 + $0x6] sm:$0x3] %vm481, %v476
  %483 = vst.msk [vmem:[#allocation2 + $0x10] sm:$0x3] %vm481, %v478
  %vm484 = vcmask 648768
  %485 = vst.msk [vmem:[#allocation2 + $0x6] sm:$0x3] %vm484, 0
  %486 = vst.msk [vmem:[#allocation2 + $0x10] sm:$0x3] %vm484, 0
  %v487 = vld [vmem:[%s0 + $0x4] sm:$0xf]
  %v488 = vld [vmem:[%s0 + $0xc] sm:$0xf]
  %v489 = vpack.c.bf16 %v487, %v487
  %v490 = vpack.c.bf16 %v488, %v488
  %v494 = vunpack.c.l.s4 1983009808
  %v495 = vunpack.c.0.s8 %v494
  %v496 = vlaneseq
  %v497 = vshrl.u32 %v496, 7
  %v498 = vsub.s32 %v495, %v497
  %v499 = vrot.slane %v489, %v498
  %v501 = vunpack.c.l.s4 1983009808
  %v502 = vunpack.c.0.s8 %v501
  %v503 = vlaneseq
  %v504 = vshrl.u32 %v503, 7
  %v505 = vsub.s32 %v502, %v504
  %v506 = vrot.slane %v490, %v505
  %507 = vrot.lane.b32.xlu0 %v499, 96
  %v508 = vpop.permute.xlu0 %507
  %509 = vrot.lane.b32.xlu0 %v506, 96
  %v510 = vpop.permute.xlu0 %509
  %vm513 = vcmask 779904
  %514 = vst.msk [vmem:[#allocation2 + $0x6] sm:$0x3] %vm513, %v508
  %515 = vst.msk [vmem:[#allocation2 + $0x10] sm:$0x3] %vm513, %v510
  %vm516 = vcmask 845568
  %517 = vst.msk [vmem:[#allocation2 + $0x6] sm:$0x3] %vm516, 0
  %518 = vst.msk [vmem:[#allocation2 + $0x10] sm:$0x3] %vm516, 0
  %519 = vst [vmem:[#allocation3 + $0x60] sm:$0xcc] 0
  %520 = vst [vmem:[#allocation3 + $0x68] sm:$0xcc] 0
  %521 = vst [vmem:[#allocation3 + $0x70] sm:$0xcc] 0
  %522 = vst [vmem:[#allocation3 + $0x78] sm:$0xff] 0
  %523 = vst [vmem:[#allocation3 + $0x80] sm:$0xff] 0
  %524 = vst [vmem:[#allocation3 + $0x88] sm:$0xff] 0
  %v525 = vld [vmem:[#allocation2] sm:$0xff]
  %v527 = vcombine.high %v525, %v525
  %v529 = vunpack.c.l.s4 1983009808
  %v530 = vunpack.c.0.s8 %v529
  %v531 = vlaneseq
  %v532 = vshrl.u32 %v531, 7
  %v533 = vsub.s32 %v530, %v532
  %v534 = vrot.slane %v525, %v533
  %v536 = vunpack.c.l.s4 1983009808
  %v537 = vunpack.c.0.s8 %v536
  %v538 = vlaneseq
  %v539 = vshrl.u32 %v538, 7
  %v540 = vsub.s32 %v537, %v539
  %v541 = vrot.slane %v527, %v540
  %542 = vrot.lane.b32.xlu0 %v534, 53
  %v543 = vpop.permute.xlu0 %542
  %544 = vrot.lane.b32.xlu0 %v541, 53
  %v545 = vpop.permute.xlu0 %544
  %v546 = vrot.slane %v543, 4
  %v547 = vrot.slane %v545, 4
  %vm548 = vcmask 1043456
  %v549 = vsel %vm548, %v546, %v547
  %vm550 = vcmask 433152
  %v551 = vsel %vm550, %v543, %v549
  %v552 = vsel %vm550, %v545, %v547
  %555 = vst [vmem:[#allocation3] sm:$0x33] %v551
  %556 = vst [vmem:[#allocation3 + $0x8] sm:$0x3] %v552
  %s557 = scalar_lea.vmem [#allocation2], 10
  %v558 = vld [vmem:[%s557] sm:$0xff]
  %v560 = vcombine.high %v558, %v558
  %v562 = vunpack.c.l.s4 1983009808
  %v563 = vunpack.c.0.s8 %v562
  %v564 = vlaneseq
  %v565 = vshrl.u32 %v564, 7
  %v566 = vsub.s32 %v563, %v565
  %v567 = vrot.slane %v558, %v566
  %v569 = vunpack.c.l.s4 1983009808
  %v570 = vunpack.c.0.s8 %v569
  %v571 = vlaneseq
  %v572 = vshrl.u32 %v571, 7
  %v573 = vsub.s32 %v570, %v572
  %v574 = vrot.slane %v560, %v573
  %575 = vrot.lane.b32.xlu0 %v567, 53
  %v576 = vpop.permute.xlu0 %575
  %577 = vrot.lane.b32.xlu0 %v574, 53
  %v578 = vpop.permute.xlu0 %577
  %v579 = vrot.slane %v576, 4
  %v580 = vrot.slane %v578, 4
  %v581 = vsel %vm548, %v579, %v580
  %v582 = vsel %vm550, %v576, %v581
  %v583 = vsel %vm550, %v578, %v580
  %586 = vst [vmem:[#allocation3 + $0xc] sm:$0x33] %v582
  %587 = vst [vmem:[#allocation3 + $0x14] sm:$0x3] %v583
  %v588 = vld [vmem:[#allocation2] sm:$0xff]
  %v590 = vcombine.low %v588, %v588
  %v592 = vunpack.c.l.s4 1983009808
  %v593 = vunpack.c.0.s8 %v592
  %v594 = vlaneseq
  %v595 = vshrl.u32 %v594, 7
  %v596 = vsub.s32 %v593, %v595
  %v597 = vrot.slane %v590, %v596
  %v599 = vunpack.c.l.s4 1983009808
  %v600 = vunpack.c.0.s8 %v599
  %v601 = vlaneseq
  %v602 = vshrl.u32 %v601, 7
  %v603 = vsub.s32 %v600, %v602
  %v604 = vrot.slane %v588, %v603
  %605 = vrot.lane.b32.xlu0 %v597, 52
  %v606 = vpop.permute.xlu0 %605
  %607 = vrot.lane.b32.xlu0 %v604, 52
  %v608 = vpop.permute.xlu0 %607
  %v609 = vrot.slane %v606, 4
  %v610 = vrot.slane %v608, 4
  %v611 = vsel %vm548, %v609, %v610
  %vm612 = vcmask 424960
  %v613 = vsel %vm612, %v606, %v611
  %v614 = vsel %vm612, %v608, %v610
  %617 = vst [vmem:[#allocation3] sm:$0xcc] %v613
  %618 = vst [vmem:[#allocation3 + $0x8] sm:$0xc] %v614
  %v619 = vld [vmem:[%s557] sm:$0xff]
  %v621 = vcombine.low %v619, %v619
  %v623 = vunpack.c.l.s4 1983009808
  %v624 = vunpack.c.0.s8 %v623
  %v625 = vlaneseq
  %v626 = vshrl.u32 %v625, 7
  %v627 = vsub.s32 %v624, %v626
  %v628 = vrot.slane %v621, %v627
  %v630 = vunpack.c.l.s4 1983009808
  %v631 = vunpack.c.0.s8 %v630
  %v632 = vlaneseq
  %v633 = vshrl.u32 %v632, 7
  %v634 = vsub.s32 %v631, %v633
  %v635 = vrot.slane %v619, %v634
  %636 = vrot.lane.b32.xlu0 %v628, 52
  %v637 = vpop.permute.xlu0 %636
  %638 = vrot.lane.b32.xlu0 %v635, 52
  %v639 = vpop.permute.xlu0 %638
  %v640 = vrot.slane %v637, 4
  %v641 = vrot.slane %v639, 4
  %v642 = vsel %vm548, %v640, %v641
  %v643 = vsel %vm612, %v637, %v642
  %v644 = vsel %vm612, %v639, %v641
  %647 = vst [vmem:[#allocation3 + $0xc] sm:$0xcc] %v643
  %648 = vst [vmem:[#allocation3 + $0x14] sm:$0xc] %v644
  %v649 = vld [vmem:[#allocation2] sm:$0xff]
  %v651 = vcombine.high %v649, %v649
  %v653 = vunpack.c.l.s4 1983009808
  %v654 = vunpack.c.0.s8 %v653
  %v655 = vlaneseq
  %v656 = vshrl.u32 %v655, 7
  %v657 = vsub.s32 %v654, %v656
  %v658 = vrot.slane %v649, %v657
  %v660 = vunpack.c.l.s4 1983009808
  %v661 = vunpack.c.0.s8 %v660
  %v662 = vlaneseq
  %v663 = vshrl.u32 %v662, 7
  %v664 = vsub.s32 %v661, %v663
  %v665 = vrot.slane %v651, %v664
  %666 = vrot.lane.b32.xlu0 %v658, 51
  %v667 = vpop.permute.xlu0 %666
  %668 = vrot.lane.b32.xlu0 %v665, 51
  %v669 = vpop.permute.xlu0 %668
  %v670 = vrot.slane %v667, 4
  %v671 = vrot.slane %v669, 4
  %v672 = vsel %vm548, %v670, %v671
  %vm673 = vcmask 416768
  %v674 = vsel %vm673, %v667, %v672
  %v675 = vsel %vm673, %v669, %v671
  %678 = vst [vmem:[#allocation3 + $0x18] sm:$0x33] %v674
  %679 = vst [vmem:[#allocation3 + $0x20] sm:$0x3] %v675
  %v680 = vld [vmem:[%s557] sm:$0xff]
  %v682 = vcombine.high %v680, %v680
  %v684 = vunpack.c.l.s4 1983009808
  %v685 = vunpack.c.0.s8 %v684
  %v686 = vlaneseq
  %v687 = vshrl.u32 %v686, 7
  %v688 = vsub.s32 %v685, %v687
  %v689 = vrot.slane %v680, %v688
  %v691 = vunpack.c.l.s4 1983009808
  %v692 = vunpack.c.0.s8 %v691
  %v693 = vlaneseq
  %v694 = vshrl.u32 %v693, 7
  %v695 = vsub.s32 %v692, %v694
  %v696 = vrot.slane %v682, %v695
  %697 = vrot.lane.b32.xlu0 %v689, 51
  %v698 = vpop.permute.xlu0 %697
  %699 = vrot.lane.b32.xlu0 %v696, 51
  %v700 = vpop.permute.xlu0 %699
  %v701 = vrot.slane %v698, 4
  %v702 = vrot.slane %v700, 4
  %v703 = vsel %vm548, %v701, %v702
  %v704 = vsel %vm673, %v698, %v703
  %v705 = vsel %vm673, %v700, %v702
  %708 = vst [vmem:[#allocation3 + $0x24] sm:$0x33] %v704
  %709 = vst [vmem:[#allocation3 + $0x2c] sm:$0x3] %v705
  %v710 = vld [vmem:[#allocation2] sm:$0xff]
  %v712 = vcombine.low %v710, %v710
  %v714 = vunpack.c.l.s4 1983009808
  %v715 = vunpack.c.0.s8 %v714
  %v716 = vlaneseq
  %v717 = vshrl.u32 %v716, 7
  %v718 = vsub.s32 %v715, %v717
  %v719 = vrot.slane %v712, %v718
  %v721 = vunpack.c.l.s4 1983009808
  %v722 = vunpack.c.0.s8 %v721
  %v723 = vlaneseq
  %v724 = vshrl.u32 %v723, 7
  %v725 = vsub.s32 %v722, %v724
  %v726 = vrot.slane %v710, %v725
  %727 = vrot.lane.b32.xlu0 %v719, 29
  %v728 = vpop.permute.xlu0 %727
  %729 = vrot.lane.b32.xlu0 %v726, 29
  %v730 = vpop.permute.xlu0 %729
  %v731 = vrot.slane %v728, 4
  %v732 = vrot.slane %v730, 4
  %v733 = vsel %vm548, %v731, %v732
  %vm734 = vcmask 236544
  %v735 = vsel %vm734, %v728, %v733
  %v736 = vsel %vm734, %v730, %v732
  %739 = vst [vmem:[#allocation3 + $0x18] sm:$0xcc] %v735
  %740 = vst [vmem:[#allocation3 + $0x20] sm:$0xc] %v736
  %v741 = vld [vmem:[%s557] sm:$0xff]
  %v743 = vcombine.low %v741, %v741
  %v745 = vunpack.c.l.s4 1983009808
  %v746 = vunpack.c.0.s8 %v745
  %v747 = vlaneseq
  %v748 = vshrl.u32 %v747, 7
  %v749 = vsub.s32 %v746, %v748
  %v750 = vrot.slane %v743, %v749
  %v752 = vunpack.c.l.s4 1983009808
  %v753 = vunpack.c.0.s8 %v752
  %v754 = vlaneseq
  %v755 = vshrl.u32 %v754, 7
  %v756 = vsub.s32 %v753, %v755
  %v757 = vrot.slane %v741, %v756
  %758 = vrot.lane.b32.xlu0 %v750, 29
  %v759 = vpop.permute.xlu0 %758
  %760 = vrot.lane.b32.xlu0 %v757, 29
  %v761 = vpop.permute.xlu0 %760
  %v762 = vrot.slane %v759, 4
  %v763 = vrot.slane %v761, 4
  %v764 = vsel %vm548, %v762, %v763
  %v765 = vsel %vm734, %v759, %v764
  %v766 = vsel %vm734, %v761, %v763
  %769 = vst [vmem:[#allocation3 + $0x24] sm:$0xcc] %v765
  %770 = vst [vmem:[#allocation3 + $0x2c] sm:$0xc] %v766
  %v771 = vld [vmem:[#allocation2] sm:$0xff]
  %v773 = vcombine.high %v771, %v771
  %v775 = vunpack.c.l.s4 1983009808
  %v776 = vunpack.c.0.s8 %v775
  %v777 = vlaneseq
  %v778 = vshrl.u32 %v777, 7
  %v779 = vsub.s32 %v776, %v778
  %v780 = vrot.slane %v771, %v779
  %v782 = vunpack.c.l.s4 1983009808
  %v783 = vunpack.c.0.s8 %v782
  %v784 = vlaneseq
  %v785 = vshrl.u32 %v784, 7
  %v786 = vsub.s32 %v783, %v785
  %v787 = vrot.slane %v773, %v786
  %788 = vrot.lane.b32.xlu0 %v780, 28
  %v789 = vpop.permute.xlu0 %788
  %790 = vrot.lane.b32.xlu0 %v787, 28
  %v791 = vpop.permute.xlu0 %790
  %v792 = vrot.slane %v789, 4
  %v793 = vrot.slane %v791, 4
  %v794 = vsel %vm548, %v792, %v793
  %vm795 = vcmask 228352
  %v796 = vsel %vm795, %v789, %v794
  %v797 = vsel %vm795, %v791, %v793
  %800 = vst [vmem:[#allocation3 + $0x30] sm:$0x33] %v796
  %801 = vst [vmem:[#allocation3 + $0x38] sm:$0x3] %v797
  %v802 = vld [vmem:[%s557] sm:$0xff]
  %v804 = vcombine.high %v802, %v802
  %v806 = vunpack.c.l.s4 1983009808
  %v807 = vunpack.c.0.s8 %v806
  %v808 = vlaneseq
  %v809 = vshrl.u32 %v808, 7
  %v810 = vsub.s32 %v807, %v809
  %v811 = vrot.slane %v802, %v810
  %v813 = vunpack.c.l.s4 1983009808
  %v814 = vunpack.c.0.s8 %v813
  %v815 = vlaneseq
  %v816 = vshrl.u32 %v815, 7
  %v817 = vsub.s32 %v814, %v816
  %v818 = vrot.slane %v804, %v817
  %819 = vrot.lane.b32.xlu0 %v811, 28
  %v820 = vpop.permute.xlu0 %819
  %821 = vrot.lane.b32.xlu0 %v818, 28
  %v822 = vpop.permute.xlu0 %821
  %v823 = vrot.slane %v820, 4
  %v824 = vrot.slane %v822, 4
  %v825 = vsel %vm548, %v823, %v824
  %v826 = vsel %vm795, %v820, %v825
  %v827 = vsel %vm795, %v822, %v824
  %830 = vst [vmem:[#allocation3 + $0x3c] sm:$0x33] %v826
  %831 = vst [vmem:[#allocation3 + $0x44] sm:$0x3] %v827
  %v832 = vld [vmem:[#allocation2] sm:$0xff]
  %v834 = vcombine.low %v832, %v832
  %v836 = vunpack.c.l.s4 1983009808
  %v837 = vunpack.c.0.s8 %v836
  %v838 = vlaneseq
  %v839 = vshrl.u32 %v838, 7
  %v840 = vsub.s32 %v837, %v839
  %v841 = vrot.slane %v834, %v840
  %v843 = vunpack.c.l.s4 1983009808
  %v844 = vunpack.c.0.s8 %v843
  %v845 = vlaneseq
  %v846 = vshrl.u32 %v845, 7
  %v847 = vsub.s32 %v844, %v846
  %v848 = vrot.slane %v832, %v847
  %849 = vrot.lane.b32.xlu0 %v841, 27
  %v850 = vpop.permute.xlu0 %849
  %851 = vrot.lane.b32.xlu0 %v848, 27
  %v852 = vpop.permute.xlu0 %851
  %v853 = vrot.slane %v850, 4
  %v854 = vrot.slane %v852, 4
  %v855 = vsel %vm548, %v853, %v854
  %vm856 = vcmask 220160
  %v857 = vsel %vm856, %v850, %v855
  %v858 = vsel %vm856, %v852, %v854
  %861 = vst [vmem:[#allocation3 + $0x30] sm:$0xcc] %v857
  %862 = vst [vmem:[#allocation3 + $0x38] sm:$0xc] %v858
  %v863 = vld [vmem:[%s557] sm:$0xff]
  %v865 = vcombine.low %v863, %v863
  %v867 = vunpack.c.l.s4 1983009808
  %v868 = vunpack.c.0.s8 %v867
  %v869 = vlaneseq
  %v870 = vshrl.u32 %v869, 7
  %v871 = vsub.s32 %v868, %v870
  %v872 = vrot.slane %v865, %v871
  %v874 = vunpack.c.l.s4 1983009808
  %v875 = vunpack.c.0.s8 %v874
  %v876 = vlaneseq
  %v877 = vshrl.u32 %v876, 7
  %v878 = vsub.s32 %v875, %v877
  %v879 = vrot.slane %v863, %v878
  %880 = vrot.lane.b32.xlu0 %v872, 27
  %v881 = vpop.permute.xlu0 %880
  %882 = vrot.lane.b32.xlu0 %v879, 27
  %v883 = vpop.permute.xlu0 %882
  %v884 = vrot.slane %v881, 4
  %v885 = vrot.slane %v883, 4
  %v886 = vsel %vm548, %v884, %v885
  %v887 = vsel %vm856, %v881, %v886
  %v888 = vsel %vm856, %v883, %v885
  %891 = vst [vmem:[#allocation3 + $0x3c] sm:$0xcc] %v887
  %892 = vst [vmem:[#allocation3 + $0x44] sm:$0xc] %v888
  %v893 = vld [vmem:[#allocation2] sm:$0xff]
  %v895 = vcombine.high %v893, %v893
  %v897 = vunpack.c.l.s4 1983009808
  %v898 = vunpack.c.0.s8 %v897
  %v899 = vlaneseq
  %v900 = vshrl.u32 %v899, 7
  %v901 = vsub.s32 %v898, %v900
  %v902 = vrot.slane %v893, %v901
  %v904 = vunpack.c.l.s4 1983009808
  %v905 = vunpack.c.0.s8 %v904
  %v906 = vlaneseq
  %v907 = vshrl.u32 %v906, 7
  %v908 = vsub.s32 %v905, %v907
  %v909 = vrot.slane %v895, %v908
  %910 = vrot.lane.b32.xlu0 %v902, 5
  %v911 = vpop.permute.xlu0 %910
  %912 = vrot.lane.b32.xlu0 %v909, 5
  %v913 = vpop.permute.xlu0 %912
  %v914 = vrot.slane %v911, 4
  %v915 = vrot.slane %v913, 4
  %v916 = vsel %vm548, %v914, %v915
  %vm917 = vcmask 39936
  %v918 = vsel %vm917, %v911, %v916
  %v919 = vsel %vm917, %v913, %v915
  %922 = vst [vmem:[#allocation3 + $0x48] sm:$0x33] %v918
  %923 = vst [vmem:[#allocation3 + $0x50] sm:$0x3] %v919
  %v924 = vld [vmem:[%s557] sm:$0xff]
  %v926 = vcombine.high %v924, %v924
  %v928 = vunpack.c.l.s4 1983009808
  %v929 = vunpack.c.0.s8 %v928
  %v930 = vlaneseq
  %v931 = vshrl.u32 %v930, 7
  %v932 = vsub.s32 %v929, %v931
  %v933 = vrot.slane %v924, %v932
  %v935 = vunpack.c.l.s4 1983009808
  %v936 = vunpack.c.0.s8 %v935
  %v937 = vlaneseq
  %v938 = vshrl.u32 %v937, 7
  %v939 = vsub.s32 %v936, %v938
  %v940 = vrot.slane %v926, %v939
  %941 = vrot.lane.b32.xlu0 %v933, 5
  %v942 = vpop.permute.xlu0 %941
  %943 = vrot.lane.b32.xlu0 %v940, 5
  %v944 = vpop.permute.xlu0 %943
  %v945 = vrot.slane %v942, 4
  %v946 = vrot.slane %v944, 4
  %v947 = vsel %vm548, %v945, %v946
  %v948 = vsel %vm917, %v942, %v947
  %v949 = vsel %vm917, %v944, %v946
  %952 = vst [vmem:[#allocation3 + $0x54] sm:$0x33] %v948
  %953 = vst [vmem:[#allocation3 + $0x5c] sm:$0x3] %v949
  %v954 = vld [vmem:[#allocation2] sm:$0xff]
  %v956 = vcombine.low %v954, %v954
  %v958 = vunpack.c.l.s4 1983009808
  %v959 = vunpack.c.0.s8 %v958
  %v960 = vlaneseq
  %v961 = vshrl.u32 %v960, 7
  %v962 = vsub.s32 %v959, %v961
  %v963 = vrot.slane %v956, %v962
  %v965 = vunpack.c.l.s4 1983009808
  %v966 = vunpack.c.0.s8 %v965
  %v967 = vlaneseq
  %v968 = vshrl.u32 %v967, 7
  %v969 = vsub.s32 %v966, %v968
  %v970 = vrot.slane %v954, %v969
  %971 = vrot.lane.b32.xlu0 %v963, 4
  %v972 = vpop.permute.xlu0 %971
  %973 = vrot.lane.b32.xlu0 %v970, 4
  %v974 = vpop.permute.xlu0 %973
  %v975 = vrot.slane %v972, 4
  %v976 = vrot.slane %v974, 4
  %v977 = vsel %vm548, %v975, %v976
  %vm978 = vcmask 31744
  %v979 = vsel %vm978, %v972, %v977
  %v980 = vsel %vm978, %v974, %v976
  %983 = vst [vmem:[#allocation3 + $0x48] sm:$0xcc] %v979
  %984 = vst [vmem:[#allocation3 + $0x50] sm:$0xc] %v980
  %v985 = vld [vmem:[%s557] sm:$0xff]
  %v987 = vcombine.low %v985, %v985
  %v989 = vunpack.c.l.s4 1983009808
  %v990 = vunpack.c.0.s8 %v989
  %v991 = vlaneseq
  %v992 = vshrl.u32 %v991, 7
  %v993 = vsub.s32 %v990, %v992
  %v994 = vrot.slane %v987, %v993
  %v996 = vunpack.c.l.s4 1983009808
  %v997 = vunpack.c.0.s8 %v996
  %v998 = vlaneseq
  %v999 = vshrl.u32 %v998, 7
  %v1000 = vsub.s32 %v997, %v999
  %v1001 = vrot.slane %v985, %v1000
  %1002 = vrot.lane.b32.xlu0 %v994, 4
  %v1003 = vpop.permute.xlu0 %1002
  %1004 = vrot.lane.b32.xlu0 %v1001, 4
  %v1005 = vpop.permute.xlu0 %1004
  %v1006 = vrot.slane %v1003, 4
  %v1007 = vrot.slane %v1005, 4
  %v1008 = vsel %vm548, %v1006, %v1007
  %v1009 = vsel %vm978, %v1003, %v1008
  %v1010 = vsel %vm978, %v1005, %v1007
  %1013 = vst [vmem:[#allocation3 + $0x54] sm:$0xcc] %v1009
  %1014 = vst [vmem:[#allocation3 + $0x5c] sm:$0xc] %v1010
  %v1015 = vld [vmem:[#allocation2] sm:$0xff]
  %v1017 = vcombine.high %v1015, %v1015
  %v1019 = vunpack.c.l.s4 1983009808
  %v1020 = vunpack.c.0.s8 %v1019
  %v1021 = vlaneseq
  %v1022 = vshrl.u32 %v1021, 7
  %v1023 = vsub.s32 %v1020, %v1022
  %v1024 = vrot.slane %v1015, %v1023
  %v1026 = vunpack.c.l.s4 1983009808
  %v1027 = vunpack.c.0.s8 %v1026
  %v1028 = vlaneseq
  %v1029 = vshrl.u32 %v1028, 7
  %v1030 = vsub.s32 %v1027, %v1029
  %v1031 = vrot.slane %v1017, %v1030
  %1032 = vrot.lane.b32.xlu0 %v1024, 3
  %v1033 = vpop.permute.xlu0 %1032
  %1034 = vrot.lane.b32.xlu0 %v1031, 3
  %v1035 = vpop.permute.xlu0 %1034
  %v1036 = vrot.slane %v1033, 4
  %v1037 = vrot.slane %v1035, 4
  %v1038 = vsel %vm548, %v1036, %v1037
  %vm1039 = vcmask 23552
  %v1040 = vsel %vm1039, %v1033, %v1038
  %v1041 = vsel %vm1039, %v1035, %v1037
  %1044 = vst [vmem:[#allocation3 + $0x60] sm:$0x33] %v1040
  %1045 = vst [vmem:[#allocation3 + $0x68] sm:$0x3] %v1041
  %v1046 = vld [vmem:[%s557] sm:$0xff]
  %v1048 = vcombine.high %v1046, %v1046
  %v1050 = vunpack.c.l.s4 1983009808
  %v1051 = vunpack.c.0.s8 %v1050
  %v1052 = vlaneseq
  %v1053 = vshrl.u32 %v1052, 7
  %v1054 = vsub.s32 %v1051, %v1053
  %v1055 = vrot.slane %v1046, %v1054
  %v1057 = vunpack.c.l.s4 1983009808
  %v1058 = vunpack.c.0.s8 %v1057
  %v1059 = vlaneseq
  %v1060 = vshrl.u32 %v1059, 7
  %v1061 = vsub.s32 %v1058, %v1060
  %v1062 = vrot.slane %v1048, %v1061
  %1063 = vrot.lane.b32.xlu0 %v1055, 3
  %v1064 = vpop.permute.xlu0 %1063
  %1065 = vrot.lane.b32.xlu0 %v1062, 3
  %v1066 = vpop.permute.xlu0 %1065
  %v1067 = vrot.slane %v1064, 4
  %v1068 = vrot.slane %v1066, 4
  %v1069 = vsel %vm548, %v1067, %v1068
  %v1070 = vsel %vm1039, %v1064, %v1069
  %v1071 = vsel %vm1039, %v1066, %v1068
  %1074 = vst [vmem:[#allocation3 + $0x6c] sm:$0x33] %v1070
  %1075 = vst [vmem:[#allocation3 + $0x74] sm:$0x3] %v1071
  %v1076 = vld [vmem:[%s1] sm:$0xf]
  %v1077 = vld [vmem:[#allocation3] sm:$0xff]
  %v1078 = vld [vmem:[#allocation3 + $0x8] sm:$0xff]
  %v1079 = vld [vmem:[#allocation3 + $0x10] sm:$0xff]
  %v1080 = vld [vmem:[#allocation3 + $0x18] sm:$0xff]
  %v1081 = vld [vmem:[#allocation3 + $0x20] sm:$0xff]
  %v1082 = vld [vmem:[#allocation3 + $0x28] sm:$0xff]
  %v1083 = vld [vmem:[#allocation3 + $0x30] sm:$0xff]
  %v1084 = vld [vmem:[#allocation3 + $0x38] sm:$0xff]
  %v1085 = vld [vmem:[#allocation3 + $0x40] sm:$0xff]
  %v1086 = vld [vmem:[#allocation3 + $0x48] sm:$0xff]
  %v1087 = vld [vmem:[#allocation3 + $0x50] sm:$0xff]
  %v1088 = vld [vmem:[#allocation3 + $0x58] sm:$0xff]
  %v1089 = vld [vmem:[#allocation3 + $0x60] sm:$0xff]
  %v1090 = vld [vmem:[#allocation3 + $0x68] sm:$0xff]
  %v1091 = vld [vmem:[#allocation3 + $0x70] sm:$0xff]
  %v1092 = vld [vmem:[#allocation3 + $0x78] sm:$0xff]
  %v1093 = vld [vmem:[#allocation3 + $0x80] sm:$0xff]
  %v1094 = vld [vmem:[#allocation3 + $0x88] sm:$0xff]
  %v1095 = vld [vmem:[#allocation2] sm:$0xff]
  %v1097 = vcombine.high %v1095, %v1095
  %v1099 = vunpack.c.l.s4 1983009808
  %v1100 = vunpack.c.0.s8 %v1099
  %v1101 = vlaneseq
  %v1102 = vshrl.u32 %v1101, 7
  %v1103 = vsub.s32 %v1100, %v1102
  %v1104 = vrot.slane %v1095, %v1103
  %v1106 = vunpack.c.l.s4 1983009808
  %v1107 = vunpack.c.0.s8 %v1106
  %v1108 = vlaneseq
  %v1109 = vshrl.u32 %v1108, 7
  %v1110 = vsub.s32 %v1107, %v1109
  %v1111 = vrot.slane %v1097, %v1110
  %1112 = vrot.lane.b32.xlu0 %v1104, 78
  %v1113 = vpop.permute.xlu0 %1112
  %1114 = vrot.lane.b32.xlu0 %v1111, 78
  %v1115 = vpop.permute.xlu0 %1114
  %v1116 = vrot.slane %v1113, 4
  %v1117 = vrot.slane %v1115, 4
  %v1118 = vsel %vm548, %v1116, %v1117
  %vm1119 = vcmask 637952
  %v1120 = vsel %vm1119, %v1113, %v1118
  %v1121 = vsel %vm1119, %v1115, %v1117
  %1124 = vst [vmem:[#allocation3] sm:$0x33] %v1120
  %1125 = vst [vmem:[#allocation3 + $0x8] sm:$0x3] %v1121
  %v1126 = vld [vmem:[%s557] sm:$0xff]
  %v1128 = vcombine.high %v1126, %v1126
  %v1130 = vunpack.c.l.s4 1983009808
  %v1131 = vunpack.c.0.s8 %v1130
  %v1132 = vlaneseq
  %v1133 = vshrl.u32 %v1132, 7
  %v1134 = vsub.s32 %v1131, %v1133
  %v1135 = vrot.slane %v1126, %v1134
  %v1137 = vunpack.c.l.s4 1983009808
  %v1138 = vunpack.c.0.s8 %v1137
  %v1139 = vlaneseq
  %v1140 = vshrl.u32 %v1139, 7
  %v1141 = vsub.s32 %v1138, %v1140
  %v1142 = vrot.slane %v1128, %v1141
  %1143 = vrot.lane.b32.xlu0 %v1135, 78
  %v1144 = vpop.permute.xlu0 %1143
  %1145 = vrot.lane.b32.xlu0 %v1142, 78
  %v1146 = vpop.permute.xlu0 %1145
  %v1147 = vrot.slane %v1144, 4
  %v1148 = vrot.slane %v1146, 4
  %v1149 = vsel %vm548, %v1147, %v1148
  %v1150 = vsel %vm1119, %v1144, %v1149
  %v1151 = vsel %vm1119, %v1146, %v1148
  %1154 = vst [vmem:[#allocation3 + $0xc] sm:$0x33] %v1150
  %1155 = vst [vmem:[#allocation3 + $0x14] sm:$0x3] %v1151
  %v1156 = vld [vmem:[#allocation2] sm:$0xff]
  %v1158 = vcombine.low %v1156, %v1156
  %v1160 = vunpack.c.l.s4 1983009808
  %v1161 = vunpack.c.0.s8 %v1160
  %v1162 = vlaneseq
  %v1163 = vshrl.u32 %v1162, 7
  %v1164 = vsub.s32 %v1161, %v1163
  %v1165 = vrot.slane %v1158, %v1164
  %v1167 = vunpack.c.l.s4 1983009808
  %v1168 = vunpack.c.0.s8 %v1167
  %v1169 = vlaneseq
  %v1170 = vshrl.u32 %v1169, 7
  %v1171 = vsub.s32 %v1168, %v1170
  %v1172 = vrot.slane %v1156, %v1171
  %1173 = vrot.lane.b32.xlu0 %v1165, 76
  %v1174 = vpop.permute.xlu0 %1173
  %1175 = vrot.lane.b32.xlu0 %v1172, 76
  %v1176 = vpop.permute.xlu0 %1175
  %v1177 = vrot.slane %v1174, 4
  %v1178 = vrot.slane %v1176, 4
  %v1179 = vsel %vm548, %v1177, %v1178
  %vm1180 = vcmask 621568
  %v1181 = vsel %vm1180, %v1174, %v1179
  %v1182 = vsel %vm1180, %v1176, %v1178
  %1185 = vst [vmem:[#allocation3] sm:$0xcc] %v1181
  %1186 = vst [vmem:[#allocation3 + $0x8] sm:$0xc] %v1182
  %v1187 = vld [vmem:[%s557] sm:$0xff]
  %v1189 = vcombine.low %v1187, %v1187
  %v1191 = vunpack.c.l.s4 1983009808
  %v1192 = vunpack.c.0.s8 %v1191
  %v1193 = vlaneseq
  %v1194 = vshrl.u32 %v1193, 7
  %v1195 = vsub.s32 %v1192, %v1194
  %v1196 = vrot.slane %v1189, %v1195
  %v1198 = vunpack.c.l.s4 1983009808
  %v1199 = vunpack.c.0.s8 %v1198
  %v1200 = vlaneseq
  %v1201 = vshrl.u32 %v1200, 7
  %v1202 = vsub.s32 %v1199, %v1201
  %v1203 = vrot.slane %v1187, %v1202
  %1204 = vrot.lane.b32.xlu0 %v1196, 76
  %v1205 = vpop.permute.xlu0 %1204
  %1206 = vrot.lane.b32.xlu0 %v1203, 76
  %v1207 = vpop.permute.xlu0 %1206
  %v1208 = vrot.slane %v1205, 4
  %v1209 = vrot.slane %v1207, 4
  %v1210 = vsel %vm548, %v1208, %v1209
  %v1211 = vsel %vm1180, %v1205, %v1210
  %v1212 = vsel %vm1180, %v1207, %v1209
  %1215 = vst [vmem:[#allocation3 + $0xc] sm:$0xcc] %v1211
  %1216 = vst [vmem:[#allocation3 + $0x14] sm:$0xc] %v1212
  %v1217 = vld [vmem:[#allocation2] sm:$0xff]
  %v1219 = vcombine.high %v1217, %v1217
  %v1221 = vunpack.c.l.s4 1983009808
  %v1222 = vunpack.c.0.s8 %v1221
  %v1223 = vlaneseq
  %v1224 = vshrl.u32 %v1223, 7
  %v1225 = vsub.s32 %v1222, %v1224
  %v1226 = vrot.slane %v1217, %v1225
  %v1228 = vunpack.c.l.s4 1983009808
  %v1229 = vunpack.c.0.s8 %v1228
  %v1230 = vlaneseq
  %v1231 = vshrl.u32 %v1230, 7
  %v1232 = vsub.s32 %v1229, %v1231
  %v1233 = vrot.slane %v1219, %v1232
  %1234 = vrot.lane.b32.xlu0 %v1226, 74
  %v1235 = vpop.permute.xlu0 %1234
  %1236 = vrot.lane.b32.xlu0 %v1233, 74
  %v1237 = vpop.permute.xlu0 %1236
  %v1238 = vrot.slane %v1235, 4
  %v1239 = vrot.slane %v1237, 4
  %v1240 = vsel %vm548, %v1238, %v1239
  %vm1241 = vcmask 605184
  %v1242 = vsel %vm1241, %v1235, %v1240
  %v1243 = vsel %vm1241, %v1237, %v1239
  %1246 = vst [vmem:[#allocation3 + $0x18] sm:$0x33] %v1242
  %1247 = vst [vmem:[#allocation3 + $0x20] sm:$0x3] %v1243
  %v1248 = vld [vmem:[%s557] sm:$0xff]
  %v1250 = vcombine.high %v1248, %v1248
  %v1252 = vunpack.c.l.s4 1983009808
  %v1253 = vunpack.c.0.s8 %v1252
  %v1254 = vlaneseq
  %v1255 = vshrl.u32 %v1254, 7
  %v1256 = vsub.s32 %v1253, %v1255
  %v1257 = vrot.slane %v1248, %v1256
  %v1259 = vunpack.c.l.s4 1983009808
  %v1260 = vunpack.c.0.s8 %v1259
  %v1261 = vlaneseq
  %v1262 = vshrl.u32 %v1261, 7
  %v1263 = vsub.s32 %v1260, %v1262
  %v1264 = vrot.slane %v1250, %v1263
  %1265 = vrot.lane.b32.xlu0 %v1257, 74
  %v1266 = vpop.permute.xlu0 %1265
  %1267 = vrot.lane.b32.xlu0 %v1264, 74
  %v1268 = vpop.permute.xlu0 %1267
  %v1269 = vrot.slane %v1266, 4
  %v1270 = vrot.slane %v1268, 4
  %v1271 = vsel %vm548, %v1269, %v1270
  %v1272 = vsel %vm1241, %v1266, %v1271
  %v1273 = vsel %vm1241, %v1268, %v1270
  %1276 = vst [vmem:[#allocation3 + $0x24] sm:$0x33] %v1272
  %1277 = vst [vmem:[#allocation3 + $0x2c] sm:$0x3] %v1273
  %v1278 = vld [vmem:[#allocation2] sm:$0xff]
  %v1280 = vcombine.low %v1278, %v1278
  %v1282 = vunpack.c.l.s4 1983009808
  %v1283 = vunpack.c.0.s8 %v1282
  %v1284 = vlaneseq
  %v1285 = vshrl.u32 %v1284, 7
  %v1286 = vsub.s32 %v1283, %v1285
  %v1287 = vrot.slane %v1280, %v1286
  %v1289 = vunpack.c.l.s4 1983009808
  %v1290 = vunpack.c.0.s8 %v1289
  %v1291 = vlaneseq
  %v1292 = vshrl.u32 %v1291, 7
  %v1293 = vsub.s32 %v1290, %v1292
  %v1294 = vrot.slane %v1278, %v1293
  %1295 = vrot.lane.b32.xlu0 %v1287, 30
  %v1296 = vpop.permute.xlu0 %1295
  %1297 = vrot.lane.b32.xlu0 %v1294, 30
  %v1298 = vpop.permute.xlu0 %1297
  %v1299 = vrot.slane %v1296, 4
  %v1300 = vrot.slane %v1298, 4
  %v1301 = vsel %vm548, %v1299, %v1300
  %vm1302 = vcmask 244736
  %v1303 = vsel %vm1302, %v1296, %v1301
  %v1304 = vsel %vm1302, %v1298, %v1300
  %1307 = vst [vmem:[#allocation3 + $0x18] sm:$0xcc] %v1303
  %1308 = vst [vmem:[#allocation3 + $0x20] sm:$0xc] %v1304
  %v1309 = vld [vmem:[%s557] sm:$0xff]
  %v1311 = vcombine.low %v1309, %v1309
  %v1313 = vunpack.c.l.s4 1983009808
  %v1314 = vunpack.c.0.s8 %v1313
  %v1315 = vlaneseq
  %v1316 = vshrl.u32 %v1315, 7
  %v1317 = vsub.s32 %v1314, %v1316
  %v1318 = vrot.slane %v1311, %v1317
  %v1320 = vunpack.c.l.s4 1983009808
  %v1321 = vunpack.c.0.s8 %v1320
  %v1322 = vlaneseq
  %v1323 = vshrl.u32 %v1322, 7
  %v1324 = vsub.s32 %v1321, %v1323
  %v1325 = vrot.slane %v1309, %v1324
  %1326 = vrot.lane.b32.xlu0 %v1318, 30
  %v1327 = vpop.permute.xlu0 %1326
  %1328 = vrot.lane.b32.xlu0 %v1325, 30
  %v1329 = vpop.permute.xlu0 %1328
  %v1330 = vrot.slane %v1327, 4
  %v1331 = vrot.slane %v1329, 4
  %v1332 = vsel %vm548, %v1330, %v1331
  %v1333 = vsel %vm1302, %v1327, %v1332
  %v1334 = vsel %vm1302, %v1329, %v1331
  %1337 = vst [vmem:[#allocation3 + $0x24] sm:$0xcc] %v1333
  %1338 = vst [vmem:[#allocation3 + $0x2c] sm:$0xc] %v1334
  %v1339 = vld [vmem:[#allocation2] sm:$0xff]
  %v1341 = vcombine.high %v1339, %v1339
  %v1343 = vunpack.c.l.s4 1983009808
  %v1344 = vunpack.c.0.s8 %v1343
  %v1345 = vlaneseq
  %v1346 = vshrl.u32 %v1345, 7
  %v1347 = vsub.s32 %v1344, %v1346
  %v1348 = vrot.slane %v1339, %v1347
  %v1350 = vunpack.c.l.s4 1983009808
  %v1351 = vunpack.c.0.s8 %v1350
  %v1352 = vlaneseq
  %v1353 = vshrl.u32 %v1352, 7
  %v1354 = vsub.s32 %v1351, %v1353
  %v1355 = vrot.slane %v1341, %v1354
  %1356 = vrot.lane.b32.xlu0 %v1348, 28
  %v1357 = vpop.permute.xlu0 %1356
  %1358 = vrot.lane.b32.xlu0 %v1355, 28
  %v1359 = vpop.permute.xlu0 %1358
  %v1360 = vrot.slane %v1357, 4
  %v1361 = vrot.slane %v1359, 4
  %v1362 = vsel %vm548, %v1360, %v1361
  %v1363 = vsel %vm795, %v1357, %v1362
  %v1364 = vsel %vm795, %v1359, %v1361
  %1367 = vst [vmem:[#allocation3 + $0x30] sm:$0x33] %v1363
  %1368 = vst [vmem:[#allocation3 + $0x38] sm:$0x3] %v1364
  %v1369 = vld [vmem:[%s557] sm:$0xff]
  %v1371 = vcombine.high %v1369, %v1369
  %v1373 = vunpack.c.l.s4 1983009808
  %v1374 = vunpack.c.0.s8 %v1373
  %v1375 = vlaneseq
  %v1376 = vshrl.u32 %v1375, 7
  %v1377 = vsub.s32 %v1374, %v1376
  %v1378 = vrot.slane %v1369, %v1377
  %v1380 = vunpack.c.l.s4 1983009808
  %v1381 = vunpack.c.0.s8 %v1380
  %v1382 = vlaneseq
  %v1383 = vshrl.u32 %v1382, 7
  %v1384 = vsub.s32 %v1381, %v1383
  %v1385 = vrot.slane %v1371, %v1384
  %1386 = vrot.lane.b32.xlu0 %v1378, 28
  %v1387 = vpop.permute.xlu0 %1386
  %1388 = vrot.lane.b32.xlu0 %v1385, 28
  %v1389 = vpop.permute.xlu0 %1388
  %v1390 = vrot.slane %v1387, 4
  %v1391 = vrot.slane %v1389, 4
  %v1392 = vsel %vm548, %v1390, %v1391
  %v1393 = vsel %vm795, %v1387, %v1392
  %v1394 = vsel %vm795, %v1389, %v1391
  %1397 = vst [vmem:[#allocation3 + $0x3c] sm:$0x33] %v1393
  %1398 = vst [vmem:[#allocation3 + $0x44] sm:$0x3] %v1394
  %v1399 = vld [vmem:[#allocation2] sm:$0xff]
  %v1401 = vcombine.low %v1399, %v1399
  %v1403 = vunpack.c.l.s4 1983009808
  %v1404 = vunpack.c.0.s8 %v1403
  %v1405 = vlaneseq
  %v1406 = vshrl.u32 %v1405, 7
  %v1407 = vsub.s32 %v1404, %v1406
  %v1408 = vrot.slane %v1401, %v1407
  %v1410 = vunpack.c.l.s4 1983009808
  %v1411 = vunpack.c.0.s8 %v1410
  %v1412 = vlaneseq
  %v1413 = vshrl.u32 %v1412, 7
  %v1414 = vsub.s32 %v1411, %v1413
  %v1415 = vrot.slane %v1399, %v1414
  %1416 = vrot.lane.b32.xlu0 %v1408, 26
  %v1417 = vpop.permute.xlu0 %1416
  %1418 = vrot.lane.b32.xlu0 %v1415, 26
  %v1419 = vpop.permute.xlu0 %1418
  %v1420 = vrot.slane %v1417, 4
  %v1421 = vrot.slane %v1419, 4
  %v1422 = vsel %vm548, %v1420, %v1421
  %vm1423 = vcmask 211968
  %v1424 = vsel %vm1423, %v1417, %v1422
  %v1425 = vsel %vm1423, %v1419, %v1421
  %1428 = vst [vmem:[#allocation3 + $0x30] sm:$0xcc] %v1424
  %1429 = vst [vmem:[#allocation3 + $0x38] sm:$0xc] %v1425
  %v1430 = vld [vmem:[%s557] sm:$0xff]
  %v1432 = vcombine.low %v1430, %v1430
  %v1434 = vunpack.c.l.s4 1983009808
  %v1435 = vunpack.c.0.s8 %v1434
  %v1436 = vlaneseq
  %v1437 = vshrl.u32 %v1436, 7
  %v1438 = vsub.s32 %v1435, %v1437
  %v1439 = vrot.slane %v1432, %v1438
  %v1441 = vunpack.c.l.s4 1983009808
  %v1442 = vunpack.c.0.s8 %v1441
  %v1443 = vlaneseq
  %v1444 = vshrl.u32 %v1443, 7
  %v1445 = vsub.s32 %v1442, %v1444
  %v1446 = vrot.slane %v1430, %v1445
  %1447 = vrot.lane.b32.xlu0 %v1439, 26
  %v1448 = vpop.permute.xlu0 %1447
  %1449 = vrot.lane.b32.xlu0 %v1446, 26
  %v1450 = vpop.permute.xlu0 %1449
  %v1451 = vrot.slane %v1448, 4
  %v1452 = vrot.slane %v1450, 4
  %v1453 = vsel %vm548, %v1451, %v1452
  %v1454 = vsel %vm1423, %v1448, %v1453
  %v1455 = vsel %vm1423, %v1450, %v1452
  %1458 = vst [vmem:[#allocation3 + $0x3c] sm:$0xcc] %v1454
  %1459 = vst [vmem:[#allocation3 + $0x44] sm:$0xc] %v1455
  %v1460 = vld [vmem:[#allocation2 + $0x2] sm:$0xff]
  %v1462 = vcombine.high %v1460, %v1460
  %v1464 = vunpack.c.l.s4 1983009808
  %v1465 = vunpack.c.0.s8 %v1464
  %v1466 = vlaneseq
  %v1467 = vshrl.u32 %v1466, 7
  %v1468 = vsub.s32 %v1465, %v1467
  %v1469 = vrot.slane %v1460, %v1468
  %v1471 = vunpack.c.l.s4 1983009808
  %v1472 = vunpack.c.0.s8 %v1471
  %v1473 = vlaneseq
  %v1474 = vshrl.u32 %v1473, 7
  %v1475 = vsub.s32 %v1472, %v1474
  %v1476 = vrot.slane %v1462, %v1475
  %1477 = vrot.lane.b32.xlu0 %v1469, 110
  %v1478 = vpop.permute.xlu0 %1477
  %1479 = vrot.lane.b32.xlu0 %v1476, 110
  %v1480 = vpop.permute.xlu0 %1479
  %v1481 = vrot.slane %v1478, 4
  %v1482 = vrot.slane %v1480, 4
  %v1483 = vsel %vm548, %v1481, %v1482
  %vm1484 = vcmask 900096
  %v1485 = vsel %vm1484, %v1478, %v1483
  %v1486 = vsel %vm1484, %v1480, %v1482
  %1489 = vst [vmem:[#allocation3 + $0x48] sm:$0x33] %v1485
  %1490 = vst [vmem:[#allocation3 + $0x50] sm:$0x3] %v1486
  %v1491 = vld [vmem:[%s557 + $0x2] sm:$0xff]
  %v1493 = vcombine.high %v1491, %v1491
  %v1495 = vunpack.c.l.s4 1983009808
  %v1496 = vunpack.c.0.s8 %v1495
  %v1497 = vlaneseq
  %v1498 = vshrl.u32 %v1497, 7
  %v1499 = vsub.s32 %v1496, %v1498
  %v1500 = vrot.slane %v1491, %v1499
  %v1502 = vunpack.c.l.s4 1983009808
  %v1503 = vunpack.c.0.s8 %v1502
  %v1504 = vlaneseq
  %v1505 = vshrl.u32 %v1504, 7
  %v1506 = vsub.s32 %v1503, %v1505
  %v1507 = vrot.slane %v1493, %v1506
  %1508 = vrot.lane.b32.xlu0 %v1500, 110
  %v1509 = vpop.permute.xlu0 %1508
  %1510 = vrot.lane.b32.xlu0 %v1507, 110
  %v1511 = vpop.permute.xlu0 %1510
  %v1512 = vrot.slane %v1509, 4
  %v1513 = vrot.slane %v1511, 4
  %v1514 = vsel %vm548, %v1512, %v1513
  %v1515 = vsel %vm1484, %v1509, %v1514
  %v1516 = vsel %vm1484, %v1511, %v1513
  %1519 = vst [vmem:[#allocation3 + $0x54] sm:$0x33] %v1515
  %1520 = vst [vmem:[#allocation3 + $0x5c] sm:$0x3] %v1516
  %v1521 = vld [vmem:[#allocation2 + $0x2] sm:$0xff]
  %v1523 = vcombine.low %v1521, %v1521
  %v1525 = vunpack.c.l.s4 1983009808
  %v1526 = vunpack.c.0.s8 %v1525
  %v1527 = vlaneseq
  %v1528 = vshrl.u32 %v1527, 7
  %v1529 = vsub.s32 %v1526, %v1528
  %v1530 = vrot.slane %v1523, %v1529
  %v1532 = vunpack.c.l.s4 1983009808
  %v1533 = vunpack.c.0.s8 %v1532
  %v1534 = vlaneseq
  %v1535 = vshrl.u32 %v1534, 7
  %v1536 = vsub.s32 %v1533, %v1535
  %v1537 = vrot.slane %v1521, %v1536
  %1538 = vrot.lane.b32.xlu0 %v1530, 108
  %v1539 = vpop.permute.xlu0 %1538
  %1540 = vrot.lane.b32.xlu0 %v1537, 108
  %v1541 = vpop.permute.xlu0 %1540
  %v1542 = vrot.slane %v1539, 4
  %v1543 = vrot.slane %v1541, 4
  %v1544 = vsel %vm548, %v1542, %v1543
  %vm1545 = vcmask 883712
  %v1546 = vsel %vm1545, %v1539, %v1544
  %v1547 = vsel %vm1545, %v1541, %v1543
  %1550 = vst [vmem:[#allocation3 + $0x48] sm:$0xcc] %v1546
  %1551 = vst [vmem:[#allocation3 + $0x50] sm:$0xc] %v1547
  %v1552 = vld [vmem:[%s557 + $0x2] sm:$0xff]
  %v1554 = vcombine.low %v1552, %v1552
  %v1556 = vunpack.c.l.s4 1983009808
  %v1557 = vunpack.c.0.s8 %v1556
  %v1558 = vlaneseq
  %v1559 = vshrl.u32 %v1558, 7
  %v1560 = vsub.s32 %v1557, %v1559
  %v1561 = vrot.slane %v1554, %v1560
  %v1563 = vunpack.c.l.s4 1983009808
  %v1564 = vunpack.c.0.s8 %v1563
  %v1565 = vlaneseq
  %v1566 = vshrl.u32 %v1565, 7
  %v1567 = vsub.s32 %v1564, %v1566
  %v1568 = vrot.slane %v1552, %v1567
  %1569 = vrot.lane.b32.xlu0 %v1561, 108
  %v1570 = vpop.permute.xlu0 %1569
  %1571 = vrot.lane.b32.xlu0 %v1568, 108
  %v1572 = vpop.permute.xlu0 %1571
  %v1573 = vrot.slane %v1570, 4
  %v1574 = vrot.slane %v1572, 4
  %v1575 = vsel %vm548, %v1573, %v1574
  %v1576 = vsel %vm1545, %v1570, %v1575
  %v1577 = vsel %vm1545, %v1572, %v1574
  %1580 = vst [vmem:[#allocation3 + $0x54] sm:$0xcc] %v1576
  %1581 = vst [vmem:[#allocation3 + $0x5c] sm:$0xc] %v1577
  %v1582 = vld [vmem:[#allocation2 + $0x2] sm:$0xff]
  %v1584 = vcombine.high %v1582, %v1582
  %v1586 = vunpack.c.l.s4 1983009808
  %v1587 = vunpack.c.0.s8 %v1586
  %v1588 = vlaneseq
  %v1589 = vshrl.u32 %v1588, 7
  %v1590 = vsub.s32 %v1587, %v1589
  %v1591 = vrot.slane %v1582, %v1590
  %v1593 = vunpack.c.l.s4 1983009808
  %v1594 = vunpack.c.0.s8 %v1593
  %v1595 = vlaneseq
  %v1596 = vshrl.u32 %v1595, 7
  %v1597 = vsub.s32 %v1594, %v1596
  %v1598 = vrot.slane %v1584, %v1597
  %1599 = vrot.lane.b32.xlu0 %v1591, 106
  %v1600 = vpop.permute.xlu0 %1599
  %1601 = vrot.lane.b32.xlu0 %v1598, 106
  %v1602 = vpop.permute.xlu0 %1601
  %v1603 = vrot.slane %v1600, 4
  %v1604 = vrot.slane %v1602, 4
  %v1605 = vsel %vm548, %v1603, %v1604
  %vm1606 = vcmask 867328
  %v1607 = vsel %vm1606, %v1600, %v1605
  %v1608 = vsel %vm1606, %v1602, %v1604
  %1611 = vst [vmem:[#allocation3 + $0x60] sm:$0x33] %v1607
  %1612 = vst [vmem:[#allocation3 + $0x68] sm:$0x3] %v1608
  %v1613 = vld [vmem:[%s557 + $0x2] sm:$0xff]
  %v1615 = vcombine.high %v1613, %v1613
  %v1617 = vunpack.c.l.s4 1983009808
  %v1618 = vunpack.c.0.s8 %v1617
  %v1619 = vlaneseq
  %v1620 = vshrl.u32 %v1619, 7
  %v1621 = vsub.s32 %v1618, %v1620
  %v1622 = vrot.slane %v1613, %v1621
  %v1624 = vunpack.c.l.s4 1983009808
  %v1625 = vunpack.c.0.s8 %v1624
  %v1626 = vlaneseq
  %v1627 = vshrl.u32 %v1626, 7
  %v1628 = vsub.s32 %v1625, %v1627
  %v1629 = vrot.slane %v1615, %v1628
  %1630 = vrot.lane.b32.xlu0 %v1622, 106
  %v1631 = vpop.permute.xlu0 %1630
  %1632 = vrot.lane.b32.xlu0 %v1629, 106
  %v1633 = vpop.permute.xlu0 %1632
  %v1634 = vrot.slane %v1631, 4
  %v1635 = vrot.slane %v1633, 4
  %v1636 = vsel %vm548, %v1634, %v1635
  %v1637 = vsel %vm1606, %v1631, %v1636
  %v1638 = vsel %vm1606, %v1633, %v1635
  %1641 = vst [vmem:[#allocation3 + $0x6c] sm:$0x33] %v1637
  %1642 = vst [vmem:[#allocation3 + $0x74] sm:$0x3] %v1638
  %s1643 = scalar_lea.vmem %s1, 4
  %v1644 = vld [vmem:[%s1643] sm:$0xf]
  %v1645 = vld [vmem:[#allocation3] sm:$0xff]
  %v1646 = vld [vmem:[#allocation3 + $0x8] sm:$0xff]
  %v1647 = vld [vmem:[#allocation3 + $0x10] sm:$0xff]
  %v1648 = vld [vmem:[#allocation3 + $0x18] sm:$0xff]
  %v1649 = vld [vmem:[#allocation3 + $0x20] sm:$0xff]
  %v1650 = vld [vmem:[#allocation3 + $0x28] sm:$0xff]
  %v1651 = vld [vmem:[#allocation3 + $0x30] sm:$0xff]
  %v1652 = vld [vmem:[#allocation3 + $0x38] sm:$0xff]
  %v1653 = vld [vmem:[#allocation3 + $0x40] sm:$0xff]
  %v1654 = vld [vmem:[#allocation3 + $0x48] sm:$0xff]
  %v1655 = vld [vmem:[#allocation3 + $0x50] sm:$0xff]
  %v1656 = vld [vmem:[#allocation3 + $0x58] sm:$0xff]
  %v1657 = vld [vmem:[#allocation3 + $0x60] sm:$0xff]
  %v1658 = vld [vmem:[#allocation3 + $0x68] sm:$0xff]
  %v1659 = vld [vmem:[#allocation3 + $0x70] sm:$0xff]
  %v1660 = vld [vmem:[#allocation3 + $0x78] sm:$0xff]
  %v1661 = vld [vmem:[#allocation3 + $0x80] sm:$0xff]
  %v1662 = vld [vmem:[#allocation3 + $0x88] sm:$0xff]
  %v1681 = vunpack.c.l.b16 %v1645
  %v1682 = vunpack.c.h.b16 %v1645
  %v1683 = vunpack.c.l.b16 %v1646
  %v1684 = vunpack.c.h.b16 %v1646
  %v1685 = vunpack.c.l.b16 %v1647
  %v1686 = vunpack.c.h.b16 %v1647
  %v1687 = vunpack.c.l.b16 %v1648
  %v1688 = vunpack.c.h.b16 %v1648
  %v1689 = vunpack.c.l.b16 %v1649
  %v1690 = vunpack.c.h.b16 %v1649
  %v1691 = vunpack.c.l.b16 %v1650
  %v1692 = vunpack.c.h.b16 %v1650
  %v1693 = vunpack.c.l.b16 %v1651
  %v1694 = vunpack.c.h.b16 %v1651
  %v1695 = vunpack.c.l.b16 %v1652
  %v1696 = vunpack.c.h.b16 %v1652
  %v1697 = vunpack.c.l.b16 %v1653
  %v1698 = vunpack.c.h.b16 %v1653
  %v1699 = vunpack.c.l.b16 %v1654
  %v1700 = vunpack.c.h.b16 %v1654
  %v1701 = vunpack.c.l.b16 %v1655
  %v1702 = vunpack.c.h.b16 %v1655
  %v1703 = vunpack.c.l.b16 %v1656
  %v1704 = vunpack.c.h.b16 %v1656
  %v1705 = vunpack.c.l.b16 %v1657
  %v1706 = vunpack.c.h.b16 %v1657
  %v1707 = vunpack.c.l.b16 %v1658
  %v1708 = vunpack.c.h.b16 %v1658
  %v1709 = vunpack.c.l.b16 %v1659
  %v1710 = vunpack.c.h.b16 %v1659
  %v1711 = vunpack.c.l.b16 %v1660
  %v1712 = vunpack.c.h.b16 %v1660
  %v1713 = vunpack.c.l.b16 %v1661
  %v1714 = vunpack.c.h.b16 %v1661
  %v1715 = vunpack.c.l.b16 %v1662
  %v1716 = vunpack.c.h.b16 %v1662
  %v1717 = vpack.c.b16 %v1687, %v1681
  %v1718 = vpack.c.b16 %v1688, %v1682
  %v1719 = vpack.c.b16 %v1689, %v1683
  %v1720 = vpack.c.b16 %v1690, %v1684
  %v1721 = vpack.c.b16 %v1691, %v1685
  %v1722 = vpack.c.b16 %v1692, %v1686
  %v1723 = vpack.c.b16 %v1699, %v1693
  %v1724 = vpack.c.b16 %v1700, %v1694
  %v1725 = vpack.c.b16 %v1701, %v1695
  %v1726 = vpack.c.b16 %v1702, %v1696
  %v1727 = vpack.c.b16 %v1703, %v1697
  %v1728 = vpack.c.b16 %v1704, %v1698
  %v1729 = vpack.c.b16 %v1711, %v1705
  %v1730 = vpack.c.b16 %v1712, %v1706
  %v1731 = vpack.c.b16 %v1713, %v1707
  %v1732 = vpack.c.b16 %v1714, %v1708
  %v1733 = vpack.c.b16 %v1715, %v1709
  %v1734 = vpack.c.b16 %v1716, %v1710
  %vm1753 = vcmask 392192
  %v1755 = vsel %vm1753, %v1644, 0
  %1757 = vmatprep.subr.bf16.mxu0 0
  %1758 = vmatpush1.bf16.msra.mxu0 0
  %1759 = vmatprep.subr.bf16.mxu0 0
  %1760 = vmatpush1.bf16.msra.mxu0 0
  %1761 = vmatprep.subr.bf16.mxu0 0
  %1762 = vmatpush1.bf16.msra.mxu0 0
  %1763 = vmatprep.subr.bf16.mxu0 0
  %1764 = vmatpush1.bf16.msra.mxu0 0
  %1765 = vmatprep.subr.bf16.mxu0 0
  %1766 = vmatpush1.bf16.msra.mxu0 0
  %1767 = vmatprep.subr.bf16.mxu0 %v1730
  %1768 = vmatpush1.bf16.msra.mxu0 %v1729
  %1769 = vmatprep.subr.bf16.mxu0 %v1724
  %1770 = vmatpush1.bf16.msra.mxu0 %v1723
  %1771 = vmatprep.subr.bf16.mxu0 %v1718
  %1772 = vmatpush1.bf16.msra.mxu0 %v1717
  %1773 = vmatprep.subr.bf16.mxu0 0
  %1774 = vmatpush2.bf16.msra.mxu0 0
  %1775 = vmatprep.subr.bf16.mxu0 0
  %1776 = vmatpush2.bf16.msra.mxu0 0
  %1777 = vmatprep.subr.bf16.mxu0 0
  %1778 = vmatpush2.bf16.msra.mxu0 0
  %1779 = vmatprep.subr.bf16.mxu0 0
  %1780 = vmatpush2.bf16.msra.mxu0 0
  %1781 = vmatprep.subr.bf16.mxu0 0
  %1782 = vmatpush2.bf16.msra.mxu0 0
  %1783 = vmatprep.subr.bf16.mxu0 0
  %1784 = vmatpush2.bf16.msra.mxu0 0
  %1785 = vmatprep.subr.bf16.mxu0 0
  %1786 = vmatpush2.bf16.msra.mxu0 0
  %1787 = vmatprep.subr.bf16.mxu0 0
  %1788 = vmatpush2.bf16.msra.mxu0 0
  %1789 = vmatprep.mubr.bf16.mxu0 0
  %1790 = vmatmul.mubr.bf16.gmra.mxu0 %v1755
  %v1791 = vpop.f32.mrf.mxu0
  %v1792 = vadd.f32 0.0, %v1791
  %v1793 = vpop.f32.mrf.mxu0
  %v1794 = vadd.f32 0.0, %v1793
  %v1795 = vpop.f32.mrf.mxu0
  %v1796 = vpop.f32.mrf.mxu0
  %1797 = vdwg.mxu0
  %1798 = vmatprep.subr.bf16.mxu0 0
  %1799 = vmatpush1.bf16.msra.mxu0 0
  %1800 = vmatprep.subr.bf16.mxu0 0
  %1801 = vmatpush1.bf16.msra.mxu0 0
  %1802 = vmatprep.subr.bf16.mxu0 0
  %1803 = vmatpush1.bf16.msra.mxu0 0
  %1804 = vmatprep.subr.bf16.mxu0 0
  %1805 = vmatpush1.bf16.msra.mxu0 0
  %1806 = vmatprep.subr.bf16.mxu0 0
  %1807 = vmatpush1.bf16.msra.mxu0 0
  %1808 = vmatprep.subr.bf16.mxu0 %v1732
  %1809 = vmatpush1.bf16.msra.mxu0 %v1731
  %1810 = vmatprep.subr.bf16.mxu0 %v1726
  %1811 = vmatpush1.bf16.msra.mxu0 %v1725
  %1812 = vmatprep.subr.bf16.mxu0 %v1720
  %1813 = vmatpush1.bf16.msra.mxu0 %v1719
  %1814 = vmatprep.subr.bf16.mxu0 0
  %1815 = vmatpush2.bf16.msra.mxu0 0
  %1816 = vmatprep.subr.bf16.mxu0 0
  %1817 = vmatpush2.bf16.msra.mxu0 0
  %1818 = vmatprep.subr.bf16.mxu0 0
  %1819 = vmatpush2.bf16.msra.mxu0 0
  %1820 = vmatprep.subr.bf16.mxu0 0
  %1821 = vmatpush2.bf16.msra.mxu0 0
  %1822 = vmatprep.subr.bf16.mxu0 0
  %1823 = vmatpush2.bf16.msra.mxu0 0
  %1824 = vmatprep.subr.bf16.mxu0 0
  %1825 = vmatpush2.bf16.msra.mxu0 0
  %1826 = vmatprep.subr.bf16.mxu0 0
  %1827 = vmatpush2.bf16.msra.mxu0 0
  %1828 = vmatprep.subr.bf16.mxu0 0
  %1829 = vmatpush2.bf16.msra.mxu0 0
  %1830 = vmatprep.mubr.bf16.mxu0 0
  %1831 = vmatmul.mubr.bf16.gmra.mxu0 %v1755
  %v1832 = vpop.f32.mrf.mxu0
  %v1833 = vadd.f32 0.0, %v1832
  %v1834 = vpop.f32.mrf.mxu0
  %v1835 = vadd.f32 0.0, %v1834
  %v1836 = vpop.f32.mrf.mxu0
  %v1837 = vpop.f32.mrf.mxu0
  %1838 = vdwg.mxu0
  %1839 = vmatprep.subr.bf16.mxu0 0
  %1840 = vmatpush1.bf16.msra.mxu0 0
  %1841 = vmatprep.subr.bf16.mxu0 0
  %1842 = vmatpush1.bf16.msra.mxu0 0
  %1843 = vmatprep.subr.bf16.mxu0 0
  %1844 = vmatpush1.bf16.msra.mxu0 0
  %1845 = vmatprep.subr.bf16.mxu0 0
  %1846 = vmatpush1.bf16.msra.mxu0 0
  %1847 = vmatprep.subr.bf16.mxu0 0
  %1848 = vmatpush1.bf16.msra.mxu0 0
  %1849 = vmatprep.subr.bf16.mxu0 %v1734
  %1850 = vmatpush1.bf16.msra.mxu0 %v1733
  %1851 = vmatprep.subr.bf16.mxu0 %v1728
  %1852 = vmatpush1.bf16.msra.mxu0 %v1727
  %1853 = vmatprep.subr.bf16.mxu0 %v1722
  %1854 = vmatpush1.bf16.msra.mxu0 %v1721
  %1855 = vmatprep.subr.bf16.mxu0 0
  %1856 = vmatpush2.bf16.msra.mxu0 0
  %1857 = vmatprep.subr.bf16.mxu0 0
  %1858 = vmatpush2.bf16.msra.mxu0 0
  %1859 = vmatprep.subr.bf16.mxu0 0
  %1860 = vmatpush2.bf16.msra.mxu0 0
  %1861 = vmatprep.subr.bf16.mxu0 0
  %1862 = vmatpush2.bf16.msra.mxu0 0
  %1863 = vmatprep.subr.bf16.mxu0 0
  %1864 = vmatpush2.bf16.msra.mxu0 0
  %1865 = vmatprep.subr.bf16.mxu0 0
  %1866 = vmatpush2.bf16.msra.mxu0 0
  %1867 = vmatprep.subr.bf16.mxu0 0
  %1868 = vmatpush2.bf16.msra.mxu0 0
  %1869 = vmatprep.subr.bf16.mxu0 0
  %1870 = vmatpush2.bf16.msra.mxu0 0
  %1871 = vmatprep.mubr.bf16.mxu0 0
  %1872 = vmatmul.mubr.bf16.gmra.mxu0 %v1755
  %v1873 = vpop.f32.mrf.mxu0
  %v1874 = vadd.f32 0.0, %v1873
  %v1875 = vpop.f32.mrf.mxu0
  %v1876 = vadd.f32 0.0, %v1875
  %v1877 = vpop.f32.mrf.mxu0
  %v1878 = vpop.f32.mrf.mxu0
  %1879 = vdwg.mxu0
  %v1898 = vunpack.c.l.b16 %v1077
  %v1899 = vunpack.c.h.b16 %v1077
  %v1900 = vunpack.c.l.b16 %v1078
  %v1901 = vunpack.c.h.b16 %v1078
  %v1902 = vunpack.c.l.b16 %v1079
  %v1903 = vunpack.c.h.b16 %v1079
  %v1904 = vunpack.c.l.b16 %v1080
  %v1905 = vunpack.c.h.b16 %v1080
  %v1906 = vunpack.c.l.b16 %v1081
  %v1907 = vunpack.c.h.b16 %v1081
  %v1908 = vunpack.c.l.b16 %v1082
  %v1909 = vunpack.c.h.b16 %v1082
  %v1910 = vunpack.c.l.b16 %v1083
  %v1911 = vunpack.c.h.b16 %v1083
  %v1912 = vunpack.c.l.b16 %v1084
  %v1913 = vunpack.c.h.b16 %v1084
  %v1914 = vunpack.c.l.b16 %v1085
  %v1915 = vunpack.c.h.b16 %v1085
  %v1916 = vunpack.c.l.b16 %v1086
  %v1917 = vunpack.c.h.b16 %v1086
  %v1918 = vunpack.c.l.b16 %v1087
  %v1919 = vunpack.c.h.b16 %v1087
  %v1920 = vunpack.c.l.b16 %v1088
  %v1921 = vunpack.c.h.b16 %v1088
  %v1922 = vunpack.c.l.b16 %v1089
  %v1923 = vunpack.c.h.b16 %v1089
  %v1924 = vunpack.c.l.b16 %v1090
  %v1925 = vunpack.c.h.b16 %v1090
  %v1926 = vunpack.c.l.b16 %v1091
  %v1927 = vunpack.c.h.b16 %v1091
  %v1928 = vunpack.c.l.b16 %v1092
  %v1929 = vunpack.c.h.b16 %v1092
  %v1930 = vunpack.c.l.b16 %v1093
  %v1931 = vunpack.c.h.b16 %v1093
  %v1932 = vunpack.c.l.b16 %v1094
  %v1933 = vunpack.c.h.b16 %v1094
  %v1934 = vpack.c.b16 %v1904, %v1898
  %v1935 = vpack.c.b16 %v1905, %v1899
  %v1936 = vpack.c.b16 %v1906, %v1900
  %v1937 = vpack.c.b16 %v1907, %v1901
  %v1938 = vpack.c.b16 %v1908, %v1902
  %v1939 = vpack.c.b16 %v1909, %v1903
  %v1940 = vpack.c.b16 %v1916, %v1910
  %v1941 = vpack.c.b16 %v1917, %v1911
  %v1942 = vpack.c.b16 %v1918, %v1912
  %v1943 = vpack.c.b16 %v1919, %v1913
  %v1944 = vpack.c.b16 %v1920, %v1914
  %v1945 = vpack.c.b16 %v1921, %v1915
  %v1946 = vpack.c.b16 %v1928, %v1922
  %v1947 = vpack.c.b16 %v1929, %v1923
  %v1948 = vpack.c.b16 %v1930, %v1924
  %v1949 = vpack.c.b16 %v1931, %v1925
  %v1950 = vpack.c.b16 %v1932, %v1926
  %v1951 = vpack.c.b16 %v1933, %v1927
  %v1971 = vsel %vm1753, %v1076, 0
  %1973 = vmatprep.subr.bf16.mxu0 0
  %1974 = vmatpush1.bf16.msra.mxu0 0
  %1975 = vmatprep.subr.bf16.mxu0 0
  %1976 = vmatpush1.bf16.msra.mxu0 0
  %1977 = vmatprep.subr.bf16.mxu0 0
  %1978 = vmatpush1.bf16.msra.mxu0 0
  %1979 = vmatprep.subr.bf16.mxu0 0
  %1980 = vmatpush1.bf16.msra.mxu0 0
  %1981 = vmatprep.subr.bf16.mxu0 0
  %1982 = vmatpush1.bf16.msra.mxu0 0
  %1983 = vmatprep.subr.bf16.mxu0 %v1947
  %1984 = vmatpush1.bf16.msra.mxu0 %v1946
  %1985 = vmatprep.subr.bf16.mxu0 %v1941
  %1986 = vmatpush1.bf16.msra.mxu0 %v1940
  %1987 = vmatprep.subr.bf16.mxu0 %v1935
  %1988 = vmatpush1.bf16.msra.mxu0 %v1934
  %1989 = vmatprep.subr.bf16.mxu0 0
  %1990 = vmatpush2.bf16.msra.mxu0 0
  %1991 = vmatprep.subr.bf16.mxu0 0
  %1992 = vmatpush2.bf16.msra.mxu0 0
  %1993 = vmatprep.subr.bf16.mxu0 0
  %1994 = vmatpush2.bf16.msra.mxu0 0
  %1995 = vmatprep.subr.bf16.mxu0 0
  %1996 = vmatpush2.bf16.msra.mxu0 0
  %1997 = vmatprep.subr.bf16.mxu0 0
  %1998 = vmatpush2.bf16.msra.mxu0 0
  %1999 = vmatprep.subr.bf16.mxu0 0
  %2000 = vmatpush2.bf16.msra.mxu0 0
  %2001 = vmatprep.subr.bf16.mxu0 0
  %2002 = vmatpush2.bf16.msra.mxu0 0
  %2003 = vmatprep.subr.bf16.mxu0 0
  %2004 = vmatpush2.bf16.msra.mxu0 0
  %2005 = vmatprep.mubr.bf16.mxu0 0
  %2006 = vmatmul.mubr.bf16.gmra.mxu0 %v1971
  %v2007 = vpop.f32.mrf.mxu0
  %v2008 = vadd.f32 %v1792, %v2007
  %v2009 = vpop.f32.mrf.mxu0
  %v2010 = vadd.f32 %v1794, %v2009
  %v2011 = vpop.f32.mrf.mxu0
  %v2012 = vpop.f32.mrf.mxu0
  %2013 = vdwg.mxu0
  %2014 = vmatprep.subr.bf16.mxu0 0
  %2015 = vmatpush1.bf16.msra.mxu0 0
  %2016 = vmatprep.subr.bf16.mxu0 0
  %2017 = vmatpush1.bf16.msra.mxu0 0
  %2018 = vmatprep.subr.bf16.mxu0 0
  %2019 = vmatpush1.bf16.msra.mxu0 0
  %2020 = vmatprep.subr.bf16.mxu0 0
  %2021 = vmatpush1.bf16.msra.mxu0 0
  %2022 = vmatprep.subr.bf16.mxu0 0
  %2023 = vmatpush1.bf16.msra.mxu0 0
  %2024 = vmatprep.subr.bf16.mxu0 %v1949
  %2025 = vmatpush1.bf16.msra.mxu0 %v1948
  %2026 = vmatprep.subr.bf16.mxu0 %v1943
  %2027 = vmatpush1.bf16.msra.mxu0 %v1942
  %2028 = vmatprep.subr.bf16.mxu0 %v1937
  %2029 = vmatpush1.bf16.msra.mxu0 %v1936
  %2030 = vmatprep.subr.bf16.mxu0 0
  %2031 = vmatpush2.bf16.msra.mxu0 0
  %2032 = vmatprep.subr.bf16.mxu0 0
  %2033 = vmatpush2.bf16.msra.mxu0 0
  %2034 = vmatprep.subr.bf16.mxu0 0
  %2035 = vmatpush2.bf16.msra.mxu0 0
  %2036 = vmatprep.subr.bf16.mxu0 0
  %2037 = vmatpush2.bf16.msra.mxu0 0
  %2038 = vmatprep.subr.bf16.mxu0 0
  %2039 = vmatpush2.bf16.msra.mxu0 0
  %2040 = vmatprep.subr.bf16.mxu0 0
  %2041 = vmatpush2.bf16.msra.mxu0 0
  %2042 = vmatprep.subr.bf16.mxu0 0
  %2043 = vmatpush2.bf16.msra.mxu0 0
  %2044 = vmatprep.subr.bf16.mxu0 0
  %2045 = vmatpush2.bf16.msra.mxu0 0
  %2046 = vmatprep.mubr.bf16.mxu0 0
  %2047 = vmatmul.mubr.bf16.gmra.mxu0 %v1971
  %v2048 = vpop.f32.mrf.mxu0
  %v2049 = vadd.f32 %v1833, %v2048
  %v2050 = vpop.f32.mrf.mxu0
  %v2051 = vadd.f32 %v1835, %v2050
  %v2052 = vpop.f32.mrf.mxu0
  %v2053 = vpop.f32.mrf.mxu0
  %2054 = vdwg.mxu0
  %2055 = vmatprep.subr.bf16.mxu0 0
  %2056 = vmatpush1.bf16.msra.mxu0 0
  %2057 = vmatprep.subr.bf16.mxu0 0
  %2058 = vmatpush1.bf16.msra.mxu0 0
  %2059 = vmatprep.subr.bf16.mxu0 0
  %2060 = vmatpush1.bf16.msra.mxu0 0
  %2061 = vmatprep.subr.bf16.mxu0 0
  %2062 = vmatpush1.bf16.msra.mxu0 0
  %2063 = vmatprep.subr.bf16.mxu0 0
  %2064 = vmatpush1.bf16.msra.mxu0 0
  %2065 = vmatprep.subr.bf16.mxu0 %v1951
  %2066 = vmatpush1.bf16.msra.mxu0 %v1950
  %2067 = vmatprep.subr.bf16.mxu0 %v1945
  %2068 = vmatpush1.bf16.msra.mxu0 %v1944
  %2069 = vmatprep.subr.bf16.mxu0 %v1939
  %2070 = vmatpush1.bf16.msra.mxu0 %v1938
  %2071 = vmatprep.subr.bf16.mxu0 0
  %2072 = vmatpush2.bf16.msra.mxu0 0
  %2073 = vmatprep.subr.bf16.mxu0 0
  %2074 = vmatpush2.bf16.msra.mxu0 0
  %2075 = vmatprep.subr.bf16.mxu0 0
  %2076 = vmatpush2.bf16.msra.mxu0 0
  %2077 = vmatprep.subr.bf16.mxu0 0
  %2078 = vmatpush2.bf16.msra.mxu0 0
  %2079 = vmatprep.subr.bf16.mxu0 0
  %2080 = vmatpush2.bf16.msra.mxu0 0
  %2081 = vmatprep.subr.bf16.mxu0 0
  %2082 = vmatpush2.bf16.msra.mxu0 0
  %2083 = vmatprep.subr.bf16.mxu0 0
  %2084 = vmatpush2.bf16.msra.mxu0 0
  %2085 = vmatprep.subr.bf16.mxu0 0
  %2086 = vmatpush2.bf16.msra.mxu0 0
  %2087 = vmatprep.mubr.bf16.mxu0 0
  %2088 = vmatmul.mubr.bf16.gmra.mxu0 %v1971
  %v2089 = vpop.f32.mrf.mxu0
  %v2090 = vadd.f32 %v1874, %v2089
  %v2091 = vpop.f32.mrf.mxu0
  %v2092 = vadd.f32 %v1876, %v2091
  %v2093 = vpop.f32.mrf.mxu0
  %v2094 = vpop.f32.mrf.mxu0
  %2095 = vdwg.mxu0
  %v2096 = vld [vmem:[#allocation2] sm:$0x3f]
  %v2098 = vcombine.high %v2096, %v2096
  %v2100 = vunpack.c.l.s4 1983009808
  %v2101 = vunpack.c.0.s8 %v2100
  %v2102 = vlaneseq
  %v2103 = vshrl.u32 %v2102, 7
  %v2104 = vsub.s32 %v2101, %v2103
  %v2105 = vrot.slane %v2096, %v2104
  %v2107 = vunpack.c.l.s4 1983009808
  %v2108 = vunpack.c.0.s8 %v2107
  %v2109 = vlaneseq
  %v2110 = vshrl.u32 %v2109, 7
  %v2111 = vsub.s32 %v2108, %v2110
  %v2112 = vrot.slane %v2098, %v2111
  %2115 = vst [vmem:[#allocation3] sm:$0x33] %v2105
  %2116 = vst [vmem:[#allocation3 + $0x8] sm:$0x3] %v2112
  %v2117 = vld [vmem:[%s557] sm:$0x3f]
  %v2119 = vcombine.high %v2117, %v2117
  %v2121 = vunpack.c.l.s4 1983009808
  %v2122 = vunpack.c.0.s8 %v2121
  %v2123 = vlaneseq
  %v2124 = vshrl.u32 %v2123, 7
  %v2125 = vsub.s32 %v2122, %v2124
  %v2126 = vrot.slane %v2117, %v2125
  %v2128 = vunpack.c.l.s4 1983009808
  %v2129 = vunpack.c.0.s8 %v2128
  %v2130 = vlaneseq
  %v2131 = vshrl.u32 %v2130, 7
  %v2132 = vsub.s32 %v2129, %v2131
  %v2133 = vrot.slane %v2119, %v2132
  %2136 = vst [vmem:[#allocation3 + $0xc] sm:$0x33] %v2126
  %2137 = vst [vmem:[#allocation3 + $0x14] sm:$0x3] %v2133
  %v2138 = vld [vmem:[#allocation2] sm:$0xff]
  %v2140 = vcombine.low %v2138, %v2138
  %v2142 = vunpack.c.l.s4 1983009808
  %v2143 = vunpack.c.0.s8 %v2142
  %v2144 = vlaneseq
  %v2145 = vshrl.u32 %v2144, 7
  %v2146 = vsub.s32 %v2143, %v2145
  %v2147 = vrot.slane %v2140, %v2146
  %v2149 = vunpack.c.l.s4 1983009808
  %v2150 = vunpack.c.0.s8 %v2149
  %v2151 = vlaneseq
  %v2152 = vshrl.u32 %v2151, 7
  %v2153 = vsub.s32 %v2150, %v2152
  %v2154 = vrot.slane %v2138, %v2153
  %2155 = vrot.lane.b32.xlu0 %v2147, 124
  %v2156 = vpop.permute.xlu0 %2155
  %2157 = vrot.lane.b32.xlu0 %v2154, 124
  %v2158 = vpop.permute.xlu0 %2157
  %v2159 = vrot.slane %v2156, 4
  %v2160 = vrot.slane %v2158, 4
  %v2161 = vsel %vm548, %v2159, %v2160
  %vm2162 = vcmask 1014784
  %v2163 = vsel %vm2162, %v2156, %v2161
  %v2164 = vsel %vm2162, %v2158, %v2160
  %2167 = vst [vmem:[#allocation3] sm:$0xcc] %v2163
  %2168 = vst [vmem:[#allocation3 + $0x8] sm:$0xc] %v2164
  %v2169 = vld [vmem:[%s557] sm:$0xff]
  %v2171 = vcombine.low %v2169, %v2169
  %v2173 = vunpack.c.l.s4 1983009808
  %v2174 = vunpack.c.0.s8 %v2173
  %v2175 = vlaneseq
  %v2176 = vshrl.u32 %v2175, 7
  %v2177 = vsub.s32 %v2174, %v2176
  %v2178 = vrot.slane %v2171, %v2177
  %v2180 = vunpack.c.l.s4 1983009808
  %v2181 = vunpack.c.0.s8 %v2180
  %v2182 = vlaneseq
  %v2183 = vshrl.u32 %v2182, 7
  %v2184 = vsub.s32 %v2181, %v2183
  %v2185 = vrot.slane %v2169, %v2184
  %2186 = vrot.lane.b32.xlu0 %v2178, 124
  %v2187 = vpop.permute.xlu0 %2186
  %2188 = vrot.lane.b32.xlu0 %v2185, 124
  %v2189 = vpop.permute.xlu0 %2188
  %v2190 = vrot.slane %v2187, 4
  %v2191 = vrot.slane %v2189, 4
  %v2192 = vsel %vm548, %v2190, %v2191
  %v2193 = vsel %vm2162, %v2187, %v2192
  %v2194 = vsel %vm2162, %v2189, %v2191
  %2197 = vst [vmem:[#allocation3 + $0xc] sm:$0xcc] %v2193
  %2198 = vst [vmem:[#allocation3 + $0x14] sm:$0xc] %v2194
  %v2199 = vld [vmem:[#allocation2] sm:$0xff]
  %v2201 = vcombine.high %v2199, %v2199
  %v2203 = vunpack.c.l.s4 1983009808
  %v2204 = vunpack.c.0.s8 %v2203
  %v2205 = vlaneseq
  %v2206 = vshrl.u32 %v2205, 7
  %v2207 = vsub.s32 %v2204, %v2206
  %v2208 = vrot.slane %v2199, %v2207
  %v2210 = vunpack.c.l.s4 1983009808
  %v2211 = vunpack.c.0.s8 %v2210
  %v2212 = vlaneseq
  %v2213 = vshrl.u32 %v2212, 7
  %v2214 = vsub.s32 %v2211, %v2213
  %v2215 = vrot.slane %v2201, %v2214
  %2216 = vrot.lane.b32.xlu0 %v2208, 120
  %v2217 = vpop.permute.xlu0 %2216
  %2218 = vrot.lane.b32.xlu0 %v2215, 120
  %v2219 = vpop.permute.xlu0 %2218
  %v2220 = vrot.slane %v2217, 4
  %v2221 = vrot.slane %v2219, 4
  %v2222 = vsel %vm548, %v2220, %v2221
  %vm2223 = vcmask 982016
  %v2224 = vsel %vm2223, %v2217, %v2222
  %v2225 = vsel %vm2223, %v2219, %v2221
  %2228 = vst [vmem:[#allocation3 + $0x18] sm:$0x33] %v2224
  %2229 = vst [vmem:[#allocation3 + $0x20] sm:$0x3] %v2225
  %v2230 = vld [vmem:[%s557] sm:$0xff]
  %v2232 = vcombine.high %v2230, %v2230
  %v2234 = vunpack.c.l.s4 1983009808
  %v2235 = vunpack.c.0.s8 %v2234
  %v2236 = vlaneseq
  %v2237 = vshrl.u32 %v2236, 7
  %v2238 = vsub.s32 %v2235, %v2237
  %v2239 = vrot.slane %v2230, %v2238
  %v2241 = vunpack.c.l.s4 1983009808
  %v2242 = vunpack.c.0.s8 %v2241
  %v2243 = vlaneseq
  %v2244 = vshrl.u32 %v2243, 7
  %v2245 = vsub.s32 %v2242, %v2244
  %v2246 = vrot.slane %v2232, %v2245
  %2247 = vrot.lane.b32.xlu0 %v2239, 120
  %v2248 = vpop.permute.xlu0 %2247
  %2249 = vrot.lane.b32.xlu0 %v2246, 120
  %v2250 = vpop.permute.xlu0 %2249
  %v2251 = vrot.slane %v2248, 4
  %v2252 = vrot.slane %v2250, 4
  %v2253 = vsel %vm548, %v2251, %v2252
  %v2254 = vsel %vm2223, %v2248, %v2253
  %v2255 = vsel %vm2223, %v2250, %v2252
  %2258 = vst [vmem:[#allocation3 + $0x24] sm:$0x33] %v2254
  %2259 = vst [vmem:[#allocation3 + $0x2c] sm:$0x3] %v2255
  %v2260 = vld [vmem:[#allocation2] sm:$0xff]
  %v2262 = vcombine.low %v2260, %v2260
  %v2264 = vunpack.c.l.s4 1983009808
  %v2265 = vunpack.c.0.s8 %v2264
  %v2266 = vlaneseq
  %v2267 = vshrl.u32 %v2266, 7
  %v2268 = vsub.s32 %v2265, %v2267
  %v2269 = vrot.slane %v2262, %v2268
  %v2271 = vunpack.c.l.s4 1983009808
  %v2272 = vunpack.c.0.s8 %v2271
  %v2273 = vlaneseq
  %v2274 = vshrl.u32 %v2273, 7
  %v2275 = vsub.s32 %v2272, %v2274
  %v2276 = vrot.slane %v2260, %v2275
  %2277 = vrot.lane.b32.xlu0 %v2269, 32
  %v2278 = vpop.permute.xlu0 %2277
  %2279 = vrot.lane.b32.xlu0 %v2276, 32
  %v2280 = vpop.permute.xlu0 %2279
  %v2281 = vrot.slane %v2278, 4
  %v2282 = vrot.slane %v2280, 4
  %v2283 = vsel %vm548, %v2281, %v2282
  %vm2284 = vcmask 261120
  %v2285 = vsel %vm2284, %v2278, %v2283
  %v2286 = vsel %vm2284, %v2280, %v2282
  %2289 = vst [vmem:[#allocation3 + $0x18] sm:$0xcc] %v2285
  %2290 = vst [vmem:[#allocation3 + $0x20] sm:$0xc] %v2286
  %v2291 = vld [vmem:[%s557] sm:$0xff]
  %v2293 = vcombine.low %v2291, %v2291
  %v2295 = vunpack.c.l.s4 1983009808
  %v2296 = vunpack.c.0.s8 %v2295
  %v2297 = vlaneseq
  %v2298 = vshrl.u32 %v2297, 7
  %v2299 = vsub.s32 %v2296, %v2298
  %v2300 = vrot.slane %v2293, %v2299
  %v2302 = vunpack.c.l.s4 1983009808
  %v2303 = vunpack.c.0.s8 %v2302
  %v2304 = vlaneseq
  %v2305 = vshrl.u32 %v2304, 7
  %v2306 = vsub.s32 %v2303, %v2305
  %v2307 = vrot.slane %v2291, %v2306
  %2308 = vrot.lane.b32.xlu0 %v2300, 32
  %v2309 = vpop.permute.xlu0 %2308
  %2310 = vrot.lane.b32.xlu0 %v2307, 32
  %v2311 = vpop.permute.xlu0 %2310
  %v2312 = vrot.slane %v2309, 4
  %v2313 = vrot.slane %v2311, 4
  %v2314 = vsel %vm548, %v2312, %v2313
  %v2315 = vsel %vm2284, %v2309, %v2314
  %v2316 = vsel %vm2284, %v2311, %v2313
  %2319 = vst [vmem:[#allocation3 + $0x24] sm:$0xcc] %v2315
  %2320 = vst [vmem:[#allocation3 + $0x2c] sm:$0xc] %v2316
  %v2321 = vld [vmem:[#allocation2] sm:$0xff]
  %v2323 = vcombine.high %v2321, %v2321
  %v2325 = vunpack.c.l.s4 1983009808
  %v2326 = vunpack.c.0.s8 %v2325
  %v2327 = vlaneseq
  %v2328 = vshrl.u32 %v2327, 7
  %v2329 = vsub.s32 %v2326, %v2328
  %v2330 = vrot.slane %v2321, %v2329
  %v2332 = vunpack.c.l.s4 1983009808
  %v2333 = vunpack.c.0.s8 %v2332
  %v2334 = vlaneseq
  %v2335 = vshrl.u32 %v2334, 7
  %v2336 = vsub.s32 %v2333, %v2335
  %v2337 = vrot.slane %v2323, %v2336
  %2338 = vrot.lane.b32.xlu0 %v2330, 28
  %v2339 = vpop.permute.xlu0 %2338
  %2340 = vrot.lane.b32.xlu0 %v2337, 28
  %v2341 = vpop.permute.xlu0 %2340
  %v2342 = vrot.slane %v2339, 4
  %v2343 = vrot.slane %v2341, 4
  %v2344 = vsel %vm548, %v2342, %v2343
  %v2345 = vsel %vm795, %v2339, %v2344
  %v2346 = vsel %vm795, %v2341, %v2343
  %2349 = vst [vmem:[#allocation3 + $0x30] sm:$0x33] %v2345
  %2350 = vst [vmem:[#allocation3 + $0x38] sm:$0x3] %v2346
  %v2351 = vld [vmem:[%s557] sm:$0xff]
  %v2353 = vcombine.high %v2351, %v2351
  %v2355 = vunpack.c.l.s4 1983009808
  %v2356 = vunpack.c.0.s8 %v2355
  %v2357 = vlaneseq
  %v2358 = vshrl.u32 %v2357, 7
  %v2359 = vsub.s32 %v2356, %v2358
  %v2360 = vrot.slane %v2351, %v2359
  %v2362 = vunpack.c.l.s4 1983009808
  %v2363 = vunpack.c.0.s8 %v2362
  %v2364 = vlaneseq
  %v2365 = vshrl.u32 %v2364, 7
  %v2366 = vsub.s32 %v2363, %v2365
  %v2367 = vrot.slane %v2353, %v2366
  %2368 = vrot.lane.b32.xlu0 %v2360, 28
  %v2369 = vpop.permute.xlu0 %2368
  %2370 = vrot.lane.b32.xlu0 %v2367, 28
  %v2371 = vpop.permute.xlu0 %2370
  %v2372 = vrot.slane %v2369, 4
  %v2373 = vrot.slane %v2371, 4
  %v2374 = vsel %vm548, %v2372, %v2373
  %v2375 = vsel %vm795, %v2369, %v2374
  %v2376 = vsel %vm795, %v2371, %v2373
  %2379 = vst [vmem:[#allocation3 + $0x3c] sm:$0x33] %v2375
  %2380 = vst [vmem:[#allocation3 + $0x44] sm:$0x3] %v2376
  %v2381 = vld [vmem:[#allocation2] sm:$0xff]
  %v2383 = vcombine.low %v2381, %v2381
  %v2385 = vunpack.c.l.s4 1983009808
  %v2386 = vunpack.c.0.s8 %v2385
  %v2387 = vlaneseq
  %v2388 = vshrl.u32 %v2387, 7
  %v2389 = vsub.s32 %v2386, %v2388
  %v2390 = vrot.slane %v2383, %v2389
  %v2392 = vunpack.c.l.s4 1983009808
  %v2393 = vunpack.c.0.s8 %v2392
  %v2394 = vlaneseq
  %v2395 = vshrl.u32 %v2394, 7
  %v2396 = vsub.s32 %v2393, %v2395
  %v2397 = vrot.slane %v2381, %v2396
  %2398 = vrot.lane.b32.xlu0 %v2390, 24
  %v2399 = vpop.permute.xlu0 %2398
  %2400 = vrot.lane.b32.xlu0 %v2397, 24
  %v2401 = vpop.permute.xlu0 %2400
  %v2402 = vrot.slane %v2399, 4
  %v2403 = vrot.slane %v2401, 4
  %v2404 = vsel %vm548, %v2402, %v2403
  %v2405 = vsel %vm219, %v2399, %v2404
  %v2406 = vsel %vm219, %v2401, %v2403
  %2409 = vst [vmem:[#allocation3 + $0x30] sm:$0xcc] %v2405
  %2410 = vst [vmem:[#allocation3 + $0x38] sm:$0xc] %v2406
  %v2411 = vld [vmem:[%s557] sm:$0xff]
  %v2413 = vcombine.low %v2411, %v2411
  %v2415 = vunpack.c.l.s4 1983009808
  %v2416 = vunpack.c.0.s8 %v2415
  %v2417 = vlaneseq
  %v2418 = vshrl.u32 %v2417, 7
  %v2419 = vsub.s32 %v2416, %v2418
  %v2420 = vrot.slane %v2413, %v2419
  %v2422 = vunpack.c.l.s4 1983009808
  %v2423 = vunpack.c.0.s8 %v2422
  %v2424 = vlaneseq
  %v2425 = vshrl.u32 %v2424, 7
  %v2426 = vsub.s32 %v2423, %v2425
  %v2427 = vrot.slane %v2411, %v2426
  %2428 = vrot.lane.b32.xlu0 %v2420, 24
  %v2429 = vpop.permute.xlu0 %2428
  %2430 = vrot.lane.b32.xlu0 %v2427, 24
  %v2431 = vpop.permute.xlu0 %2430
  %v2432 = vrot.slane %v2429, 4
  %v2433 = vrot.slane %v2431, 4
  %v2434 = vsel %vm548, %v2432, %v2433
  %v2435 = vsel %vm219, %v2429, %v2434
  %v2436 = vsel %vm219, %v2431, %v2433
  %2439 = vst [vmem:[#allocation3 + $0x3c] sm:$0xcc] %v2435
  %2440 = vst [vmem:[#allocation3 + $0x44] sm:$0xc] %v2436
  %v2441 = vld [vmem:[#allocation2 + $0x2] sm:$0xff]
  %v2443 = vcombine.high %v2441, %v2441
  %v2445 = vunpack.c.l.s4 1983009808
  %v2446 = vunpack.c.0.s8 %v2445
  %v2447 = vlaneseq
  %v2448 = vshrl.u32 %v2447, 7
  %v2449 = vsub.s32 %v2446, %v2448
  %v2450 = vrot.slane %v2441, %v2449
  %v2452 = vunpack.c.l.s4 1983009808
  %v2453 = vunpack.c.0.s8 %v2452
  %v2454 = vlaneseq
  %v2455 = vshrl.u32 %v2454, 7
  %v2456 = vsub.s32 %v2453, %v2455
  %v2457 = vrot.slane %v2443, %v2456
  %2458 = vrot.lane.b32.xlu0 %v2450, 64
  %v2459 = vpop.permute.xlu0 %2458
  %2460 = vrot.lane.b32.xlu0 %v2457, 64
  %v2461 = vpop.permute.xlu0 %2460
  %v2462 = vrot.slane %v2459, 4
  %v2463 = vrot.slane %v2461, 4
  %v2464 = vsel %vm548, %v2462, %v2463
  %vm2465 = vcmask 523264
  %v2466 = vsel %vm2465, %v2459, %v2464
  %v2467 = vsel %vm2465, %v2461, %v2463
  %2470 = vst [vmem:[#allocation3 + $0x48] sm:$0x33] %v2466
  %2471 = vst [vmem:[#allocation3 + $0x50] sm:$0x3] %v2467
  %v2472 = vld [vmem:[%s557 + $0x2] sm:$0xff]
  %v2474 = vcombine.high %v2472, %v2472
  %v2476 = vunpack.c.l.s4 1983009808
  %v2477 = vunpack.c.0.s8 %v2476
  %v2478 = vlaneseq
  %v2479 = vshrl.u32 %v2478, 7
  %v2480 = vsub.s32 %v2477, %v2479
  %v2481 = vrot.slane %v2472, %v2480
  %v2483 = vunpack.c.l.s4 1983009808
  %v2484 = vunpack.c.0.s8 %v2483
  %v2485 = vlaneseq
  %v2486 = vshrl.u32 %v2485, 7
  %v2487 = vsub.s32 %v2484, %v2486
  %v2488 = vrot.slane %v2474, %v2487
  %2489 = vrot.lane.b32.xlu0 %v2481, 64
  %v2490 = vpop.permute.xlu0 %2489
  %2491 = vrot.lane.b32.xlu0 %v2488, 64
  %v2492 = vpop.permute.xlu0 %2491
  %v2493 = vrot.slane %v2490, 4
  %v2494 = vrot.slane %v2492, 4
  %v2495 = vsel %vm548, %v2493, %v2494
  %v2496 = vsel %vm2465, %v2490, %v2495
  %v2497 = vsel %vm2465, %v2492, %v2494
  %2500 = vst [vmem:[#allocation3 + $0x54] sm:$0x33] %v2496
  %2501 = vst [vmem:[#allocation3 + $0x5c] sm:$0x3] %v2497
  %v2502 = vld [vmem:[#allocation2 + $0x2] sm:$0xff]
  %v2504 = vcombine.low %v2502, %v2502
  %v2506 = vunpack.c.l.s4 1983009808
  %v2507 = vunpack.c.0.s8 %v2506
  %v2508 = vlaneseq
  %v2509 = vshrl.u32 %v2508, 7
  %v2510 = vsub.s32 %v2507, %v2509
  %v2511 = vrot.slane %v2504, %v2510
  %v2513 = vunpack.c.l.s4 1983009808
  %v2514 = vunpack.c.0.s8 %v2513
  %v2515 = vlaneseq
  %v2516 = vshrl.u32 %v2515, 7
  %v2517 = vsub.s32 %v2514, %v2516
  %v2518 = vrot.slane %v2502, %v2517
  %2519 = vrot.lane.b32.xlu0 %v2511, 60
  %v2520 = vpop.permute.xlu0 %2519
  %2521 = vrot.lane.b32.xlu0 %v2518, 60
  %v2522 = vpop.permute.xlu0 %2521
  %v2523 = vrot.slane %v2520, 4
  %v2524 = vrot.slane %v2522, 4
  %v2525 = vsel %vm548, %v2523, %v2524
  %vm2526 = vcmask 490496
  %v2527 = vsel %vm2526, %v2520, %v2525
  %v2528 = vsel %vm2526, %v2522, %v2524
  %2531 = vst [vmem:[#allocation3 + $0x48] sm:$0xcc] %v2527
  %2532 = vst [vmem:[#allocation3 + $0x50] sm:$0xc] %v2528
  %v2533 = vld [vmem:[%s557 + $0x2] sm:$0xff]
  %v2535 = vcombine.low %v2533, %v2533
  %v2537 = vunpack.c.l.s4 1983009808
  %v2538 = vunpack.c.0.s8 %v2537
  %v2539 = vlaneseq
  %v2540 = vshrl.u32 %v2539, 7
  %v2541 = vsub.s32 %v2538, %v2540
  %v2542 = vrot.slane %v2535, %v2541
  %v2544 = vunpack.c.l.s4 1983009808
  %v2545 = vunpack.c.0.s8 %v2544
  %v2546 = vlaneseq
  %v2547 = vshrl.u32 %v2546, 7
  %v2548 = vsub.s32 %v2545, %v2547
  %v2549 = vrot.slane %v2533, %v2548
  %2550 = vrot.lane.b32.xlu0 %v2542, 60
  %v2551 = vpop.permute.xlu0 %2550
  %2552 = vrot.lane.b32.xlu0 %v2549, 60
  %v2553 = vpop.permute.xlu0 %2552
  %v2554 = vrot.slane %v2551, 4
  %v2555 = vrot.slane %v2553, 4
  %v2556 = vsel %vm548, %v2554, %v2555
  %v2557 = vsel %vm2526, %v2551, %v2556
  %v2558 = vsel %vm2526, %v2553, %v2555
  %2561 = vst [vmem:[#allocation3 + $0x54] sm:$0xcc] %v2557
  %2562 = vst [vmem:[#allocation3 + $0x5c] sm:$0xc] %v2558
  %v2563 = vld [vmem:[#allocation2 + $0x2] sm:$0xff]
  %v2565 = vcombine.high %v2563, %v2563
  %v2567 = vunpack.c.l.s4 1983009808
  %v2568 = vunpack.c.0.s8 %v2567
  %v2569 = vlaneseq
  %v2570 = vshrl.u32 %v2569, 7
  %v2571 = vsub.s32 %v2568, %v2570
  %v2572 = vrot.slane %v2563, %v2571
  %v2574 = vunpack.c.l.s4 1983009808
  %v2575 = vunpack.c.0.s8 %v2574
  %v2576 = vlaneseq
  %v2577 = vshrl.u32 %v2576, 7
  %v2578 = vsub.s32 %v2575, %v2577
  %v2579 = vrot.slane %v2565, %v2578
  %2580 = vrot.lane.b32.xlu0 %v2572, 56
  %v2581 = vpop.permute.xlu0 %2580
  %2582 = vrot.lane.b32.xlu0 %v2579, 56
  %v2583 = vpop.permute.xlu0 %2582
  %v2584 = vrot.slane %v2581, 4
  %v2585 = vrot.slane %v2583, 4
  %v2586 = vsel %vm548, %v2584, %v2585
  %vm2587 = vcmask 457728
  %v2588 = vsel %vm2587, %v2581, %v2586
  %v2589 = vsel %vm2587, %v2583, %v2585
  %2592 = vst [vmem:[#allocation3 + $0x60] sm:$0x33] %v2588
  %2593 = vst [vmem:[#allocation3 + $0x68] sm:$0x3] %v2589
  %v2594 = vld [vmem:[%s557 + $0x2] sm:$0xff]
  %v2596 = vcombine.high %v2594, %v2594
  %v2598 = vunpack.c.l.s4 1983009808
  %v2599 = vunpack.c.0.s8 %v2598
  %v2600 = vlaneseq
  %v2601 = vshrl.u32 %v2600, 7
  %v2602 = vsub.s32 %v2599, %v2601
  %v2603 = vrot.slane %v2594, %v2602
  %v2605 = vunpack.c.l.s4 1983009808
  %v2606 = vunpack.c.0.s8 %v2605
  %v2607 = vlaneseq
  %v2608 = vshrl.u32 %v2607, 7
  %v2609 = vsub.s32 %v2606, %v2608
  %v2610 = vrot.slane %v2596, %v2609
  %2611 = vrot.lane.b32.xlu0 %v2603, 56
  %v2612 = vpop.permute.xlu0 %2611
  %2613 = vrot.lane.b32.xlu0 %v2610, 56
  %v2614 = vpop.permute.xlu0 %2613
  %v2615 = vrot.slane %v2612, 4
  %v2616 = vrot.slane %v2614, 4
  %v2617 = vsel %vm548, %v2615, %v2616
  %v2618 = vsel %vm2587, %v2612, %v2617
  %v2619 = vsel %vm2587, %v2614, %v2616
  %2622 = vst [vmem:[#allocation3 + $0x6c] sm:$0x33] %v2618
  %2623 = vst [vmem:[#allocation3 + $0x74] sm:$0x3] %v2619
  %s2624 = scalar_lea.vmem %s1, 8
  %v2625 = vld [vmem:[%s2624] sm:$0xf]
  %v2626 = vld [vmem:[#allocation3] sm:$0xff]
  %v2627 = vld [vmem:[#allocation3 + $0x8] sm:$0xff]
  %v2628 = vld [vmem:[#allocation3 + $0x10] sm:$0xff]
  %v2629 = vld [vmem:[#allocation3 + $0x18] sm:$0xff]
  %v2630 = vld [vmem:[#allocation3 + $0x20] sm:$0xff]
  %v2631 = vld [vmem:[#allocation3 + $0x28] sm:$0xff]
  %v2632 = vld [vmem:[#allocation3 + $0x30] sm:$0xff]
  %v2633 = vld [vmem:[#allocation3 + $0x38] sm:$0xff]
  %v2634 = vld [vmem:[#allocation3 + $0x40] sm:$0xff]
  %v2635 = vld [vmem:[#allocation3 + $0x48] sm:$0xff]
  %v2636 = vld [vmem:[#allocation3 + $0x50] sm:$0xff]
  %v2637 = vld [vmem:[#allocation3 + $0x58] sm:$0xff]
  %v2638 = vld [vmem:[#allocation3 + $0x60] sm:$0xff]
  %v2639 = vld [vmem:[#allocation3 + $0x68] sm:$0xff]
  %v2640 = vld [vmem:[#allocation3 + $0x70] sm:$0xff]
  %v2641 = vld [vmem:[#allocation3 + $0x78] sm:$0xff]
  %v2642 = vld [vmem:[#allocation3 + $0x80] sm:$0xff]
  %v2643 = vld [vmem:[#allocation3 + $0x88] sm:$0xff]
  %v2662 = vunpack.c.l.b16 %v2626
  %v2663 = vunpack.c.h.b16 %v2626
  %v2664 = vunpack.c.l.b16 %v2627
  %v2665 = vunpack.c.h.b16 %v2627
  %v2666 = vunpack.c.l.b16 %v2628
  %v2667 = vunpack.c.h.b16 %v2628
  %v2668 = vunpack.c.l.b16 %v2629
  %v2669 = vunpack.c.h.b16 %v2629
  %v2670 = vunpack.c.l.b16 %v2630
  %v2671 = vunpack.c.h.b16 %v2630
  %v2672 = vunpack.c.l.b16 %v2631
  %v2673 = vunpack.c.h.b16 %v2631
  %v2674 = vunpack.c.l.b16 %v2632
  %v2675 = vunpack.c.h.b16 %v2632
  %v2676 = vunpack.c.l.b16 %v2633
  %v2677 = vunpack.c.h.b16 %v2633
  %v2678 = vunpack.c.l.b16 %v2634
  %v2679 = vunpack.c.h.b16 %v2634
  %v2680 = vunpack.c.l.b16 %v2635
  %v2681 = vunpack.c.h.b16 %v2635
  %v2682 = vunpack.c.l.b16 %v2636
  %v2683 = vunpack.c.h.b16 %v2636
  %v2684 = vunpack.c.l.b16 %v2637
  %v2685 = vunpack.c.h.b16 %v2637
  %v2686 = vunpack.c.l.b16 %v2638
  %v2687 = vunpack.c.h.b16 %v2638
  %v2688 = vunpack.c.l.b16 %v2639
  %v2689 = vunpack.c.h.b16 %v2639
  %v2690 = vunpack.c.l.b16 %v2640
  %v2691 = vunpack.c.h.b16 %v2640
  %v2692 = vunpack.c.l.b16 %v2641
  %v2693 = vunpack.c.h.b16 %v2641
  %v2694 = vunpack.c.l.b16 %v2642
  %v2695 = vunpack.c.h.b16 %v2642
  %v2696 = vunpack.c.l.b16 %v2643
  %v2697 = vunpack.c.h.b16 %v2643
  %v2698 = vpack.c.b16 %v2668, %v2662
  %v2699 = vpack.c.b16 %v2669, %v2663
  %v2700 = vpack.c.b16 %v2670, %v2664
  %v2701 = vpack.c.b16 %v2671, %v2665
  %v2702 = vpack.c.b16 %v2672, %v2666
  %v2703 = vpack.c.b16 %v2673, %v2667
  %v2704 = vpack.c.b16 %v2680, %v2674
  %v2705 = vpack.c.b16 %v2681, %v2675
  %v2706 = vpack.c.b16 %v2682, %v2676
  %v2707 = vpack.c.b16 %v2683, %v2677
  %v2708 = vpack.c.b16 %v2684, %v2678
  %v2709 = vpack.c.b16 %v2685, %v2679
  %v2710 = vpack.c.b16 %v2692, %v2686
  %v2711 = vpack.c.b16 %v2693, %v2687
  %v2712 = vpack.c.b16 %v2694, %v2688
  %v2713 = vpack.c.b16 %v2695, %v2689
  %v2714 = vpack.c.b16 %v2696, %v2690
  %v2715 = vpack.c.b16 %v2697, %v2691
  %v2735 = vsel %vm1753, %v2625, 0
  %2737 = vmatprep.subr.bf16.mxu0 0
  %2738 = vmatpush1.bf16.msra.mxu0 0
  %2739 = vmatprep.subr.bf16.mxu0 0
  %2740 = vmatpush1.bf16.msra.mxu0 0
  %2741 = vmatprep.subr.bf16.mxu0 0
  %2742 = vmatpush1.bf16.msra.mxu0 0
  %2743 = vmatprep.subr.bf16.mxu0 0
  %2744 = vmatpush1.bf16.msra.mxu0 0
  %2745 = vmatprep.subr.bf16.mxu0 0
  %2746 = vmatpush1.bf16.msra.mxu0 0
  %2747 = vmatprep.subr.bf16.mxu0 %v2711
  %2748 = vmatpush1.bf16.msra.mxu0 %v2710
  %2749 = vmatprep.subr.bf16.mxu0 %v2705
  %2750 = vmatpush1.bf16.msra.mxu0 %v2704
  %2751 = vmatprep.subr.bf16.mxu0 %v2699
  %2752 = vmatpush1.bf16.msra.mxu0 %v2698
  %2753 = vmatprep.subr.bf16.mxu0 0
  %2754 = vmatpush2.bf16.msra.mxu0 0
  %2755 = vmatprep.subr.bf16.mxu0 0
  %2756 = vmatpush2.bf16.msra.mxu0 0
  %2757 = vmatprep.subr.bf16.mxu0 0
  %2758 = vmatpush2.bf16.msra.mxu0 0
  %2759 = vmatprep.subr.bf16.mxu0 0
  %2760 = vmatpush2.bf16.msra.mxu0 0
  %2761 = vmatprep.subr.bf16.mxu0 0
  %2762 = vmatpush2.bf16.msra.mxu0 0
  %2763 = vmatprep.subr.bf16.mxu0 0
  %2764 = vmatpush2.bf16.msra.mxu0 0
  %2765 = vmatprep.subr.bf16.mxu0 0
  %2766 = vmatpush2.bf16.msra.mxu0 0
  %2767 = vmatprep.subr.bf16.mxu0 0
  %2768 = vmatpush2.bf16.msra.mxu0 0
  %2769 = vmatprep.mubr.bf16.mxu0 0
  %2770 = vmatmul.mubr.bf16.gmra.mxu0 %v2735
  %v2771 = vpop.f32.mrf.mxu0
  %v2772 = vadd.f32 0.0, %v2771
  %v2773 = vpop.f32.mrf.mxu0
  %v2774 = vadd.f32 0.0, %v2773
  %v2775 = vpop.f32.mrf.mxu0
  %v2776 = vpop.f32.mrf.mxu0
  %2777 = vdwg.mxu0
  %2778 = vmatprep.subr.bf16.mxu0 0
  %2779 = vmatpush1.bf16.msra.mxu0 0
  %2780 = vmatprep.subr.bf16.mxu0 0
  %2781 = vmatpush1.bf16.msra.mxu0 0
  %2782 = vmatprep.subr.bf16.mxu0 0
  %2783 = vmatpush1.bf16.msra.mxu0 0
  %2784 = vmatprep.subr.bf16.mxu0 0
  %2785 = vmatpush1.bf16.msra.mxu0 0
  %2786 = vmatprep.subr.bf16.mxu0 0
  %2787 = vmatpush1.bf16.msra.mxu0 0
  %2788 = vmatprep.subr.bf16.mxu0 %v2713
  %2789 = vmatpush1.bf16.msra.mxu0 %v2712
  %2790 = vmatprep.subr.bf16.mxu0 %v2707
  %2791 = vmatpush1.bf16.msra.mxu0 %v2706
  %2792 = vmatprep.subr.bf16.mxu0 %v2701
  %2793 = vmatpush1.bf16.msra.mxu0 %v2700
  %2794 = vmatprep.subr.bf16.mxu0 0
  %2795 = vmatpush2.bf16.msra.mxu0 0
  %2796 = vmatprep.subr.bf16.mxu0 0
  %2797 = vmatpush2.bf16.msra.mxu0 0
  %2798 = vmatprep.subr.bf16.mxu0 0
  %2799 = vmatpush2.bf16.msra.mxu0 0
  %2800 = vmatprep.subr.bf16.mxu0 0
  %2801 = vmatpush2.bf16.msra.mxu0 0
  %2802 = vmatprep.subr.bf16.mxu0 0
  %2803 = vmatpush2.bf16.msra.mxu0 0
  %2804 = vmatprep.subr.bf16.mxu0 0
  %2805 = vmatpush2.bf16.msra.mxu0 0
  %2806 = vmatprep.subr.bf16.mxu0 0
  %2807 = vmatpush2.bf16.msra.mxu0 0
  %2808 = vmatprep.subr.bf16.mxu0 0
  %2809 = vmatpush2.bf16.msra.mxu0 0
  %2810 = vmatprep.mubr.bf16.mxu0 0
  %2811 = vmatmul.mubr.bf16.gmra.mxu0 %v2735
  %v2812 = vpop.f32.mrf.mxu0
  %v2813 = vadd.f32 0.0, %v2812
  %v2814 = vpop.f32.mrf.mxu0
  %v2815 = vadd.f32 0.0, %v2814
  %v2816 = vpop.f32.mrf.mxu0
  %v2817 = vpop.f32.mrf.mxu0
  %2818 = vdwg.mxu0
  %2819 = vmatprep.subr.bf16.mxu0 0
  %2820 = vmatpush1.bf16.msra.mxu0 0
  %2821 = vmatprep.subr.bf16.mxu0 0
  %2822 = vmatpush1.bf16.msra.mxu0 0
  %2823 = vmatprep.subr.bf16.mxu0 0
  %2824 = vmatpush1.bf16.msra.mxu0 0
  %2825 = vmatprep.subr.bf16.mxu0 0
  %2826 = vmatpush1.bf16.msra.mxu0 0
  %2827 = vmatprep.subr.bf16.mxu0 0
  %2828 = vmatpush1.bf16.msra.mxu0 0
  %2829 = vmatprep.subr.bf16.mxu0 %v2715
  %2830 = vmatpush1.bf16.msra.mxu0 %v2714
  %2831 = vmatprep.subr.bf16.mxu0 %v2709
  %2832 = vmatpush1.bf16.msra.mxu0 %v2708
  %2833 = vmatprep.subr.bf16.mxu0 %v2703
  %2834 = vmatpush1.bf16.msra.mxu0 %v2702
  %2835 = vmatprep.subr.bf16.mxu0 0
  %2836 = vmatpush2.bf16.msra.mxu0 0
  %2837 = vmatprep.subr.bf16.mxu0 0
  %2838 = vmatpush2.bf16.msra.mxu0 0
  %2839 = vmatprep.subr.bf16.mxu0 0
  %2840 = vmatpush2.bf16.msra.mxu0 0
  %2841 = vmatprep.subr.bf16.mxu0 0
  %2842 = vmatpush2.bf16.msra.mxu0 0
  %2843 = vmatprep.subr.bf16.mxu0 0
  %2844 = vmatpush2.bf16.msra.mxu0 0
  %2845 = vmatprep.subr.bf16.mxu0 0
  %2846 = vmatpush2.bf16.msra.mxu0 0
  %2847 = vmatprep.subr.bf16.mxu0 0
  %2848 = vmatpush2.bf16.msra.mxu0 0
  %2849 = vmatprep.subr.bf16.mxu0 0
  %2850 = vmatpush2.bf16.msra.mxu0 0
  %2851 = vmatprep.mubr.bf16.mxu0 0
  %2852 = vmatmul.mubr.bf16.gmra.mxu0 %v2735
  %v2853 = vpop.f32.mrf.mxu0
  %v2854 = vadd.f32 0.0, %v2853
  %v2855 = vpop.f32.mrf.mxu0
  %v2856 = vadd.f32 0.0, %v2855
  %v2857 = vpop.f32.mrf.mxu0
  %v2858 = vpop.f32.mrf.mxu0
  %2859 = vdwg.mxu0
  %v2860 = vadd.f32 %v2008, %v2772
  %v2861 = vadd.f32 %v2010, %v2774
  %v2862 = vadd.f32 %v2049, %v2813
  %v2863 = vadd.f32 %v2051, %v2815
  %v2864 = vadd.f32 %v2090, %v2854
  %v2865 = vadd.f32 %v2092, %v2856
  %v2866 = vld [vmem:[%s2] sm:$0xff]
  %2868 = vset.pattern.permute.xlu0 0
  %2869 = vperm.xlu0 %2868, %v2866
  %v2870 = vpop.permute.xlu0 %2869
  %v2872 = vadd.f32 %v2860, %v2870
  %v2873 = vadd.f32 %v2861, %v2870
  %v2874 = vadd.f32 %v2862, %v2870
  %v2875 = vadd.f32 %v2863, %v2870
  %v2876 = vadd.f32 %v2864, %v2870
  %v2877 = vadd.f32 %v2865, %v2870
  %v2878 = vmin.f32 %v2872, 20.0
  %v2879 = vmin.f32 %v2873, 20.0
  %v2880 = vmin.f32 %v2874, 20.0
  %v2881 = vmin.f32 %v2875, 20.0
  %v2882 = vmin.f32 %v2876, 20.0
  %v2883 = vmin.f32 %v2877, 20.0
  %v2884 = vmul.f32 %v2878, 1.442695
  %v2885 = vpow.pop %v2884
  %v2886 = vmul.f32 %v2879, 1.442695
  %v2887 = vpow.pop %v2886
  %v2888 = vmul.f32 %v2880, 1.442695
  %v2889 = vpow.pop %v2888
  %v2890 = vmul.f32 %v2881, 1.442695
  %v2891 = vpow.pop %v2890
  %v2892 = vmul.f32 %v2882, 1.442695
  %v2893 = vpow.pop %v2892
  %v2894 = vmul.f32 %v2883, 1.442695
  %v2895 = vpow.pop %v2894
  %v2896 = vadd.f32 %v2885, 1.0
  %v2897 = vadd.f32 %v2887, 1.0
  %v2898 = vadd.f32 %v2889, 1.0
  %v2899 = vadd.f32 %v2891, 1.0
  %v2900 = vadd.f32 %v2893, 1.0
  %v2901 = vadd.f32 %v2895, 1.0
  %v2902 = vmul.f32 %v2896, %v2896
  %v2903 = vmul.f32 %v2897, %v2897
  %v2904 = vmul.f32 %v2898, %v2898
  %v2905 = vmul.f32 %v2899, %v2899
  %v2906 = vmul.f32 %v2900, %v2900
  %v2907 = vmul.f32 %v2901, %v2901
  %v2908 = vsub.f32 %v2902, 1.0
  %v2909 = vsub.f32 %v2903, 1.0
  %v2910 = vsub.f32 %v2904, 1.0
  %v2911 = vsub.f32 %v2905, 1.0
  %v2912 = vsub.f32 %v2906, 1.0
  %v2913 = vsub.f32 %v2907, 1.0
  %v2914 = vmul.f32 %v2872, %v2908
  %v2915 = vmul.f32 %v2873, %v2909
  %v2916 = vmul.f32 %v2874, %v2910
  %v2917 = vmul.f32 %v2875, %v2911
  %v2918 = vmul.f32 %v2876, %v2912
  %v2919 = vmul.f32 %v2877, %v2913
  %v2920 = vadd.f32 %v2902, 1.0
  %v2921 = vadd.f32 %v2903, 1.0
  %v2922 = vadd.f32 %v2904, 1.0
  %v2923 = vadd.f32 %v2905, 1.0
  %v2924 = vadd.f32 %v2906, 1.0
  %v2925 = vadd.f32 %v2907, 1.0
  %v2926 = vrcp.pop %v2920
  %v2927 = vrcp.pop %v2921
  %v2928 = vrcp.pop %v2922
  %v2929 = vrcp.pop %v2923
  %v2930 = vrcp.pop %v2924
  %v2931 = vrcp.pop %v2925
  %v2932 = vmul.f32 %v2914, %v2926
  %v2933 = vmul.f32 %v2915, %v2927
  %v2934 = vmul.f32 %v2916, %v2928
  %v2935 = vmul.f32 %v2917, %v2929
  %v2936 = vmul.f32 %v2918, %v2930
  %v2937 = vmul.f32 %v2919, %v2931
  %2938 = vst [vmem:[%s3] sm:$0xff] %v2932
  %2939 = vst [vmem:[%s3 + $0x8] sm:$0xff] %v2933
  %2940 = vst [vmem:[%s3 + $0x10] sm:$0xff] %v2934
  %s2941 = scalar_lea.vmem %s3, 24
  %2942 = vst [vmem:[%s2941] sm:$0xff] %v2935
  %2943 = vst [vmem:[%s2941 + $0x8] sm:$0xff] %v2936
  %2944 = vst [vmem:[%s2941 + $0x10] sm:$0xff] %v2937
  // Predicated region
  $region14: #{_aspp_share_forward.1} parent=0 // pred_check
    _
  $region15: #{_aspp_share_forward.1} parent=0 // pred_check_branch
    %2946 = sbr.rel (0) target = $region17
  $region16: #{_aspp_share_forward.1} parent=0 // pred_region
    _
  $region17: #{_aspp_share_forward.1} parent=0 // pred_fallthru
    _
  // Predicated region
  $region18: #{_aspp_share_forward.1} parent=0 // pred_check
    _
  $region19: #{_aspp_share_forward.1} parent=0 // pred_check_branch
    %2948 = sbr.rel (0) target = $region21
  $region20: #{_aspp_share_forward.1} parent=0 // pred_region
    _
  $region21: #{_aspp_share_forward.1} parent=0 // pred_fallthru
    _

</llo_original>
